<compile_context>
chip_gen: v7x
topology: tpu7x:2x2x1
jax: 0.10.0
libtpu: 0.0.40
codegen_flags: <defaults>
</compile_context>

<pallas_src>
import math

import jax
import jax.numpy as jnp
from jax.experimental import pallas as pl
from jax.experimental.pallas import tpu as pltpu

# ------------------------- scaled-down BERT config -------------------------
VOCAB = 1000
TYPE_VOCAB = 2
MAX_POS = 64
HIDDEN = 128
NUM_HEADS = 2
HEAD_DIM = HIDDEN // NUM_HEADS
INTERMEDIATE = 4 * HIDDEN
NUM_LAYERS = 2
LN_EPS = 1e-12


# ------------------------------ kernel helpers ------------------------------
def _layer_norm(x, gamma, beta, eps=LN_EPS):
    # f32 statistics (v5e VPU/EUP have no bf16 path).
    mean = jnp.mean(x, axis=-1, keepdims=True)
    var = jnp.mean((x - mean) ** 2, axis=-1, keepdims=True)
    return (x - mean) * jax.lax.rsqrt(var + eps) * gamma + beta


def _gelu(x):
    # TODO(synk): HF BERT uses exact erf-based GELU; tanh approximation used
    # here for a Mosaic-friendly lowering (EUP tanh slot).
    c = 0.7978845608028654  # sqrt(2/pi)
    return 0.5 * x * (1.0 + jnp.tanh(c * (x + 0.044715 * x * x * x)))


# ------------------------------ fused kernel --------------------------------
def fused_bert_kernel(x_ref, mask_ref, eg_ref, eb_ref,
                      wqkv_ref, bqkv_ref, wo_ref, bo_ref, ln1g_ref, ln1b_ref,
                      fw1_ref, fb1_ref, fw2_ref, fb2_ref, ln2g_ref, ln2b_ref,
                      wp_ref, bp_ref, wc_ref, bc_ref,
                      o_ref, h_ref, ctx_ref):
    """Grid axis = layer index ("arbitrary"). Activation lives in h_ref."""
    l = pl.program_id(0)
    B, S = mask_ref.shape                            # static
    H = x_ref.shape[1]

    # --- embedding LayerNorm, only on the first grid step ---
    @pl.when(l == 0)
    def _():
        h_ref[...] = _layer_norm(x_ref[...], eg_ref[...], eb_ref[...])

    h = h_ref[...]                                   # (B*S, H) f32
    h_bf = h.astype(jnp.bfloat16)

    # --- fused QKV projection: one (B*S, H) @ (H, 3H) MXU pass ---
    qkv = jnp.dot(h_bf, wqkv_ref[0],
                  preferred_element_type=jnp.float32) + bqkv_ref[0]
    scale = 1.0 / math.sqrt(HEAD_DIM)
    q_bf = (qkv[:, 0:H] * scale).astype(jnp.bfloat16)      # scale folded once
    k_bf = qkv[:, H:2 * H].astype(jnp.bfloat16)
    v_bf = qkv[:, 2 * H:3 * H].astype(jnp.bfloat16)

    # --- attention (static loops over batch and heads; sizes are tiny) ---
    mask = mask_ref[...]                             # (B, S) additive bias, f32
    for b in range(B):
        r0 = b * S
        bias = mask[b:b + 1, :]                      # (1, S): broadcast over queries
        for hd in range(NUM_HEADS):
            lo = hd * HEAD_DIM
            qh = q_bf[r0:r0 + S, lo:lo + HEAD_DIM]
            kh = k_bf[r0:r0 + S, lo:lo + HEAD_DIM]
            vh = v_bf[r0:r0 + S, lo:lo + HEAD_DIM]
            # scores = qh @ kh^T (contract last dims, no explicit transpose)
            s = jax.lax.dot_general(qh, kh, (((1,), (1,)), ((), ())),
                                    preferred_element_type=jnp.float32)
            s = s + bias
            s = s - jnp.max(s, axis=-1, keepdims=True)
            p = jnp.exp(s)
            p = p * pl.reciprocal(jnp.sum(p, axis=-1, keepdims=True), approx=True)
            # write head context at static sublane/lane offsets (no concatenate)
            ctx_ref[r0:r0 + S, lo:lo + HEAD_DIM] = jnp.dot(
                p.astype(jnp.bfloat16), vh, preferred_element_type=jnp.float32)

    ctx = ctx_ref[...].astype(jnp.bfloat16)          # (B*S, H)

    attn = jnp.dot(ctx, wo_ref[0],
                   preferred_element_type=jnp.float32) + bo_ref[0]
    h1 = _layer_norm(h + attn, ln1g_ref[0], ln1b_ref[0])

    ff = _gelu(jnp.dot(h1.astype(jnp.bfloat16), fw1_ref[0],
                       preferred_element_type=jnp.float32) + fb1_ref[0])
    ff = jnp.dot(ff.astype(jnp.bfloat16), fw2_ref[0],
                 preferred_element_type=jnp.float32) + fb2_ref[0]
    h2 = _layer_norm(h1 + ff, ln2g_ref[0], ln2b_ref[0])
    h_ref[...] = h2                                  # carry to next layer

    # --- pooler + classifier epilogue on the last layer only ---
    @pl.when(l == pl.num_programs(0) - 1)
    def _():
        # [CLS] token of each batch element = row b*S of the flattened slab.
        cls = jnp.concatenate([h2[b * S:b * S + 1, :] for b in range(B)], axis=0)
        pooled = jnp.tanh(
            jnp.dot(cls, wp_ref[...], preferred_element_type=jnp.float32)
            + bp_ref[...])
        # dropout(p=0.1) is identity at inference
        logits = jnp.dot(pooled, wc_ref[...],
                         preferred_element_type=jnp.float32) + bc_ref[...]
        o_ref[...] = jax.nn.sigmoid(logits)


# ------------------------------ Pallas wrapper -------------------------------
def fused_forward(x_flat, mask_bias, p):
    BS, H = x_flat.shape
    B, S = mask_bias.shape
    L = p["wqkv"].shape[0]
    I = p["w1"].shape[2]

    def rep(shape):
        nd = len(shape)
        return pl.BlockSpec(shape, lambda l, nd=nd: (0,) * nd)

    def per_layer(shape):
        nd = len(shape)
        return pl.BlockSpec((1,) + shape, lambda l, nd=nd: (l,) + (0,) * nd)

    in_specs = [
        rep((BS, H)),                       # embedded inputs (flattened)
        rep((B, S)),                        # additive attention-mask bias
        rep((1, H)), rep((1, H)),           # embedding LN gamma/beta
        per_layer((H, 3 * H)), per_layer((1, 3 * H)),   # fused QKV
        per_layer((H, H)), per_layer((1, H)),           # attn out proj
        per_layer((1, H)), per_layer((1, H)),           # LN1
        per_layer((H, I)), per_layer((1, I)),           # FFN in
        per_layer((I, H)), per_layer((1, H)),           # FFN out
        per_layer((1, H)), per_layer((1, H)),           # LN2
        rep((H, H)), rep((1, H)),           # pooler
        rep((H, 1)), rep((1, 1)),           # classifier
    ]
    # NOTE: at real batch sizes, add a leading "parallel" batch-tile grid axis
    # so v7x's two TensorCores both stay busy; at B=2 the fused single-call
    # layer loop (weights streamed, activation resident) wins.
    return pl.pallas_call(
        fused_bert_kernel,
        out_shape=jax.ShapeDtypeStruct((B, 1), jnp.float32),
        grid=(L,),
        in_specs=in_specs,
        out_specs=pl.BlockSpec((B, 1), lambda l: (0, 0)),
        scratch_shapes=[pltpu.VMEM((BS, H), jnp.float32),    # resident activation
                        pltpu.VMEM((BS, H), jnp.float32)],   # attention context
        compiler_params=pltpu.CompilerParams(
            dimension_semantics=("arbitrary",)),
    )(x_flat, mask_bias, p["emb_ln_g"], p["emb_ln_b"],
      p["wqkv"], p["bqkv"], p["wo"], p["bo"], p["ln1_g"], p["ln1_b"],
      p["w1"], p["b1"], p["w2"], p["b2"], p["ln2_g"], p["ln2_b"],
      p["pool_w"], p["pool_b"], p["cls_w"], p["cls_b"])


# ------------------------------ parameter init ------------------------------
def init_params(key):
    ks = iter(jax.random.split(key, 32))
    std = 0.02
    L = NUM_LAYERS

    def nrm(shape, dtype=jnp.float32):
        return (std * jax.random.normal(next(ks), shape, dtype=jnp.float32)
                ).astype(dtype)

    return {
        # embeddings (f32; gathers happen in plain JAX glue)
        "word_emb": nrm((VOCAB, HIDDEN)),
        "pos_emb": nrm((MAX_POS, HIDDEN)),
        "type_emb": nrm((TYPE_VOCAB, HIDDEN)),
        "emb_ln_g": jnp.ones((1, HIDDEN), jnp.float32),
        "emb_ln_b": jnp.zeros((1, HIDDEN), jnp.float32),
        # per-layer weights stacked along leading L axis; matmul weights in bf16
        "wqkv": nrm((L, HIDDEN, 3 * HIDDEN), jnp.bfloat16),
        "bqkv": jnp.zeros((L, 1, 3 * HIDDEN), jnp.float32),
        "wo": nrm((L, HIDDEN, HIDDEN), jnp.bfloat16),
        "bo": jnp.zeros((L, 1, HIDDEN), jnp.float32),
        "ln1_g": jnp.ones((L, 1, HIDDEN), jnp.float32),
        "ln1_b": jnp.zeros((L, 1, HIDDEN), jnp.float32),
        "w1": nrm((L, HIDDEN, INTERMEDIATE), jnp.bfloat16),
        "b1": jnp.zeros((L, 1, INTERMEDIATE), jnp.float32),
        "w2": nrm((L, INTERMEDIATE, HIDDEN), jnp.bfloat16),
        "b2": jnp.zeros((L, 1, HIDDEN), jnp.float32),
        "ln2_g": jnp.ones((L, 1, HIDDEN), jnp.float32),
        "ln2_b": jnp.zeros((L, 1, HIDDEN), jnp.float32),
        # pooler + classifier (tiny; kept f32)
        "pool_w": nrm((HIDDEN, HIDDEN)),
        "pool_b": jnp.zeros((1, HIDDEN), jnp.float32),
        "cls_w": nrm((HIDDEN, 1)),           # nn.Linear(768, 1) scaled to HIDDEN
        "cls_b": jnp.zeros((1, 1), jnp.float32),
    }


# ------------------------------ forward (glue) ------------------------------
def bert_sentiment_forward(params, input_ids, attention_mask, token_type_ids=None):
    B, S = input_ids.shape
    if token_type_ids is None:
        token_type_ids = jnp.zeros_like(input_ids)

    # Embedding lookups are pure gathers (plain JAX glue); everything else is
    # one fused Pallas kernel.
    positions = jnp.arange(S)
    x = (jnp.take(params["word_emb"], input_ids, axis=0)
         + jnp.take(params["pos_emb"], positions, axis=0)[None, :, :]
         + jnp.take(params["type_emb"], token_type_ids, axis=0))
    x_flat = x.reshape(B * S, HIDDEN)
    # Embedding dropout (p=0.1) is identity at inference.

    # HF-style extended additive attention mask: (1 - mask) * -10000 (f32).
    mask_bias = (1.0 - attention_mask.astype(jnp.float32)) * -10000.0  # (B, S)

    return fused_forward(x_flat, mask_bias, params)


# ----------------------------------- main ------------------------------------
if __name__ == "__main__":
    key = jax.random.PRNGKey(0)
    pkey, ikey = jax.random.split(key)
    params = init_params(pkey)

    B, S = 2, 8
    input_ids = jax.random.randint(ikey, (B, S), 0, VOCAB, dtype=jnp.int32)
    attention_mask = jnp.array([[1, 1, 1, 1, 1, 1, 1, 1],
                                [1, 1, 1, 1, 1, 1, 0, 0]], dtype=jnp.int32)
    token_type_ids = jnp.zeros((B, S), dtype=jnp.int32)

    fwd = jax.jit(bert_sentiment_forward)
    probs = fwd(params, input_ids, attention_mask, token_type_ids)
    probs = jax.block_until_ready(probs)

    assert probs.shape == (B, 1)
    assert bool(jnp.all((probs >= 0.0) & (probs <= 1.0)))
    print("KERNEL_OK")
</pallas_src>

<mosaic_0001>
module attributes {stable_mosaic.version = 11 : i64} {
  func.func @fused_bert_kernel(%arg0: i32, %arg1: memref<16x128xf32, #tpu.memory_space<vmem>>, %arg2: memref<2x8xf32, #tpu.memory_space<vmem>>, %arg3: memref<1x128xf32, #tpu.memory_space<vmem>>, %arg4: memref<1x128xf32, #tpu.memory_space<vmem>>, %arg5: memref<1x128x384xbf16, #tpu.memory_space<vmem>>, %arg6: memref<1x1x384xf32, #tpu.memory_space<vmem>>, %arg7: memref<1x128x128xbf16, #tpu.memory_space<vmem>>, %arg8: memref<1x1x128xf32, #tpu.memory_space<vmem>>, %arg9: memref<1x1x128xf32, #tpu.memory_space<vmem>>, %arg10: memref<1x1x128xf32, #tpu.memory_space<vmem>>, %arg11: memref<1x128x512xbf16, #tpu.memory_space<vmem>>, %arg12: memref<1x1x512xf32, #tpu.memory_space<vmem>>, %arg13: memref<1x512x128xbf16, #tpu.memory_space<vmem>>, %arg14: memref<1x1x128xf32, #tpu.memory_space<vmem>>, %arg15: memref<1x1x128xf32, #tpu.memory_space<vmem>>, %arg16: memref<1x1x128xf32, #tpu.memory_space<vmem>>, %arg17: memref<128x128xf32, #tpu.memory_space<vmem>>, %arg18: memref<1x128xf32, #tpu.memory_space<vmem>>, %arg19: memref<128x1xf32, #tpu.memory_space<vmem>>, %arg20: memref<1x1xf32, #tpu.memory_space<vmem>>, %arg21: memref<2x1xf32, #tpu.memory_space<vmem>>, %arg22: memref<16x128xf32, #tpu.memory_space<vmem>>, %arg23: memref<16x128xf32, #tpu.memory_space<vmem>>) attributes {dimension_semantics = [#tpu.dimension_semantics<arbitrary>], iteration_bounds = array<i64: 2>, scalar_prefetch = 0 : i64, scratch_operands = 2 : i64, tpu.core_type = #tpu.core_type<tc>, window_params = [{pipeline_mode = #tpu.pipeline_mode<synchronous>, transform_indices = @transform_0, window_bounds = array<i64: 16, 128>}, {pipeline_mode = #tpu.pipeline_mode<synchronous>, transform_indices = @transform_1, window_bounds = array<i64: 2, 8>}, {pipeline_mode = #tpu.pipeline_mode<synchronous>, transform_indices = @transform_2, window_bounds = array<i64: 1, 128>}, {pipeline_mode = #tpu.pipeline_mode<synchronous>, transform_indices = @transform_3, window_bounds = array<i64: 1, 128>}, {transform_indices = @transform_4, window_bounds = array<i64: 1, 128, 384>}, {transform_indices = @transform_5, window_bounds = array<i64: 1, 1, 384>}, {transform_indices = @transform_6, window_bounds = array<i64: 1, 128, 128>}, {transform_indices = @transform_7, window_bounds = array<i64: 1, 1, 128>}, {transform_indices = @transform_8, window_bounds = array<i64: 1, 1, 128>}, {transform_indices = @transform_9, window_bounds = array<i64: 1, 1, 128>}, {transform_indices = @transform_10, window_bounds = array<i64: 1, 128, 512>}, {transform_indices = @transform_11, window_bounds = array<i64: 1, 1, 512>}, {transform_indices = @transform_12, window_bounds = array<i64: 1, 512, 128>}, {transform_indices = @transform_13, window_bounds = array<i64: 1, 1, 128>}, {transform_indices = @transform_14, window_bounds = array<i64: 1, 1, 128>}, {transform_indices = @transform_15, window_bounds = array<i64: 1, 1, 128>}, {pipeline_mode = #tpu.pipeline_mode<synchronous>, transform_indices = @transform_16, window_bounds = array<i64: 128, 128>}, {pipeline_mode = #tpu.pipeline_mode<synchronous>, transform_indices = @transform_17, window_bounds = array<i64: 1, 128>}, {pipeline_mode = #tpu.pipeline_mode<synchronous>, transform_indices = @transform_18, window_bounds = array<i64: 128, 1>}, {pipeline_mode = #tpu.pipeline_mode<synchronous>, transform_indices = @transform_19, window_bounds = array<i64: 1, 1>}, {pipeline_mode = #tpu.pipeline_mode<synchronous>, transform_indices = @transform_20, window_bounds = array<i64: 2, 1>}]} {
    %c0_i32 = arith.constant 0 : i32
    %0 = arith.cmpi eq, %arg0, %c0_i32 : i32
    %1 = arith.extui %0 : i1 to i32
    %c0_i32_0 = arith.constant 0 : i32
    %2 = arith.cmpi ne, %1, %c0_i32_0 : i32
    scf.if %2 {
      %c0_85 = arith.constant 0 : index
      %c0_86 = arith.constant 0 : index
      %195 = vector.load %arg1[%c0_85, %c0_86] : memref<16x128xf32, #tpu.memory_space<vmem>>, vector<16x128xf32>
      %c0_87 = arith.constant 0 : index
      %c0_88 = arith.constant 0 : index
      %196 = vector.load %arg3[%c0_87, %c0_88] : memref<1x128xf32, #tpu.memory_space<vmem>>, vector<1x128xf32>
      %c0_89 = arith.constant 0 : index
      %c0_90 = arith.constant 0 : index
      %197 = vector.load %arg4[%c0_89, %c0_90] : memref<1x128xf32, #tpu.memory_space<vmem>>, vector<1x128xf32>
      %cst_91 = arith.constant dense<0.000000e+00> : vector<16xf32>
      %198 = vector.multi_reduction <add>, %195, %cst_91 [1] : vector<16x128xf32> to vector<16xf32>
      %199 = vector.shape_cast %198 : vector<16xf32> to vector<16x1xf32>
      %cst_92 = arith.constant 1.280000e+02 : f32
      %200 = vector.broadcast %cst_92 : f32 to vector<16x1xf32>
      %201 = arith.divf %199, %200 : vector<16x1xf32>
      %202 = vector.broadcast %201 : vector<16x1xf32> to vector<16x128xf32>
      %203 = arith.subf %195, %202 : vector<16x128xf32>
      %204 = arith.mulf %203, %203 : vector<16x128xf32>
      %cst_93 = arith.constant dense<0.000000e+00> : vector<16xf32>
      %205 = vector.multi_reduction <add>, %204, %cst_93 [1] : vector<16x128xf32> to vector<16xf32>
      %206 = vector.shape_cast %205 : vector<16xf32> to vector<16x1xf32>
      %cst_94 = arith.constant 1.280000e+02 : f32
      %207 = vector.broadcast %cst_94 : f32 to vector<16x1xf32>
      %208 = arith.divf %206, %207 : vector<16x1xf32>
      %209 = vector.broadcast %201 : vector<16x1xf32> to vector<16x128xf32>
      %210 = arith.subf %195, %209 : vector<16x128xf32>
      %cst_95 = arith.constant 9.99999996E-13 : f32
      %211 = vector.broadcast %cst_95 : f32 to vector<16x1xf32>
      %212 = arith.addf %208, %211 : vector<16x1xf32>
      %213 = math.rsqrt %212 : vector<16x1xf32>
      %214 = vector.broadcast %213 : vector<16x1xf32> to vector<16x128xf32>
      %215 = arith.mulf %210, %214 : vector<16x128xf32>
      %216 = vector.broadcast %196 : vector<1x128xf32> to vector<16x128xf32>
      %217 = arith.mulf %215, %216 : vector<16x128xf32>
      %218 = vector.broadcast %197 : vector<1x128xf32> to vector<16x128xf32>
      %219 = arith.addf %217, %218 : vector<16x128xf32>
      %c0_96 = arith.constant 0 : index
      %c0_97 = arith.constant 0 : index
      %220 = vector.load %arg22[%c0_96, %c0_97] : memref<16x128xf32, #tpu.memory_space<vmem>>, vector<16x128xf32>
      tpu.vector_store %arg22[%c0_96, %c0_97], %219 {strides = array<i32>} : memref<16x128xf32, #tpu.memory_space<vmem>>, vector<16x128xf32>,
    } else {
    }
    %c0 = arith.constant 0 : index
    %c0_1 = arith.constant 0 : index
    %3 = vector.load %arg22[%c0, %c0_1] : memref<16x128xf32, #tpu.memory_space<vmem>>, vector<16x128xf32>
    %4 = arith.truncf %3 : vector<16x128xf32> to vector<16x128xbf16>
    %c0_2 = arith.constant 0 : index
    %c0_3 = arith.constant 0 : index
    %c0_4 = arith.constant 0 : index
    %5 = vector.load %arg5[%c0_2, %c0_3, %c0_4] : memref<1x128x384xbf16, #tpu.memory_space<vmem>>, vector<1x128x384xbf16>
    %6 = vector.shape_cast %5 : vector<1x128x384xbf16> to vector<128x384xbf16>
    %cst = arith.constant dense<0.000000e+00> : vector<16x384xf32>
    %7 = tpu.matmul %4, %6, %cst {dimension_numbers = #tpu.dot_dimension_numbers<[1], [0], [0], [1], [0, 0, 1, 1], [], []>} : vector<16x128xbf16>, vector<128x384xbf16>, vector<16x384xf32> -> vector<16x384xf32>
    %c0_5 = arith.constant 0 : index
    %c0_6 = arith.constant 0 : index
    %c0_7 = arith.constant 0 : index
    %8 = vector.load %arg6[%c0_5, %c0_6, %c0_7] : memref<1x1x384xf32, #tpu.memory_space<vmem>>, vector<1x1x384xf32>
    %9 = vector.shape_cast %8 : vector<1x1x384xf32> to vector<1x384xf32>
    %10 = vector.broadcast %9 : vector<1x384xf32> to vector<16x384xf32>
    %11 = arith.addf %7, %10 : vector<16x384xf32>
    %12 = vector.extract_strided_slice %11 {offsets = [0, 0], sizes = [16, 128], strides = [1, 1]} : vector<16x384xf32> to vector<16x128xf32>
    %cst_8 = arith.constant 1.250000e-01 : f32
    %13 = vector.broadcast %cst_8 : f32 to vector<16x128xf32>
    %14 = arith.mulf %12, %13 : vector<16x128xf32>
    %15 = arith.truncf %14 : vector<16x128xf32> to vector<16x128xbf16>
    %16 = vector.extract_strided_slice %11 {offsets = [0, 128], sizes = [16, 128], strides = [1, 1]} : vector<16x384xf32> to vector<16x128xf32>
    %17 = arith.truncf %16 : vector<16x128xf32> to vector<16x128xbf16>
    %18 = vector.extract_strided_slice %11 {offsets = [0, 256], sizes = [16, 128], strides = [1, 1]} : vector<16x384xf32> to vector<16x128xf32>
    %19 = arith.truncf %18 : vector<16x128xf32> to vector<16x128xbf16>
    %c0_9 = arith.constant 0 : index
    %c0_10 = arith.constant 0 : index
    %20 = vector.load %arg2[%c0_9, %c0_10] : memref<2x8xf32, #tpu.memory_space<vmem>>, vector<2x8xf32>
    %21 = vector.extract_strided_slice %20 {offsets = [0, 0], sizes = [1, 8], strides = [1, 1]} : vector<2x8xf32> to vector<1x8xf32>
    %22 = vector.extract_strided_slice %15 {offsets = [0, 0], sizes = [8, 64], strides = [1, 1]} : vector<16x128xbf16> to vector<8x64xbf16>
    %23 = vector.extract_strided_slice %17 {offsets = [0, 0], sizes = [8, 64], strides = [1, 1]} : vector<16x128xbf16> to vector<8x64xbf16>
    %24 = vector.extract_strided_slice %19 {offsets = [0, 0], sizes = [8, 64], strides = [1, 1]} : vector<16x128xbf16> to vector<8x64xbf16>
    %cst_11 = arith.constant dense<0.000000e+00> : vector<8x8xf32>
    %25 = tpu.matmul %22, %23, %cst_11 {dimension_numbers = #tpu.dot_dimension_numbers<[1], [1], [0], [0], [0, 0, 1, 0], [], []>} : vector<8x64xbf16>, vector<8x64xbf16>, vector<8x8xf32> -> vector<8x8xf32>
    %26 = vector.broadcast %21 : vector<1x8xf32> to vector<8x8xf32>
    %27 = arith.addf %25, %26 : vector<8x8xf32>
    %cst_12 = arith.constant dense<0xFF800000> : vector<8xf32>
    %28 = vector.multi_reduction <maximumf>, %27, %cst_12 [1] : vector<8x8xf32> to vector<8xf32>
    %29 = vector.shape_cast %28 : vector<8xf32> to vector<8x1xf32>
    %30 = vector.broadcast %29 : vector<8x1xf32> to vector<8x8xf32>
    %31 = arith.subf %27, %30 : vector<8x8xf32>
    %32 = math.exp %31 : vector<8x8xf32>
    %cst_13 = arith.constant dense<0.000000e+00> : vector<8xf32>
    %33 = vector.multi_reduction <add>, %32, %cst_13 [1] : vector<8x8xf32> to vector<8xf32>
    %34 = vector.shape_cast %33 : vector<8xf32> to vector<8x1xf32>
    %35 = tpu.reciprocal %34 {approx = true} : vector<8x1xf32> -> vector<8x1xf32>
    %36 = vector.broadcast %35 : vector<8x1xf32> to vector<8x8xf32>
    %37 = arith.mulf %32, %36 : vector<8x8xf32>
    %38 = arith.truncf %37 : vector<8x8xf32> to vector<8x8xbf16>
    %cst_14 = arith.constant dense<0.000000e+00> : vector<8x64xf32>
    %39 = tpu.matmul %38, %24, %cst_14 {dimension_numbers = #tpu.dot_dimension_numbers<[1], [0], [0], [1], [0, 0, 1, 1], [], []>} : vector<8x8xbf16>, vector<8x64xbf16>, vector<8x64xf32> -> vector<8x64xf32>
    %c0_15 = arith.constant 0 : index
    %c0_16 = arith.constant 0 : index
    %40 = vector.load %arg23[%c0_15, %c0_16] : memref<16x128xf32, #tpu.memory_space<vmem>>, vector<8x64xf32>
    tpu.vector_store %arg23[%c0_15, %c0_16], %39 {strides = array<i32>} : memref<16x128xf32, #tpu.memory_space<vmem>>, vector<8x64xf32>,
    %41 = vector.extract_strided_slice %15 {offsets = [0, 64], sizes = [8, 64], strides = [1, 1]} : vector<16x128xbf16> to vector<8x64xbf16>
    %42 = vector.extract_strided_slice %17 {offsets = [0, 64], sizes = [8, 64], strides = [1, 1]} : vector<16x128xbf16> to vector<8x64xbf16>
    %43 = vector.extract_strided_slice %19 {offsets = [0, 64], sizes = [8, 64], strides = [1, 1]} : vector<16x128xbf16> to vector<8x64xbf16>
    %cst_17 = arith.constant dense<0.000000e+00> : vector<8x8xf32>
    %44 = tpu.matmul %41, %42, %cst_17 {dimension_numbers = #tpu.dot_dimension_numbers<[1], [1], [0], [0], [0, 0, 1, 0], [], []>} : vector<8x64xbf16>, vector<8x64xbf16>, vector<8x8xf32> -> vector<8x8xf32>
    %45 = vector.broadcast %21 : vector<1x8xf32> to vector<8x8xf32>
    %46 = arith.addf %44, %45 : vector<8x8xf32>
    %cst_18 = arith.constant dense<0xFF800000> : vector<8xf32>
    %47 = vector.multi_reduction <maximumf>, %46, %cst_18 [1] : vector<8x8xf32> to vector<8xf32>
    %48 = vector.shape_cast %47 : vector<8xf32> to vector<8x1xf32>
    %49 = vector.broadcast %48 : vector<8x1xf32> to vector<8x8xf32>
    %50 = arith.subf %46, %49 : vector<8x8xf32>
    %51 = math.exp %50 : vector<8x8xf32>
    %cst_19 = arith.constant dense<0.000000e+00> : vector<8xf32>
    %52 = vector.multi_reduction <add>, %51, %cst_19 [1] : vector<8x8xf32> to vector<8xf32>
    %53 = vector.shape_cast %52 : vector<8xf32> to vector<8x1xf32>
    %54 = tpu.reciprocal %53 {approx = true} : vector<8x1xf32> -> vector<8x1xf32>
    %55 = vector.broadcast %54 : vector<8x1xf32> to vector<8x8xf32>
    %56 = arith.mulf %51, %55 : vector<8x8xf32>
    %57 = arith.truncf %56 : vector<8x8xf32> to vector<8x8xbf16>
    %cst_20 = arith.constant dense<0.000000e+00> : vector<8x64xf32>
    %58 = tpu.matmul %57, %43, %cst_20 {dimension_numbers = #tpu.dot_dimension_numbers<[1], [0], [0], [1], [0, 0, 1, 1], [], []>} : vector<8x8xbf16>, vector<8x64xbf16>, vector<8x64xf32> -> vector<8x64xf32>
    %c0_21 = arith.constant 0 : index
    %c64 = arith.constant 64 : index
    %59 = vector.load %arg23[%c0_21, %c64] : memref<16x128xf32, #tpu.memory_space<vmem>>, vector<8x64xf32>
    tpu.vector_store %arg23[%c0_21, %c64], %58 {strides = array<i32>} : memref<16x128xf32, #tpu.memory_space<vmem>>, vector<8x64xf32>,
    %60 = vector.extract_strided_slice %20 {offsets = [1, 0], sizes = [1, 8], strides = [1, 1]} : vector<2x8xf32> to vector<1x8xf32>
    %61 = vector.extract_strided_slice %15 {offsets = [8, 0], sizes = [8, 64], strides = [1, 1]} : vector<16x128xbf16> to vector<8x64xbf16>
    %62 = vector.extract_strided_slice %17 {offsets = [8, 0], sizes = [8, 64], strides = [1, 1]} : vector<16x128xbf16> to vector<8x64xbf16>
    %63 = vector.extract_strided_slice %19 {offsets = [8, 0], sizes = [8, 64], strides = [1, 1]} : vector<16x128xbf16> to vector<8x64xbf16>
    %cst_22 = arith.constant dense<0.000000e+00> : vector<8x8xf32>
    %64 = tpu.matmul %61, %62, %cst_22 {dimension_numbers = #tpu.dot_dimension_numbers<[1], [1], [0], [0], [0, 0, 1, 0], [], []>} : vector<8x64xbf16>, vector<8x64xbf16>, vector<8x8xf32> -> vector<8x8xf32>
    %65 = vector.broadcast %60 : vector<1x8xf32> to vector<8x8xf32>
    %66 = arith.addf %64, %65 : vector<8x8xf32>
    %cst_23 = arith.constant dense<0xFF800000> : vector<8xf32>
    %67 = vector.multi_reduction <maximumf>, %66, %cst_23 [1] : vector<8x8xf32> to vector<8xf32>
    %68 = vector.shape_cast %67 : vector<8xf32> to vector<8x1xf32>
    %69 = vector.broadcast %68 : vector<8x1xf32> to vector<8x8xf32>
    %70 = arith.subf %66, %69 : vector<8x8xf32>
    %71 = math.exp %70 : vector<8x8xf32>
    %cst_24 = arith.constant dense<0.000000e+00> : vector<8xf32>
    %72 = vector.multi_reduction <add>, %71, %cst_24 [1] : vector<8x8xf32> to vector<8xf32>
    %73 = vector.shape_cast %72 : vector<8xf32> to vector<8x1xf32>
    %74 = tpu.reciprocal %73 {approx = true} : vector<8x1xf32> -> vector<8x1xf32>
    %75 = vector.broadcast %74 : vector<8x1xf32> to vector<8x8xf32>
    %76 = arith.mulf %71, %75 : vector<8x8xf32>
    %77 = arith.truncf %76 : vector<8x8xf32> to vector<8x8xbf16>
    %cst_25 = arith.constant dense<0.000000e+00> : vector<8x64xf32>
    %78 = tpu.matmul %77, %63, %cst_25 {dimension_numbers = #tpu.dot_dimension_numbers<[1], [0], [0], [1], [0, 0, 1, 1], [], []>} : vector<8x8xbf16>, vector<8x64xbf16>, vector<8x64xf32> -> vector<8x64xf32>
    %c8 = arith.constant 8 : index
    %c0_26 = arith.constant 0 : index
    %79 = vector.load %arg23[%c8, %c0_26] : memref<16x128xf32, #tpu.memory_space<vmem>>, vector<8x64xf32>
    tpu.vector_store %arg23[%c8, %c0_26], %78 {strides = array<i32>} : memref<16x128xf32, #tpu.memory_space<vmem>>, vector<8x64xf32>,
    %80 = vector.extract_strided_slice %15 {offsets = [8, 64], sizes = [8, 64], strides = [1, 1]} : vector<16x128xbf16> to vector<8x64xbf16>
    %81 = vector.extract_strided_slice %17 {offsets = [8, 64], sizes = [8, 64], strides = [1, 1]} : vector<16x128xbf16> to vector<8x64xbf16>
    %82 = vector.extract_strided_slice %19 {offsets = [8, 64], sizes = [8, 64], strides = [1, 1]} : vector<16x128xbf16> to vector<8x64xbf16>
    %cst_27 = arith.constant dense<0.000000e+00> : vector<8x8xf32>
    %83 = tpu.matmul %80, %81, %cst_27 {dimension_numbers = #tpu.dot_dimension_numbers<[1], [1], [0], [0], [0, 0, 1, 0], [], []>} : vector<8x64xbf16>, vector<8x64xbf16>, vector<8x8xf32> -> vector<8x8xf32>
    %84 = vector.broadcast %60 : vector<1x8xf32> to vector<8x8xf32>
    %85 = arith.addf %83, %84 : vector<8x8xf32>
    %cst_28 = arith.constant dense<0xFF800000> : vector<8xf32>
    %86 = vector.multi_reduction <maximumf>, %85, %cst_28 [1] : vector<8x8xf32> to vector<8xf32>
    %87 = vector.shape_cast %86 : vector<8xf32> to vector<8x1xf32>
    %88 = vector.broadcast %87 : vector<8x1xf32> to vector<8x8xf32>
    %89 = arith.subf %85, %88 : vector<8x8xf32>
    %90 = math.exp %89 : vector<8x8xf32>
    %cst_29 = arith.constant dense<0.000000e+00> : vector<8xf32>
    %91 = vector.multi_reduction <add>, %90, %cst_29 [1] : vector<8x8xf32> to vector<8xf32>
    %92 = vector.shape_cast %91 : vector<8xf32> to vector<8x1xf32>
    %93 = tpu.reciprocal %92 {approx = true} : vector<8x1xf32> -> vector<8x1xf32>
    %94 = vector.broadcast %93 : vector<8x1xf32> to vector<8x8xf32>
    %95 = arith.mulf %90, %94 : vector<8x8xf32>
    %96 = arith.truncf %95 : vector<8x8xf32> to vector<8x8xbf16>
    %cst_30 = arith.constant dense<0.000000e+00> : vector<8x64xf32>
    %97 = tpu.matmul %96, %82, %cst_30 {dimension_numbers = #tpu.dot_dimension_numbers<[1], [0], [0], [1], [0, 0, 1, 1], [], []>} : vector<8x8xbf16>, vector<8x64xbf16>, vector<8x64xf32> -> vector<8x64xf32>
    %c8_31 = arith.constant 8 : index
    %c64_32 = arith.constant 64 : index
    %98 = vector.load %arg23[%c8_31, %c64_32] : memref<16x128xf32, #tpu.memory_space<vmem>>, vector<8x64xf32>
    tpu.vector_store %arg23[%c8_31, %c64_32], %97 {strides = array<i32>} : memref<16x128xf32, #tpu.memory_space<vmem>>, vector<8x64xf32>,
    %c0_33 = arith.constant 0 : index
    %c0_34 = arith.constant 0 : index
    %99 = vector.load %arg23[%c0_33, %c0_34] : memref<16x128xf32, #tpu.memory_space<vmem>>, vector<16x128xf32>
    %100 = arith.truncf %99 : vector<16x128xf32> to vector<16x128xbf16>
    %c0_35 = arith.constant 0 : index
    %c0_36 = arith.constant 0 : index
    %c0_37 = arith.constant 0 : index
    %101 = vector.load %arg7[%c0_35, %c0_36, %c0_37] : memref<1x128x128xbf16, #tpu.memory_space<vmem>>, vector<1x128x128xbf16>
    %102 = vector.shape_cast %101 : vector<1x128x128xbf16> to vector<128x128xbf16>
    %cst_38 = arith.constant dense<0.000000e+00> : vector<16x128xf32>
    %103 = tpu.matmul %100, %102, %cst_38 {dimension_numbers = #tpu.dot_dimension_numbers<[1], [0], [0], [1], [0, 0, 1, 1], [], []>} : vector<16x128xbf16>, vector<128x128xbf16>, vector<16x128xf32> -> vector<16x128xf32>
    %c0_39 = arith.constant 0 : index
    %c0_40 = arith.constant 0 : index
    %c0_41 = arith.constant 0 : index
    %104 = vector.load %arg8[%c0_39, %c0_40, %c0_41] : memref<1x1x128xf32, #tpu.memory_space<vmem>>, vector<1x1x128xf32>
    %105 = vector.shape_cast %104 : vector<1x1x128xf32> to vector<1x128xf32>
    %106 = vector.broadcast %105 : vector<1x128xf32> to vector<16x128xf32>
    %107 = arith.addf %103, %106 : vector<16x128xf32>
    %108 = arith.addf %3, %107 : vector<16x128xf32>
    %c0_42 = arith.constant 0 : index
    %c0_43 = arith.constant 0 : index
    %c0_44 = arith.constant 0 : index
    %109 = vector.load %arg9[%c0_42, %c0_43, %c0_44] : memref<1x1x128xf32, #tpu.memory_space<vmem>>, vector<1x1x128xf32>
    %110 = vector.shape_cast %109 : vector<1x1x128xf32> to vector<1x128xf32>
    %c0_45 = arith.constant 0 : index
    %c0_46 = arith.constant 0 : index
    %c0_47 = arith.constant 0 : index
    %111 = vector.load %arg10[%c0_45, %c0_46, %c0_47] : memref<1x1x128xf32, #tpu.memory_space<vmem>>, vector<1x1x128xf32>
    %112 = vector.shape_cast %111 : vector<1x1x128xf32> to vector<1x128xf32>
    %cst_48 = arith.constant dense<0.000000e+00> : vector<16xf32>
    %113 = vector.multi_reduction <add>, %108, %cst_48 [1] : vector<16x128xf32> to vector<16xf32>
    %114 = vector.shape_cast %113 : vector<16xf32> to vector<16x1xf32>
    %cst_49 = arith.constant 1.280000e+02 : f32
    %115 = vector.broadcast %cst_49 : f32 to vector<16x1xf32>
    %116 = arith.divf %114, %115 : vector<16x1xf32>
    %117 = vector.broadcast %116 : vector<16x1xf32> to vector<16x128xf32>
    %118 = arith.subf %108, %117 : vector<16x128xf32>
    %119 = arith.mulf %118, %118 : vector<16x128xf32>
    %cst_50 = arith.constant dense<0.000000e+00> : vector<16xf32>
    %120 = vector.multi_reduction <add>, %119, %cst_50 [1] : vector<16x128xf32> to vector<16xf32>
    %121 = vector.shape_cast %120 : vector<16xf32> to vector<16x1xf32>
    %cst_51 = arith.constant 1.280000e+02 : f32
    %122 = vector.broadcast %cst_51 : f32 to vector<16x1xf32>
    %123 = arith.divf %121, %122 : vector<16x1xf32>
    %124 = vector.broadcast %116 : vector<16x1xf32> to vector<16x128xf32>
    %125 = arith.subf %108, %124 : vector<16x128xf32>
    %cst_52 = arith.constant 9.99999996E-13 : f32
    %126 = vector.broadcast %cst_52 : f32 to vector<16x1xf32>
    %127 = arith.addf %123, %126 : vector<16x1xf32>
    %128 = math.rsqrt %127 : vector<16x1xf32>
    %129 = vector.broadcast %128 : vector<16x1xf32> to vector<16x128xf32>
    %130 = arith.mulf %125, %129 : vector<16x128xf32>
    %131 = vector.broadcast %110 : vector<1x128xf32> to vector<16x128xf32>
    %132 = arith.mulf %130, %131 : vector<16x128xf32>
    %133 = vector.broadcast %112 : vector<1x128xf32> to vector<16x128xf32>
    %134 = arith.addf %132, %133 : vector<16x128xf32>
    %135 = arith.truncf %134 : vector<16x128xf32> to vector<16x128xbf16>
    %c0_53 = arith.constant 0 : index
    %c0_54 = arith.constant 0 : index
    %c0_55 = arith.constant 0 : index
    %136 = vector.load %arg11[%c0_53, %c0_54, %c0_55] : memref<1x128x512xbf16, #tpu.memory_space<vmem>>, vector<1x128x512xbf16>
    %137 = vector.shape_cast %136 : vector<1x128x512xbf16> to vector<128x512xbf16>
    %cst_56 = arith.constant dense<0.000000e+00> : vector<16x512xf32>
    %138 = tpu.matmul %135, %137, %cst_56 {dimension_numbers = #tpu.dot_dimension_numbers<[1], [0], [0], [1], [0, 0, 1, 1], [], []>} : vector<16x128xbf16>, vector<128x512xbf16>, vector<16x512xf32> -> vector<16x512xf32>
    %c0_57 = arith.constant 0 : index
    %c0_58 = arith.constant 0 : index
    %c0_59 = arith.constant 0 : index
    %139 = vector.load %arg12[%c0_57, %c0_58, %c0_59] : memref<1x1x512xf32, #tpu.memory_space<vmem>>, vector<1x1x512xf32>
    %140 = vector.shape_cast %139 : vector<1x1x512xf32> to vector<1x512xf32>
    %141 = vector.broadcast %140 : vector<1x512xf32> to vector<16x512xf32>
    %142 = arith.addf %138, %141 : vector<16x512xf32>
    %cst_60 = arith.constant 5.000000e-01 : f32
    %143 = vector.broadcast %cst_60 : f32 to vector<16x512xf32>
    %144 = arith.mulf %143, %142 : vector<16x512xf32>
    %cst_61 = arith.constant 4.471500e-02 : f32
    %145 = vector.broadcast %cst_61 : f32 to vector<16x512xf32>
    %146 = arith.mulf %145, %142 : vector<16x512xf32>
    %147 = arith.mulf %146, %142 : vector<16x512xf32>
    %148 = arith.mulf %147, %142 : vector<16x512xf32>
    %149 = arith.addf %142, %148 : vector<16x512xf32>
    %cst_62 = arith.constant 0.797884583 : f32
    %150 = vector.broadcast %cst_62 : f32 to vector<16x512xf32>
    %151 = arith.mulf %150, %149 : vector<16x512xf32>
    %152 = math.tanh %151 : vector<16x512xf32>
    %cst_63 = arith.constant 1.000000e+00 : f32
    %153 = vector.broadcast %cst_63 : f32 to vector<16x512xf32>
    %154 = arith.addf %153, %152 : vector<16x512xf32>
    %155 = arith.mulf %144, %154 : vector<16x512xf32>
    %156 = arith.truncf %155 : vector<16x512xf32> to vector<16x512xbf16>
    %c0_64 = arith.constant 0 : index
    %c0_65 = arith.constant 0 : index
    %c0_66 = arith.constant 0 : index
    %157 = vector.load %arg13[%c0_64, %c0_65, %c0_66] : memref<1x512x128xbf16, #tpu.memory_space<vmem>>, vector<1x512x128xbf16>
    %158 = vector.shape_cast %157 : vector<1x512x128xbf16> to vector<512x128xbf16>
    %cst_67 = arith.constant dense<0.000000e+00> : vector<16x128xf32>
    %159 = tpu.matmul %156, %158, %cst_67 {dimension_numbers = #tpu.dot_dimension_numbers<[1], [0], [0], [1], [0, 0, 1, 1], [], []>} : vector<16x512xbf16>, vector<512x128xbf16>, vector<16x128xf32> -> vector<16x128xf32>
    %c0_68 = arith.constant 0 : index
    %c0_69 = arith.constant 0 : index
    %c0_70 = arith.constant 0 : index
    %160 = vector.load %arg14[%c0_68, %c0_69, %c0_70] : memref<1x1x128xf32, #tpu.memory_space<vmem>>, vector<1x1x128xf32>
    %161 = vector.shape_cast %160 : vector<1x1x128xf32> to vector<1x128xf32>
    %162 = vector.broadcast %161 : vector<1x128xf32> to vector<16x128xf32>
    %163 = arith.addf %159, %162 : vector<16x128xf32>
    %164 = arith.addf %134, %163 : vector<16x128xf32>
    %c0_71 = arith.constant 0 : index
    %c0_72 = arith.constant 0 : index
    %c0_73 = arith.constant 0 : index
    %165 = vector.load %arg15[%c0_71, %c0_72, %c0_73] : memref<1x1x128xf32, #tpu.memory_space<vmem>>, vector<1x1x128xf32>
    %166 = vector.shape_cast %165 : vector<1x1x128xf32> to vector<1x128xf32>
    %c0_74 = arith.constant 0 : index
    %c0_75 = arith.constant 0 : index
    %c0_76 = arith.constant 0 : index
    %167 = vector.load %arg16[%c0_74, %c0_75, %c0_76] : memref<1x1x128xf32, #tpu.memory_space<vmem>>, vector<1x1x128xf32>
    %168 = vector.shape_cast %167 : vector<1x1x128xf32> to vector<1x128xf32>
    %cst_77 = arith.constant dense<0.000000e+00> : vector<16xf32>
    %169 = vector.multi_reduction <add>, %164, %cst_77 [1] : vector<16x128xf32> to vector<16xf32>
    %170 = vector.shape_cast %169 : vector<16xf32> to vector<16x1xf32>
    %cst_78 = arith.constant 1.280000e+02 : f32
    %171 = vector.broadcast %cst_78 : f32 to vector<16x1xf32>
    %172 = arith.divf %170, %171 : vector<16x1xf32>
    %173 = vector.broadcast %172 : vector<16x1xf32> to vector<16x128xf32>
    %174 = arith.subf %164, %173 : vector<16x128xf32>
    %175 = arith.mulf %174, %174 : vector<16x128xf32>
    %cst_79 = arith.constant dense<0.000000e+00> : vector<16xf32>
    %176 = vector.multi_reduction <add>, %175, %cst_79 [1] : vector<16x128xf32> to vector<16xf32>
    %177 = vector.shape_cast %176 : vector<16xf32> to vector<16x1xf32>
    %cst_80 = arith.constant 1.280000e+02 : f32
    %178 = vector.broadcast %cst_80 : f32 to vector<16x1xf32>
    %179 = arith.divf %177, %178 : vector<16x1xf32>
    %180 = vector.broadcast %172 : vector<16x1xf32> to vector<16x128xf32>
    %181 = arith.subf %164, %180 : vector<16x128xf32>
    %cst_81 = arith.constant 9.99999996E-13 : f32
    %182 = vector.broadcast %cst_81 : f32 to vector<16x1xf32>
    %183 = arith.addf %179, %182 : vector<16x1xf32>
    %184 = math.rsqrt %183 : vector<16x1xf32>
    %185 = vector.broadcast %184 : vector<16x1xf32> to vector<16x128xf32>
    %186 = arith.mulf %181, %185 : vector<16x128xf32>
    %187 = vector.broadcast %166 : vector<1x128xf32> to vector<16x128xf32>
    %188 = arith.mulf %186, %187 : vector<16x128xf32>
    %189 = vector.broadcast %168 : vector<1x128xf32> to vector<16x128xf32>
    %190 = arith.addf %188, %189 : vector<16x128xf32>
    %c0_82 = arith.constant 0 : index
    %c0_83 = arith.constant 0 : index
    %191 = vector.load %arg22[%c0_82, %c0_83] : memref<16x128xf32, #tpu.memory_space<vmem>>, vector<16x128xf32>
    tpu.vector_store %arg22[%c0_82, %c0_83], %190 {strides = array<i32>} : memref<16x128xf32, #tpu.memory_space<vmem>>, vector<16x128xf32>,
    %c1_i32 = arith.constant 1 : i32
    %192 = arith.cmpi eq, %arg0, %c1_i32 : i32
    %193 = arith.extui %192 : i1 to i32
    %c0_i32_84 = arith.constant 0 : i32
    %194 = arith.cmpi ne, %193, %c0_i32_84 : i32
    scf.if %194 {
      %195 = vector.extract_strided_slice %190 {offsets = [0, 0], sizes = [1, 128], strides = [1, 1]} : vector<16x128xf32> to vector<1x128xf32>
      %196 = vector.extract_strided_slice %190 {offsets = [8, 0], sizes = [1, 128], strides = [1, 1]} : vector<16x128xf32> to vector<1x128xf32>
      %197 = tpu.concatenate %195, %196 in 0 : vector<1x128xf32>, vector<1x128xf32> -> vector<2x128xf32>
      %c0_85 = arith.constant 0 : index
      %c0_86 = arith.constant 0 : index
      %198 = vector.load %arg17[%c0_85, %c0_86] : memref<128x128xf32, #tpu.memory_space<vmem>>, vector<128x128xf32>
      %cst_87 = arith.constant dense<0.000000e+00> : vector<2x128xf32>
      %199 = tpu.matmul %197, %198, %cst_87 {dimension_numbers = #tpu.dot_dimension_numbers<[1], [0], [0], [1], [0, 0, 1, 1], [], []>} : vector<2x128xf32>, vector<128x128xf32>, vector<2x128xf32> -> vector<2x128xf32>
      %c0_88 = arith.constant 0 : index
      %c0_89 = arith.constant 0 : index
      %200 = vector.load %arg18[%c0_88, %c0_89] : memref<1x128xf32, #tpu.memory_space<vmem>>, vector<1x128xf32>
      %201 = vector.broadcast %200 : vector<1x128xf32> to vector<2x128xf32>
      %202 = arith.addf %199, %201 : vector<2x128xf32>
      %203 = math.tanh %202 : vector<2x128xf32>
      %c0_90 = arith.constant 0 : index
      %c0_91 = arith.constant 0 : index
      %204 = vector.load %arg19[%c0_90, %c0_91] : memref<128x1xf32, #tpu.memory_space<vmem>>, vector<128x1xf32>
      %cst_92 = arith.constant dense<0.000000e+00> : vector<2x1xf32>
      %205 = tpu.matmul %203, %204, %cst_92 {dimension_numbers = #tpu.dot_dimension_numbers<[1], [0], [0], [1], [0, 0, 1, 1], [], []>} : vector<2x128xf32>, vector<128x1xf32>, vector<2x1xf32> -> vector<2x1xf32>
      %c0_93 = arith.constant 0 : index
      %c0_94 = arith.constant 0 : index
      %206 = vector.load %arg20[%c0_93, %c0_94] : memref<1x1xf32, #tpu.memory_space<vmem>>, vector<1x1xf32>
      %207 = vector.broadcast %206 : vector<1x1xf32> to vector<2x1xf32>
      %208 = arith.addf %205, %207 : vector<2x1xf32>
      %209 = arith.negf %208 : vector<2x1xf32>
      %210 = math.exp %209 : vector<2x1xf32>
      %cst_95 = arith.constant 1.000000e+00 : f32
      %211 = vector.broadcast %cst_95 : f32 to vector<2x1xf32>
      %212 = arith.addf %211, %210 : vector<2x1xf32>
      %213 = arith.divf %211, %212 : vector<2x1xf32>
      %c0_96 = arith.constant 0 : index
      %c0_97 = arith.constant 0 : index
      %214 = vector.load %arg21[%c0_96, %c0_97] : memref<2x1xf32, #tpu.memory_space<vmem>>, vector<2x1xf32>
      tpu.vector_store %arg21[%c0_96, %c0_97], %213 {strides = array<i32>} : memref<2x1xf32, #tpu.memory_space<vmem>>, vector<2x1xf32>,
    } else {
    }
    return
  }
  func.func @transform_0(%arg0: i32) -> (i32, i32) {
    %c0_i32 = arith.constant 0 : i32
    %c0_i32_0 = arith.constant 0 : i32
    %c0_i32_1 = arith.constant 0 : i32
    return %c0_i32, %c0_i32_0 : i32, i32
  }
  func.func @transform_1(%arg0: i32) -> (i32, i32) {
    %c0_i32 = arith.constant 0 : i32
    %c0_i32_0 = arith.constant 0 : i32
    %c0_i32_1 = arith.constant 0 : i32
    return %c0_i32, %c0_i32_0 : i32, i32
  }
  func.func @transform_2(%arg0: i32) -> (i32, i32) {
    %c0_i32 = arith.constant 0 : i32
    %c0_i32_0 = arith.constant 0 : i32
    %c0_i32_1 = arith.constant 0 : i32
    return %c0_i32, %c0_i32_0 : i32, i32
  }
  func.func @transform_3(%arg0: i32) -> (i32, i32) {
    %c0_i32 = arith.constant 0 : i32
    %c0_i32_0 = arith.constant 0 : i32
    %c0_i32_1 = arith.constant 0 : i32
    return %c0_i32, %c0_i32_0 : i32, i32
  }
  func.func @transform_4(%arg0: i32) -> (i32, i32, i32) {
    %c0_i32 = arith.constant 0 : i32
    %c0_i32_0 = arith.constant 0 : i32
    %c0_i32_1 = arith.constant 0 : i32
    return %arg0, %c0_i32, %c0_i32_0 : i32, i32, i32
  }
  func.func @transform_5(%arg0: i32) -> (i32, i32, i32) {
    %c0_i32 = arith.constant 0 : i32
    %c0_i32_0 = arith.constant 0 : i32
    %c0_i32_1 = arith.constant 0 : i32
    return %arg0, %c0_i32, %c0_i32_0 : i32, i32, i32
  }
  func.func @transform_6(%arg0: i32) -> (i32, i32, i32) {
    %c0_i32 = arith.constant 0 : i32
    %c0_i32_0 = arith.constant 0 : i32
    %c0_i32_1 = arith.constant 0 : i32
    return %arg0, %c0_i32, %c0_i32_0 : i32, i32, i32
  }
  func.func @transform_7(%arg0: i32) -> (i32, i32, i32) {
    %c0_i32 = arith.constant 0 : i32
    %c0_i32_0 = arith.constant 0 : i32
    %c0_i32_1 = arith.constant 0 : i32
    return %arg0, %c0_i32, %c0_i32_0 : i32, i32, i32
  }
  func.func @transform_8(%arg0: i32) -> (i32, i32, i32) {
    %c0_i32 = arith.constant 0 : i32
    %c0_i32_0 = arith.constant 0 : i32
    %c0_i32_1 = arith.constant 0 : i32
    return %arg0, %c0_i32, %c0_i32_0 : i32, i32, i32
  }
  func.func @transform_9(%arg0: i32) -> (i32, i32, i32) {
    %c0_i32 = arith.constant 0 : i32
    %c0_i32_0 = arith.constant 0 : i32
    %c0_i32_1 = arith.constant 0 : i32
    return %arg0, %c0_i32, %c0_i32_0 : i32, i32, i32
  }
  func.func @transform_10(%arg0: i32) -> (i32, i32, i32) {
    %c0_i32 = arith.constant 0 : i32
    %c0_i32_0 = arith.constant 0 : i32
    %c0_i32_1 = arith.constant 0 : i32
    return %arg0, %c0_i32, %c0_i32_0 : i32, i32, i32
  }
  func.func @transform_11(%arg0: i32) -> (i32, i32, i32) {
    %c0_i32 = arith.constant 0 : i32
    %c0_i32_0 = arith.constant 0 : i32
    %c0_i32_1 = arith.constant 0 : i32
    return %arg0, %c0_i32, %c0_i32_0 : i32, i32, i32
  }
  func.func @transform_12(%arg0: i32) -> (i32, i32, i32) {
    %c0_i32 = arith.constant 0 : i32
    %c0_i32_0 = arith.constant 0 : i32
    %c0_i32_1 = arith.constant 0 : i32
    return %arg0, %c0_i32, %c0_i32_0 : i32, i32, i32
  }
  func.func @transform_13(%arg0: i32) -> (i32, i32, i32) {
    %c0_i32 = arith.constant 0 : i32
    %c0_i32_0 = arith.constant 0 : i32
    %c0_i32_1 = arith.constant 0 : i32
    return %arg0, %c0_i32, %c0_i32_0 : i32, i32, i32
  }
  func.func @transform_14(%arg0: i32) -> (i32, i32, i32) {
    %c0_i32 = arith.constant 0 : i32
    %c0_i32_0 = arith.constant 0 : i32
    %c0_i32_1 = arith.constant 0 : i32
    return %arg0, %c0_i32, %c0_i32_0 : i32, i32, i32
  }
  func.func @transform_15(%arg0: i32) -> (i32, i32, i32) {
    %c0_i32 = arith.constant 0 : i32
    %c0_i32_0 = arith.constant 0 : i32
    %c0_i32_1 = arith.constant 0 : i32
    return %arg0, %c0_i32, %c0_i32_0 : i32, i32, i32
  }
  func.func @transform_16(%arg0: i32) -> (i32, i32) {
    %c0_i32 = arith.constant 0 : i32
    %c0_i32_0 = arith.constant 0 : i32
    %c0_i32_1 = arith.constant 0 : i32
    return %c0_i32, %c0_i32_0 : i32, i32
  }
  func.func @transform_17(%arg0: i32) -> (i32, i32) {
    %c0_i32 = arith.constant 0 : i32
    %c0_i32_0 = arith.constant 0 : i32
    %c0_i32_1 = arith.constant 0 : i32
    return %c0_i32, %c0_i32_0 : i32, i32
  }
  func.func @transform_18(%arg0: i32) -> (i32, i32) {
    %c0_i32 = arith.constant 0 : i32
    %c0_i32_0 = arith.constant 0 : i32
    %c0_i32_1 = arith.constant 0 : i32
    return %c0_i32, %c0_i32_0 : i32, i32
  }
  func.func @transform_19(%arg0: i32) -> (i32, i32) {
    %c0_i32 = arith.constant 0 : i32
    %c0_i32_0 = arith.constant 0 : i32
    %c0_i32_1 = arith.constant 0 : i32
    return %c0_i32, %c0_i32_0 : i32, i32
  }
  func.func @transform_20(%arg0: i32) -> (i32, i32) {
    %c0_i32 = arith.constant 0 : i32
    %c0_i32_0 = arith.constant 0 : i32
    %c0_i32_1 = arith.constant 0 : i32
    return %c0_i32, %c0_i32_0 : i32, i32
  }
}

</mosaic_0001>

<llo_original>
// kernel: bert_sentiment_forward.1
$region0: #{bert_sentiment_forward.1}
  #allocation0 [shape = 'u32[]', space=smem, size = 0x4, offset = 0x4, fixed_abs, tag = 'smem constant byte address 0x4 - core index']
  #allocation1 [shape = 'u32[144,128]{1,0:T(1,128)}', space=vmem, size = 0x12000, scoped, tag = 'internal scratch']
  #allocation2 [shape = 'f32[16,128]{1,0:T(8,128)}', space=vmem, size = 0x2000, scoped, tag = 'scratch operand']
  #allocation3 [shape = 'f32[16,128]{1,0:T(8,128)}', space=vmem, size = 0x2000, scoped, tag = 'scratch operand']
  #allocation4 [shape = 'f32[1,1]{1,0:T(1,128)S(1)}', space=vmem, size = 0x200, scoped, tag = 'scoped memory for bert_sentiment_forward.1']
  %s0 = inlined_call_operand.vmem [shape: f32[16,128], index: 0, kind: input, shape index: {}]
  %s1 = inlined_call_operand.vmem [shape: f32[2,8], index: 1, kind: input, shape index: {}]
  %s2 = inlined_call_operand.vmem [shape: f32[1,128], index: 2, kind: input, shape index: {}]
  %s3 = inlined_call_operand.hbm [shape: f32[1,128], index: 3, kind: input, shape index: {}]
  %s4 = inlined_call_operand.vmem [shape: bf16[2,128,384], index: 4, kind: input, shape index: {}]
  %s5 = inlined_call_operand.vmem [shape: f32[2,1,384], index: 5, kind: input, shape index: {}]
  %s6 = inlined_call_operand.vmem [shape: bf16[2,128,128], index: 6, kind: input, shape index: {}]
  %s7 = inlined_call_operand.hbm [shape: f32[2,1,128], index: 7, kind: input, shape index: {}]
  %s8 = inlined_call_operand.vmem [shape: f32[2,1,128], index: 8, kind: input, shape index: {}]
  %s9 = inlined_call_operand.vmem [shape: f32[2,1,128], index: 9, kind: input, shape index: {}]
  %s10 = inlined_call_operand.hbm [shape: bf16[2,128,512], index: 10, kind: input, shape index: {}]
  %s11 = inlined_call_operand.hbm [shape: f32[2,1,512], index: 11, kind: input, shape index: {}]
  %s12 = inlined_call_operand.hbm [shape: bf16[2,512,128], index: 12, kind: input, shape index: {}]
  %s13 = inlined_call_operand.hbm [shape: f32[2,1,128], index: 13, kind: input, shape index: {}]
  %s14 = inlined_call_operand.vmem [shape: f32[2,1,128], index: 14, kind: input, shape index: {}]
  %s15 = inlined_call_operand.vmem [shape: f32[2,1,128], index: 15, kind: input, shape index: {}]
  %s16 = inlined_call_operand.vmem [shape: f32[128,128], index: 16, kind: input, shape index: {}]
  %s17 = inlined_call_operand.vmem [shape: f32[1,128], index: 17, kind: input, shape index: {}]
  %s18 = inlined_call_operand.vmem [shape: f32[128,1], index: 18, kind: input, shape index: {}]
  %s19 = inlined_call_operand.<no memory space> [shape: f32[1,1], index: 19, kind: input, shape index: {}]
  %s20 = inlined_call_operand.vmem [shape: f32[2,1], index: 20, kind: output, shape index: {}]
  %s21 = sld [smem:[#allocation0]]
  $region145: #{bert_sentiment_forward.1} parent=0
    _
  %s23 = ssub.s32 1, %s21
  %s24 = scalar_select 0, %s23, %s21
  %v25 = vstv %s19
  %26 = vst [vmem:[#allocation4] sm:$0x1] %v25
  $region1: #{bert_sentiment_forward.1} parent=0
    #allocation5 [shape = 'u8[512]{0}', space=vmem, size = 0x400, scoped, tag = 'input window, operand 3, single buffered']
    #allocation6 [shape = 's32[2]{0}', space=sflag, size = 0x8, scoped, tag = 'scoped memory for bert_sentiment_forward.1']
    #allocation7 [shape = 'u8[1024]{0}', space=vmem, size = 0x400, scoped, tag = 'input window, operand 7']
    #allocation8 [shape = 's32[2]{0}', space=sflag, size = 0x8, scoped, tag = 'scoped memory for bert_sentiment_forward.1']
    #allocation9 [shape = 'u8[262144]{0}', space=vmem, size = 0x40000, scoped, tag = 'input window, operand 10']
    #allocation10 [shape = 'u8[4096]{0}', space=vmem, size = 0x1000, scoped, tag = 'input window, operand 11']
    #allocation11 [shape = 's32[2]{0}', space=sflag, size = 0x8, scoped, tag = 'scoped memory for bert_sentiment_forward.1']
    #allocation12 [shape = 'u8[262144]{0}', space=vmem, size = 0x40000, scoped, tag = 'input window, operand 12']
    #allocation13 [shape = 'u8[1024]{0}', space=vmem, size = 0x400, scoped, tag = 'input window, operand 13']
    #allocation14 [shape = 's32[2]{0}', space=sflag, size = 0x8, scoped, tag = 'scoped memory for bert_sentiment_forward.1']
    %27 = vsyncpa [#allocation6], 0
    %28 = vsyncpa [#allocation8], 0
    %s29 = scalar_lea.sflag [#allocation8], 1
    %30 = vsyncpa %s29, 0
    %31 = vsyncpa [#allocation11], 0
    %s32 = scalar_lea.sflag [#allocation11], 1
    %33 = vsyncpa %s32, 0
    %34 = vsyncpa [#allocation14], 0
    %s35 = scalar_lea.sflag [#allocation14], 1
    %36 = vsyncpa %s35, 0
    loop: start=0, step=1, limit=4
    $region2: #{bert_sentiment_forward.1} parent=1 // loop_pre_header
      _
    $region3: #{bert_sentiment_forward.1} parent=1 // loop_header
      %s38 = sphi 0, %s42
      %p39 = scmp.ge.s32.totalorder %s38, 4
      %s46 = sphi 0, %s46
      %s48 = sphi 0, %s46
      %s49 = sphi 0, %s48
      %s63 = sphi 0, %s49
      %s67 = sphi 0, %s67
      %s69 = sphi 0, %s67
      %s70 = sphi 0, %s69
      %s84 = sphi 0, %s70
      %s88 = sphi 0, %s88
      %s90 = sphi 0, %s88
      %s91 = sphi 0, %s90
      %s105 = sphi 0, %s91
      %s109 = sphi 0, %s109
      %s111 = sphi 0, %s109
      %s112 = sphi 0, %s111
      %s126 = sphi 0, %s112
      %s132 = sphi 0, %s134
      %s135 = sphi 0, %s132
      %s136 = sphi 0, %s135
      %s152 = sphi 0, %s136
      %s158 = sphi 0, %s160
      %s161 = sphi 0, %s158
      %s162 = sphi 0, %s161
      %s178 = sphi 0, %s162
      %s184 = sphi 0, %s186
      %s187 = sphi 0, %s184
      %s188 = sphi 0, %s187
      %s204 = sphi 0, %s188
      %s210 = sphi 0, %s212
      %s213 = sphi 0, %s210
      %s214 = sphi 0, %s213
      %s230 = sphi 0, %s214
      %s236 = sphi 0, %s238
      %s239 = sphi 0, %s236
      %s240 = sphi 0, %s239
      %s256 = sphi 0, %s240
      %s262 = sphi 0, %s264
      %s265 = sphi 0, %s262
      %s266 = sphi 0, %s265
      %s282 = sphi 0, %s266
      %s288 = sphi 0, %s290
      %s291 = sphi 0, %s288
      %s292 = sphi 0, %s291
      %s308 = sphi 0, %s292
      %s314 = sphi 0, %s316
      %s317 = sphi 0, %s314
      %s318 = sphi 0, %s317
      %s334 = sphi 0, %s318
      %s340 = sphi 0, %s342
      %s343 = sphi 0, %s340
      %s344 = sphi 0, %s343
      %s360 = sphi 0, %s344
      %s366 = sphi 0, %s368
      %s369 = sphi 0, %s366
      %s370 = sphi 0, %s369
      %s386 = sphi 0, %s370
      %s392 = sphi 0, %s394
      %s395 = sphi 0, %s392
      %s396 = sphi 0, %s395
      %s412 = sphi 0, %s396
      %s418 = sphi 0, %s420
      %s421 = sphi 0, %s418
      %s422 = sphi 0, %s421
      %s438 = sphi 0, %s422
      %s442 = sphi 0, %s442
      %s444 = sphi 0, %s442
      %s445 = sphi 0, %s444
      %s459 = sphi 0, %s445
      %s463 = sphi 0, %s463
      %s465 = sphi 0, %s463
      %s466 = sphi 0, %s465
      %s480 = sphi 0, %s466
      %s484 = sphi 0, %s484
      %s486 = sphi 0, %s484
      %s487 = sphi 0, %s486
      %s501 = sphi 0, %s487
      %s505 = sphi 0, %s505
      %s507 = sphi 0, %s505
      %s508 = sphi 0, %s507
      %s522 = sphi 0, %s508
      %s526 = sphi 0, %s526
      %s528 = sphi 0, %s526
      %s529 = sphi 0, %s528
      %s543 = sphi 0, %s529
    $region4: #{bert_sentiment_forward.1} parent=1 // loop_header_branch
      %41 = sbr.rel (%p39) target = $region8
    $region5: #{bert_sentiment_forward.1} parent=1 // loop_body
      %s43 = ssub.s32 %s38, 1
      %s44 = ssub.s32 %s38, 2
      %s45 = sadd.s32 %s38, 1
      %s47 = sadd.s32 %s46, 1
      %p50 = scmp.eq.s32.totalorder %s38, 1
      %p51 = scmp.ne.s32.totalorder %s46, %s48
      %p52 = scmp.eq.s32.totalorder %s38, 0
      %p53 = por %p51, %p52
      %p54 = scmp.ne.s32.totalorder %s46, %s48
      %p55 = scmp.eq.s32.totalorder %s43, 1
      %p56 = por %p54, %p55
      %p57 = scmp.ne.s32.totalorder %s48, %s49
      %p58 = scmp.eq.s32.totalorder %s43, 0
      %p59 = por %p57, %p58
      %p60 = scmp.ne.s32.totalorder %s48, %s49
      %p61 = scmp.eq.s32.totalorder %s44, 1
      %p62 = por %p60, %p61
      %p64 = scmp.ne.s32.totalorder %s49, %s63
      %p65 = scmp.eq.s32.totalorder %s44, 0
      %p66 = por %p64, %p65
      %s68 = sadd.s32 %s67, 1
      %p71 = scmp.eq.s32.totalorder %s38, 1
      %p72 = scmp.ne.s32.totalorder %s67, %s69
      %p73 = scmp.eq.s32.totalorder %s38, 0
      %p74 = por %p72, %p73
      %p75 = scmp.ne.s32.totalorder %s67, %s69
      %p76 = scmp.eq.s32.totalorder %s43, 1
      %p77 = por %p75, %p76
      %p78 = scmp.ne.s32.totalorder %s69, %s70
      %p79 = scmp.eq.s32.totalorder %s43, 0
      %p80 = por %p78, %p79
      %p81 = scmp.ne.s32.totalorder %s69, %s70
      %p82 = scmp.eq.s32.totalorder %s44, 1
      %p83 = por %p81, %p82
      %p85 = scmp.ne.s32.totalorder %s70, %s84
      %p86 = scmp.eq.s32.totalorder %s44, 0
      %p87 = por %p85, %p86
      %s89 = sadd.s32 %s88, 1
      %p92 = scmp.eq.s32.totalorder %s38, 1
      %p93 = scmp.ne.s32.totalorder %s88, %s90
      %p94 = scmp.eq.s32.totalorder %s38, 0
      %p95 = por %p93, %p94
      %p96 = scmp.ne.s32.totalorder %s88, %s90
      %p97 = scmp.eq.s32.totalorder %s43, 1
      %p98 = por %p96, %p97
      %p99 = scmp.ne.s32.totalorder %s90, %s91
      %p100 = scmp.eq.s32.totalorder %s43, 0
      %p101 = por %p99, %p100
      %p102 = scmp.ne.s32.totalorder %s90, %s91
      %p103 = scmp.eq.s32.totalorder %s44, 1
      %p104 = por %p102, %p103
      %p106 = scmp.ne.s32.totalorder %s91, %s105
      %p107 = scmp.eq.s32.totalorder %s44, 0
      %p108 = por %p106, %p107
      %s110 = sadd.s32 %s109, 1
      %p113 = scmp.eq.s32.totalorder %s38, 1
      %p114 = scmp.ne.s32.totalorder %s109, %s111
      %p115 = scmp.eq.s32.totalorder %s38, 0
      %p116 = por %p114, %p115
      %p117 = scmp.ne.s32.totalorder %s109, %s111
      %p118 = scmp.eq.s32.totalorder %s43, 1
      %p119 = por %p117, %p118
      %p120 = scmp.ne.s32.totalorder %s111, %s112
      %p121 = scmp.eq.s32.totalorder %s43, 0
      %p122 = por %p120, %p121
      %p123 = scmp.ne.s32.totalorder %s111, %s112
      %p124 = scmp.eq.s32.totalorder %s44, 1
      %p125 = por %p123, %p124
      %p127 = scmp.ne.s32.totalorder %s112, %s126
      %p128 = scmp.eq.s32.totalorder %s44, 0
      %p129 = por %p127, %p128
      %s130 = ssub.s32 %s38, %s45
      %p131 = scmp.eq.s32.totalorder %s130, 0
      %s133 = sadd.s32 %s132, 1
      %s134 = scalar_select %p131, %s132, %s133
      %p137 = pneg %p131
      %p138 = scmp.eq.s32.totalorder %s38, 1
      %p139 = por %p137, %p138
      %p140 = scmp.ne.s32.totalorder %s132, %s135
      %p141 = scmp.eq.s32.totalorder %s38, 0
      %p142 = por %p140, %p141
      %p143 = scmp.ne.s32.totalorder %s132, %s135
      %p144 = scmp.eq.s32.totalorder %s43, 1
      %p145 = por %p143, %p144
      %p146 = scmp.ne.s32.totalorder %s135, %s136
      %p147 = scmp.eq.s32.totalorder %s43, 0
      %p148 = por %p146, %p147
      %p149 = scmp.ne.s32.totalorder %s135, %s136
      %p150 = scmp.eq.s32.totalorder %s44, 1
      %p151 = por %p149, %p150
      %p153 = scmp.ne.s32.totalorder %s136, %s152
      %p154 = scmp.eq.s32.totalorder %s44, 0
      %p155 = por %p153, %p154
      %s156 = ssub.s32 %s38, %s45
      %p157 = scmp.eq.s32.totalorder %s156, 0
      %s159 = sadd.s32 %s158, 1
      %s160 = scalar_select %p157, %s158, %s159
      %p163 = pneg %p157
      %p164 = scmp.eq.s32.totalorder %s38, 1
      %p165 = por %p163, %p164
      %p166 = scmp.ne.s32.totalorder %s158, %s161
      %p167 = scmp.eq.s32.totalorder %s38, 0
      %p168 = por %p166, %p167
      %p169 = scmp.ne.s32.totalorder %s158, %s161
      %p170 = scmp.eq.s32.totalorder %s43, 1
      %p171 = por %p169, %p170
      %p172 = scmp.ne.s32.totalorder %s161, %s162
      %p173 = scmp.eq.s32.totalorder %s43, 0
      %p174 = por %p172, %p173
      %p175 = scmp.ne.s32.totalorder %s161, %s162
      %p176 = scmp.eq.s32.totalorder %s44, 1
      %p177 = por %p175, %p176
      %p179 = scmp.ne.s32.totalorder %s162, %s178
      %p180 = scmp.eq.s32.totalorder %s44, 0
      %p181 = por %p179, %p180
      %s182 = ssub.s32 %s38, %s45
      %p183 = scmp.eq.s32.totalorder %s182, 0
      %s185 = sadd.s32 %s184, 1
      %s186 = scalar_select %p183, %s184, %s185
      %p189 = pneg %p183
      %p190 = scmp.eq.s32.totalorder %s38, 1
      %p191 = por %p189, %p190
      %p192 = scmp.ne.s32.totalorder %s184, %s187
      %p193 = scmp.eq.s32.totalorder %s38, 0
      %p194 = por %p192, %p193
      %p195 = scmp.ne.s32.totalorder %s184, %s187
      %p196 = scmp.eq.s32.totalorder %s43, 1
      %p197 = por %p195, %p196
      %p198 = scmp.ne.s32.totalorder %s187, %s188
      %p199 = scmp.eq.s32.totalorder %s43, 0
      %p200 = por %p198, %p199
      %p201 = scmp.ne.s32.totalorder %s187, %s188
      %p202 = scmp.eq.s32.totalorder %s44, 1
      %p203 = por %p201, %p202
      %p205 = scmp.ne.s32.totalorder %s188, %s204
      %p206 = scmp.eq.s32.totalorder %s44, 0
      %p207 = por %p205, %p206
      %s208 = ssub.s32 %s38, %s45
      %p209 = scmp.eq.s32.totalorder %s208, 0
      %s211 = sadd.s32 %s210, 1
      %s212 = scalar_select %p209, %s210, %s211
      %p215 = pneg %p209
      %p216 = scmp.eq.s32.totalorder %s38, 1
      %p217 = por %p215, %p216
      %p218 = scmp.ne.s32.totalorder %s210, %s213
      %p219 = scmp.eq.s32.totalorder %s38, 0
      %p220 = por %p218, %p219
      %p221 = scmp.ne.s32.totalorder %s210, %s213
      %p222 = scmp.eq.s32.totalorder %s43, 1
      %p223 = por %p221, %p222
      %p224 = scmp.ne.s32.totalorder %s213, %s214
      %p225 = scmp.eq.s32.totalorder %s43, 0
      %p226 = por %p224, %p225
      %p227 = scmp.ne.s32.totalorder %s213, %s214
      %p228 = scmp.eq.s32.totalorder %s44, 1
      %p229 = por %p227, %p228
      %p231 = scmp.ne.s32.totalorder %s214, %s230
      %p232 = scmp.eq.s32.totalorder %s44, 0
      %p233 = por %p231, %p232
      %s234 = ssub.s32 %s38, %s45
      %p235 = scmp.eq.s32.totalorder %s234, 0
      %s237 = sadd.s32 %s236, 1
      %s238 = scalar_select %p235, %s236, %s237
      %p241 = pneg %p235
      %p242 = scmp.eq.s32.totalorder %s38, 1
      %p243 = por %p241, %p242
      %p244 = scmp.ne.s32.totalorder %s236, %s239
      %p245 = scmp.eq.s32.totalorder %s38, 0
      %p246 = por %p244, %p245
      %p247 = scmp.ne.s32.totalorder %s236, %s239
      %p248 = scmp.eq.s32.totalorder %s43, 1
      %p249 = por %p247, %p248
      %p250 = scmp.ne.s32.totalorder %s239, %s240
      %p251 = scmp.eq.s32.totalorder %s43, 0
      %p252 = por %p250, %p251
      %p253 = scmp.ne.s32.totalorder %s239, %s240
      %p254 = scmp.eq.s32.totalorder %s44, 1
      %p255 = por %p253, %p254
      %p257 = scmp.ne.s32.totalorder %s240, %s256
      %p258 = scmp.eq.s32.totalorder %s44, 0
      %p259 = por %p257, %p258
      %s260 = ssub.s32 %s38, %s45
      %p261 = scmp.eq.s32.totalorder %s260, 0
      %s263 = sadd.s32 %s262, 1
      %s264 = scalar_select %p261, %s262, %s263
      %p267 = pneg %p261
      %p268 = scmp.eq.s32.totalorder %s38, 1
      %p269 = por %p267, %p268
      %p270 = scmp.ne.s32.totalorder %s262, %s265
      %p271 = scmp.eq.s32.totalorder %s38, 0
      %p272 = por %p270, %p271
      %p273 = scmp.ne.s32.totalorder %s262, %s265
      %p274 = scmp.eq.s32.totalorder %s43, 1
      %p275 = por %p273, %p274
      %p276 = scmp.ne.s32.totalorder %s265, %s266
      %p277 = scmp.eq.s32.totalorder %s43, 0
      %p278 = por %p276, %p277
      %p279 = scmp.ne.s32.totalorder %s265, %s266
      %p280 = scmp.eq.s32.totalorder %s44, 1
      %p281 = por %p279, %p280
      %p283 = scmp.ne.s32.totalorder %s266, %s282
      %p284 = scmp.eq.s32.totalorder %s44, 0
      %p285 = por %p283, %p284
      %s286 = ssub.s32 %s38, %s45
      %p287 = scmp.eq.s32.totalorder %s286, 0
      %s289 = sadd.s32 %s288, 1
      %s290 = scalar_select %p287, %s288, %s289
      %p293 = pneg %p287
      %p294 = scmp.eq.s32.totalorder %s38, 1
      %p295 = por %p293, %p294
      %p296 = scmp.ne.s32.totalorder %s288, %s291
      %p297 = scmp.eq.s32.totalorder %s38, 0
      %p298 = por %p296, %p297
      %p299 = scmp.ne.s32.totalorder %s288, %s291
      %p300 = scmp.eq.s32.totalorder %s43, 1
      %p301 = por %p299, %p300
      %p302 = scmp.ne.s32.totalorder %s291, %s292
      %p303 = scmp.eq.s32.totalorder %s43, 0
      %p304 = por %p302, %p303
      %p305 = scmp.ne.s32.totalorder %s291, %s292
      %p306 = scmp.eq.s32.totalorder %s44, 1
      %p307 = por %p305, %p306
      %p309 = scmp.ne.s32.totalorder %s292, %s308
      %p310 = scmp.eq.s32.totalorder %s44, 0
      %p311 = por %p309, %p310
      %s312 = ssub.s32 %s38, %s45
      %p313 = scmp.eq.s32.totalorder %s312, 0
      %s315 = sadd.s32 %s314, 1
      %s316 = scalar_select %p313, %s314, %s315
      %p319 = pneg %p313
      %p320 = scmp.eq.s32.totalorder %s38, 1
      %p321 = por %p319, %p320
      %p322 = scmp.ne.s32.totalorder %s314, %s317
      %p323 = scmp.eq.s32.totalorder %s38, 0
      %p324 = por %p322, %p323
      %p325 = scmp.ne.s32.totalorder %s314, %s317
      %p326 = scmp.eq.s32.totalorder %s43, 1
      %p327 = por %p325, %p326
      %p328 = scmp.ne.s32.totalorder %s317, %s318
      %p329 = scmp.eq.s32.totalorder %s43, 0
      %p330 = por %p328, %p329
      %p331 = scmp.ne.s32.totalorder %s317, %s318
      %p332 = scmp.eq.s32.totalorder %s44, 1
      %p333 = por %p331, %p332
      %p335 = scmp.ne.s32.totalorder %s318, %s334
      %p336 = scmp.eq.s32.totalorder %s44, 0
      %p337 = por %p335, %p336
      %s338 = ssub.s32 %s38, %s45
      %p339 = scmp.eq.s32.totalorder %s338, 0
      %s341 = sadd.s32 %s340, 1
      %s342 = scalar_select %p339, %s340, %s341
      %p345 = pneg %p339
      %p346 = scmp.eq.s32.totalorder %s38, 1
      %p347 = por %p345, %p346
      %p348 = scmp.ne.s32.totalorder %s340, %s343
      %p349 = scmp.eq.s32.totalorder %s38, 0
      %p350 = por %p348, %p349
      %p351 = scmp.ne.s32.totalorder %s340, %s343
      %p352 = scmp.eq.s32.totalorder %s43, 1
      %p353 = por %p351, %p352
      %p354 = scmp.ne.s32.totalorder %s343, %s344
      %p355 = scmp.eq.s32.totalorder %s43, 0
      %p356 = por %p354, %p355
      %p357 = scmp.ne.s32.totalorder %s343, %s344
      %p358 = scmp.eq.s32.totalorder %s44, 1
      %p359 = por %p357, %p358
      %p361 = scmp.ne.s32.totalorder %s344, %s360
      %p362 = scmp.eq.s32.totalorder %s44, 0
      %p363 = por %p361, %p362
      %s364 = ssub.s32 %s38, %s45
      %p365 = scmp.eq.s32.totalorder %s364, 0
      %s367 = sadd.s32 %s366, 1
      %s368 = scalar_select %p365, %s366, %s367
      %p371 = pneg %p365
      %p372 = scmp.eq.s32.totalorder %s38, 1
      %p373 = por %p371, %p372
      %p374 = scmp.ne.s32.totalorder %s366, %s369
      %p375 = scmp.eq.s32.totalorder %s38, 0
      %p376 = por %p374, %p375
      %p377 = scmp.ne.s32.totalorder %s366, %s369
      %p378 = scmp.eq.s32.totalorder %s43, 1
      %p379 = por %p377, %p378
      %p380 = scmp.ne.s32.totalorder %s369, %s370
      %p381 = scmp.eq.s32.totalorder %s43, 0
      %p382 = por %p380, %p381
      %p383 = scmp.ne.s32.totalorder %s369, %s370
      %p384 = scmp.eq.s32.totalorder %s44, 1
      %p385 = por %p383, %p384
      %p387 = scmp.ne.s32.totalorder %s370, %s386
      %p388 = scmp.eq.s32.totalorder %s44, 0
      %p389 = por %p387, %p388
      %s390 = ssub.s32 %s38, %s45
      %p391 = scmp.eq.s32.totalorder %s390, 0
      %s393 = sadd.s32 %s392, 1
      %s394 = scalar_select %p391, %s392, %s393
      %p397 = pneg %p391
      %p398 = scmp.eq.s32.totalorder %s38, 1
      %p399 = por %p397, %p398
      %p400 = scmp.ne.s32.totalorder %s392, %s395
      %p401 = scmp.eq.s32.totalorder %s38, 0
      %p402 = por %p400, %p401
      %p403 = scmp.ne.s32.totalorder %s392, %s395
      %p404 = scmp.eq.s32.totalorder %s43, 1
      %p405 = por %p403, %p404
      %p406 = scmp.ne.s32.totalorder %s395, %s396
      %p407 = scmp.eq.s32.totalorder %s43, 0
      %p408 = por %p406, %p407
      %p409 = scmp.ne.s32.totalorder %s395, %s396
      %p410 = scmp.eq.s32.totalorder %s44, 1
      %p411 = por %p409, %p410
      %p413 = scmp.ne.s32.totalorder %s396, %s412
      %p414 = scmp.eq.s32.totalorder %s44, 0
      %p415 = por %p413, %p414
      %s416 = ssub.s32 %s38, %s45
      %p417 = scmp.eq.s32.totalorder %s416, 0
      %s419 = sadd.s32 %s418, 1
      %s420 = scalar_select %p417, %s418, %s419
      %p423 = pneg %p417
      %p424 = scmp.eq.s32.totalorder %s38, 1
      %p425 = por %p423, %p424
      %p426 = scmp.ne.s32.totalorder %s418, %s421
      %p427 = scmp.eq.s32.totalorder %s38, 0
      %p428 = por %p426, %p427
      %p429 = scmp.ne.s32.totalorder %s418, %s421
      %p430 = scmp.eq.s32.totalorder %s43, 1
      %p431 = por %p429, %p430
      %p432 = scmp.ne.s32.totalorder %s421, %s422
      %p433 = scmp.eq.s32.totalorder %s43, 0
      %p434 = por %p432, %p433
      %p435 = scmp.ne.s32.totalorder %s421, %s422
      %p436 = scmp.eq.s32.totalorder %s44, 1
      %p437 = por %p435, %p436
      %p439 = scmp.ne.s32.totalorder %s422, %s438
      %p440 = scmp.eq.s32.totalorder %s44, 0
      %p441 = por %p439, %p440
      %s443 = sadd.s32 %s442, 1
      %p446 = scmp.eq.s32.totalorder %s38, 1
      %p447 = scmp.ne.s32.totalorder %s442, %s444
      %p448 = scmp.eq.s32.totalorder %s38, 0
      %p449 = por %p447, %p448
      %p450 = scmp.ne.s32.totalorder %s442, %s444
      %p451 = scmp.eq.s32.totalorder %s43, 1
      %p452 = por %p450, %p451
      %p453 = scmp.ne.s32.totalorder %s444, %s445
      %p454 = scmp.eq.s32.totalorder %s43, 0
      %p455 = por %p453, %p454
      %p456 = scmp.ne.s32.totalorder %s444, %s445
      %p457 = scmp.eq.s32.totalorder %s44, 1
      %p458 = por %p456, %p457
      %p460 = scmp.ne.s32.totalorder %s445, %s459
      %p461 = scmp.eq.s32.totalorder %s44, 0
      %p462 = por %p460, %p461
      %s464 = sadd.s32 %s463, 1
      %p467 = scmp.eq.s32.totalorder %s38, 1
      %p468 = scmp.ne.s32.totalorder %s463, %s465
      %p469 = scmp.eq.s32.totalorder %s38, 0
      %p470 = por %p468, %p469
      %p471 = scmp.ne.s32.totalorder %s463, %s465
      %p472 = scmp.eq.s32.totalorder %s43, 1
      %p473 = por %p471, %p472
      %p474 = scmp.ne.s32.totalorder %s465, %s466
      %p475 = scmp.eq.s32.totalorder %s43, 0
      %p476 = por %p474, %p475
      %p477 = scmp.ne.s32.totalorder %s465, %s466
      %p478 = scmp.eq.s32.totalorder %s44, 1
      %p479 = por %p477, %p478
      %p481 = scmp.ne.s32.totalorder %s466, %s480
      %p482 = scmp.eq.s32.totalorder %s44, 0
      %p483 = por %p481, %p482
      %s485 = sadd.s32 %s484, 1
      %p488 = scmp.eq.s32.totalorder %s38, 1
      %p489 = scmp.ne.s32.totalorder %s484, %s486
      %p490 = scmp.eq.s32.totalorder %s38, 0
      %p491 = por %p489, %p490
      %p492 = scmp.ne.s32.totalorder %s484, %s486
      %p493 = scmp.eq.s32.totalorder %s43, 1
      %p494 = por %p492, %p493
      %p495 = scmp.ne.s32.totalorder %s486, %s487
      %p496 = scmp.eq.s32.totalorder %s43, 0
      %p497 = por %p495, %p496
      %p498 = scmp.ne.s32.totalorder %s486, %s487
      %p499 = scmp.eq.s32.totalorder %s44, 1
      %p500 = por %p498, %p499
      %p502 = scmp.ne.s32.totalorder %s487, %s501
      %p503 = scmp.eq.s32.totalorder %s44, 0
      %p504 = por %p502, %p503
      %s506 = sadd.s32 %s505, 1
      %p509 = scmp.eq.s32.totalorder %s38, 1
      %p510 = scmp.ne.s32.totalorder %s505, %s507
      %p511 = scmp.eq.s32.totalorder %s38, 0
      %p512 = por %p510, %p511
      %p513 = scmp.ne.s32.totalorder %s505, %s507
      %p514 = scmp.eq.s32.totalorder %s43, 1
      %p515 = por %p513, %p514
      %p516 = scmp.ne.s32.totalorder %s507, %s508
      %p517 = scmp.eq.s32.totalorder %s43, 0
      %p518 = por %p516, %p517
      %p519 = scmp.ne.s32.totalorder %s507, %s508
      %p520 = scmp.eq.s32.totalorder %s44, 1
      %p521 = por %p519, %p520
      %p523 = scmp.ne.s32.totalorder %s508, %s522
      %p524 = scmp.eq.s32.totalorder %s44, 0
      %p525 = por %p523, %p524
      %s527 = sadd.s32 %s526, 1
      %p530 = scmp.eq.s32.totalorder %s38, 1
      %p531 = scmp.ne.s32.totalorder %s526, %s528
      %p532 = scmp.eq.s32.totalorder %s38, 0
      %p533 = por %p531, %p532
      %p534 = scmp.ne.s32.totalorder %s526, %s528
      %p535 = scmp.eq.s32.totalorder %s43, 1
      %p536 = por %p534, %p535
      %p537 = scmp.ne.s32.totalorder %s528, %s529
      %p538 = scmp.eq.s32.totalorder %s43, 0
      %p539 = por %p537, %p538
      %p540 = scmp.ne.s32.totalorder %s528, %s529
      %p541 = scmp.eq.s32.totalorder %s44, 1
      %p542 = por %p540, %p541
      %p544 = scmp.ne.s32.totalorder %s529, %s543
      %p545 = scmp.eq.s32.totalorder %s44, 0
      %p546 = por %p544, %p545
      %p547 = scmp.le.s32.totalorder 1, %s38
      %p548 = scmp.lt.s32.totalorder %s38, 3
      %p549 = pnand %p547, %p548
      %p550 = pneg %p549
      // Predicated region
      $region9: #{bert_sentiment_forward.1} parent=5 // pred_check
        _
      $region10: #{bert_sentiment_forward.1} parent=5 // pred_check_branch
        %552 = sbr.rel (%p549) target = $region12
      $region11: #{bert_sentiment_forward.1} parent=5 // pred_region
        %s553 = ssub.s32 %s38, 1
        // Predicated region
        $region13: #{bert_sentiment_forward.1} parent=11 // pred_check
          %p554 = pneg %p59
        $region14: #{bert_sentiment_forward.1} parent=11 // pred_check_branch
          %556 = sbr.rel (%p554) target = $region16
        $region15: #{bert_sentiment_forward.1} parent=11 // pred_region
          _
        $region16: #{bert_sentiment_forward.1} parent=11 // pred_fallthru
          _
        // Predicated region
        $region17: #{bert_sentiment_forward.1} parent=11 // pred_check
          %p557 = pneg %p80
        $region18: #{bert_sentiment_forward.1} parent=11 // pred_check_branch
          %559 = sbr.rel (%p557) target = $region20
        $region19: #{bert_sentiment_forward.1} parent=11 // pred_region
          _
        $region20: #{bert_sentiment_forward.1} parent=11 // pred_fallthru
          _
        // Predicated region
        $region21: #{bert_sentiment_forward.1} parent=11 // pred_check
          %p560 = pneg %p101
        $region22: #{bert_sentiment_forward.1} parent=11 // pred_check_branch
          %562 = sbr.rel (%p560) target = $region24
        $region23: #{bert_sentiment_forward.1} parent=11 // pred_region
          _
        $region24: #{bert_sentiment_forward.1} parent=11 // pred_fallthru
          _
        // Predicated region
        $region25: #{bert_sentiment_forward.1} parent=11 // pred_check
          %p563 = pneg %p122
        $region26: #{bert_sentiment_forward.1} parent=11 // pred_check_branch
          %565 = sbr.rel (%p563) target = $region28
        $region27: #{bert_sentiment_forward.1} parent=11 // pred_region
          %s567 = ssub.s32 16, 16
          %568 = vsyncadd [#allocation6], %s567
          %s570 = sshll.u32 [#allocation5], 4
          %s571 = int_to_ptr.vmem [resolvable:$true] %s570
          %573 = dma.hbm_to_vmem [thread:$0]  %s3, 16, %s571, [#allocation6]
        $region28: #{bert_sentiment_forward.1} parent=11 // pred_fallthru
          _
        // Predicated region
        $region29: #{bert_sentiment_forward.1} parent=11 // pred_check
          %p574 = pneg %p455
        $region30: #{bert_sentiment_forward.1} parent=11 // pred_check_branch
          %576 = sbr.rel (%p574) target = $region32
        $region31: #{bert_sentiment_forward.1} parent=11 // pred_region
          _
        $region32: #{bert_sentiment_forward.1} parent=11 // pred_fallthru
          _
        // Predicated region
        $region33: #{bert_sentiment_forward.1} parent=11 // pred_check
          %p577 = pneg %p476
        $region34: #{bert_sentiment_forward.1} parent=11 // pred_check_branch
          %579 = sbr.rel (%p577) target = $region36
        $region35: #{bert_sentiment_forward.1} parent=11 // pred_region
          _
        $region36: #{bert_sentiment_forward.1} parent=11 // pred_fallthru
          _
        // Predicated region
        $region37: #{bert_sentiment_forward.1} parent=11 // pred_check
          %p580 = pneg %p497
        $region38: #{bert_sentiment_forward.1} parent=11 // pred_check_branch
          %582 = sbr.rel (%p580) target = $region40
        $region39: #{bert_sentiment_forward.1} parent=11 // pred_region
          _
        $region40: #{bert_sentiment_forward.1} parent=11 // pred_fallthru
          _
        // Predicated region
        $region41: #{bert_sentiment_forward.1} parent=11 // pred_check
          %p583 = pneg %p518
        $region42: #{bert_sentiment_forward.1} parent=11 // pred_check_branch
          %585 = sbr.rel (%p583) target = $region44
        $region43: #{bert_sentiment_forward.1} parent=11 // pred_region
          _
        $region44: #{bert_sentiment_forward.1} parent=11 // pred_fallthru
          _
      $region12: #{bert_sentiment_forward.1} parent=5 // pred_fallthru
        _
      %p586 = scmp.lt.s32.totalorder %s38, 2
      // Predicated region
      $region45: #{bert_sentiment_forward.1} parent=5 // pred_check
        %p587 = pneg %p586
      $region46: #{bert_sentiment_forward.1} parent=5 // pred_check_branch
        %589 = sbr.rel (%p587) target = $region48
      $region47: #{bert_sentiment_forward.1} parent=5 // pred_region
        // Predicated region
        $region49: #{bert_sentiment_forward.1} parent=47 // pred_check
          %p590 = pneg %p142
        $region50: #{bert_sentiment_forward.1} parent=47 // pred_check_branch
          %592 = sbr.rel (%p590) target = $region52
        $region51: #{bert_sentiment_forward.1} parent=47 // pred_region
          %p593 = scmp.lt.s32.totalorder %s38, 1
          %s594 = scalar_select %p593, %s38, 1
          %s595 = smul.addr %s594, 48
          %s596 = smul.addr %s595, 4
          %s597 = scalar_lea.vmem %s4, %s596
        $region52: #{bert_sentiment_forward.1} parent=47 // pred_fallthru
          _
        // Predicated region
        $region53: #{bert_sentiment_forward.1} parent=47 // pred_check
          %p598 = pneg %p168
        $region54: #{bert_sentiment_forward.1} parent=47 // pred_check_branch
          %600 = sbr.rel (%p598) target = $region56
        $region55: #{bert_sentiment_forward.1} parent=47 // pred_region
          %p601 = scmp.lt.s32.totalorder %s38, 1
          %s602 = scalar_select %p601, %s38, 1
          %s603 = smul.addr %s602, 3
          %s604 = scalar_lea.vmem %s5, %s603
        $region56: #{bert_sentiment_forward.1} parent=47 // pred_fallthru
          _
        // Predicated region
        $region57: #{bert_sentiment_forward.1} parent=47 // pred_check
          %p605 = pneg %p194
        $region58: #{bert_sentiment_forward.1} parent=47 // pred_check_branch
          %607 = sbr.rel (%p605) target = $region60
        $region59: #{bert_sentiment_forward.1} parent=47 // pred_region
          %p608 = scmp.lt.s32.totalorder %s38, 1
          %s609 = scalar_select %p608, %s38, 1
          %s610 = smul.addr %s609, 16
          %s611 = smul.addr %s610, 4
          %s612 = scalar_lea.vmem %s6, %s611
        $region60: #{bert_sentiment_forward.1} parent=47 // pred_fallthru
          _
        // Predicated region
        $region61: #{bert_sentiment_forward.1} parent=47 // pred_check
          %p613 = pneg %p220
        $region62: #{bert_sentiment_forward.1} parent=47 // pred_check_branch
          %615 = sbr.rel (%p613) target = $region64
        $region63: #{bert_sentiment_forward.1} parent=47 // pred_region
          %s616 = sand.u32 %s38, 1
          %s617 = scalar_lea.sflag [#allocation8], %s616
          %s618 = sand.u32 %s210, 1
          %s619 = scalar_lea.vmem [#allocation7], %s618
          %s621 = ssub.s32 16, 16
          %622 = vsyncadd %s617, %s621
          %s623 = smul.addr %s38, 16
          %s624 = scalar_lea.hbm %s7, %s623
          %s626 = sshll.u32 %s619, 4
          %s627 = int_to_ptr.vmem [resolvable:$true] %s626
          %629 = dma.hbm_to_vmem [thread:$0]  %s624, 16, %s627, %s617
        $region64: #{bert_sentiment_forward.1} parent=47 // pred_fallthru
          _
        // Predicated region
        $region65: #{bert_sentiment_forward.1} parent=47 // pred_check
          %p630 = pneg %p246
        $region66: #{bert_sentiment_forward.1} parent=47 // pred_check_branch
          %632 = sbr.rel (%p630) target = $region68
        $region67: #{bert_sentiment_forward.1} parent=47 // pred_region
          %p633 = scmp.lt.s32.totalorder %s38, 1
          %s634 = scalar_select %p633, %s38, 1
          %s635 = scalar_lea.vmem %s8, %s634
        $region68: #{bert_sentiment_forward.1} parent=47 // pred_fallthru
          _
        // Predicated region
        $region69: #{bert_sentiment_forward.1} parent=47 // pred_check
          %p636 = pneg %p272
        $region70: #{bert_sentiment_forward.1} parent=47 // pred_check_branch
          %638 = sbr.rel (%p636) target = $region72
        $region71: #{bert_sentiment_forward.1} parent=47 // pred_region
          %p639 = scmp.lt.s32.totalorder %s38, 1
          %s640 = scalar_select %p639, %s38, 1
          %s641 = scalar_lea.vmem %s9, %s640
        $region72: #{bert_sentiment_forward.1} parent=47 // pred_fallthru
          _
        // Predicated region
        $region73: #{bert_sentiment_forward.1} parent=47 // pred_check
          %p642 = pneg %p298
        $region74: #{bert_sentiment_forward.1} parent=47 // pred_check_branch
          %644 = sbr.rel (%p642) target = $region76
        $region75: #{bert_sentiment_forward.1} parent=47 // pred_region
          %s645 = sand.u32 %s38, 1
          %s646 = scalar_lea.sflag [#allocation8], %s645
          %s647 = sand.u32 %s288, 1
          %s648 = smul.addr %s647, 256
          %s649 = scalar_lea.vmem [#allocation9], %s648
          %s651 = ssub.s32 4096, 4096
          %652 = vsyncadd %s646, %s651
          %s653 = smul.addr %s38, 64
          %s654 = smul.addr %s653, 64
          %s655 = scalar_lea.hbm %s10, %s654
          %s656 = sshll.u32 %s649, 4
          %s657 = int_to_ptr.vmem [resolvable:$true] %s656
          %662 = dma.hbm_to_vmem [thread:$0]  %s655, 4096, %s657, %s646, 256, 256, 16
        $region76: #{bert_sentiment_forward.1} parent=47 // pred_fallthru
          _
        // Predicated region
        $region77: #{bert_sentiment_forward.1} parent=47 // pred_check
          %p663 = pneg %p324
        $region78: #{bert_sentiment_forward.1} parent=47 // pred_check_branch
          %665 = sbr.rel (%p663) target = $region80
        $region79: #{bert_sentiment_forward.1} parent=47 // pred_region
          %s666 = sand.u32 %s38, 1
          %s667 = scalar_lea.sflag [#allocation11], %s666
          %s668 = sand.u32 %s314, 1
          %s669 = smul.addr %s668, 4
          %s670 = scalar_lea.vmem [#allocation10], %s669
          %s672 = ssub.s32 64, 64
          %673 = vsyncadd %s667, %s672
          %s674 = smul.addr %s38, 4
          %s675 = smul.addr %s674, 16
          %s676 = scalar_lea.hbm %s11, %s675
          %s678 = sshll.u32 %s670, 4
          %s679 = int_to_ptr.vmem [resolvable:$true] %s678
          %681 = dma.hbm_to_vmem [thread:$0]  %s676, 64, %s679, %s667
        $region80: #{bert_sentiment_forward.1} parent=47 // pred_fallthru
          _
        // Predicated region
        $region81: #{bert_sentiment_forward.1} parent=47 // pred_check
          %p682 = pneg %p350
        $region82: #{bert_sentiment_forward.1} parent=47 // pred_check_branch
          %684 = sbr.rel (%p682) target = $region84
        $region83: #{bert_sentiment_forward.1} parent=47 // pred_region
          %s685 = sand.u32 %s38, 1
          %s686 = scalar_lea.sflag [#allocation11], %s685
          %s687 = sand.u32 %s340, 1
          %s688 = smul.addr %s687, 256
          %s689 = scalar_lea.vmem [#allocation12], %s688
          %s691 = ssub.s32 4096, 4096
          %692 = vsyncadd %s686, %s691
          %s693 = smul.addr %s38, 64
          %s694 = smul.addr %s693, 64
          %s695 = scalar_lea.hbm %s12, %s694
          %s696 = sshll.u32 %s689, 4
          %s697 = int_to_ptr.vmem [resolvable:$true] %s696
          %702 = dma.hbm_to_vmem [thread:$0]  %s695, 4096, %s697, %s686, 64, 64, 4
        $region84: #{bert_sentiment_forward.1} parent=47 // pred_fallthru
          _
        // Predicated region
        $region85: #{bert_sentiment_forward.1} parent=47 // pred_check
          %p703 = pneg %p376
        $region86: #{bert_sentiment_forward.1} parent=47 // pred_check_branch
          %705 = sbr.rel (%p703) target = $region88
        $region87: #{bert_sentiment_forward.1} parent=47 // pred_region
          %s706 = sand.u32 %s366, 1
          %s707 = scalar_lea.sflag [#allocation14], %s706
          %s708 = sand.u32 %s366, 1
          %s709 = scalar_lea.vmem [#allocation13], %s708
          %s711 = ssub.s32 16, 16
          %712 = vsyncadd %s707, %s711
          %s713 = smul.addr %s38, 16
          %s714 = scalar_lea.hbm %s13, %s713
          %s716 = sshll.u32 %s709, 4
          %s717 = int_to_ptr.vmem [resolvable:$true] %s716
          %719 = dma.hbm_to_vmem [thread:$0]  %s714, 16, %s717, %s707
        $region88: #{bert_sentiment_forward.1} parent=47 // pred_fallthru
          _
        // Predicated region
        $region89: #{bert_sentiment_forward.1} parent=47 // pred_check
          %p720 = pneg %p402
        $region90: #{bert_sentiment_forward.1} parent=47 // pred_check_branch
          %722 = sbr.rel (%p720) target = $region92
        $region91: #{bert_sentiment_forward.1} parent=47 // pred_region
          %p723 = scmp.lt.s32.totalorder %s38, 1
          %s724 = scalar_select %p723, %s38, 1
          %s725 = scalar_lea.vmem %s14, %s724
        $region92: #{bert_sentiment_forward.1} parent=47 // pred_fallthru
          _
        // Predicated region
        $region93: #{bert_sentiment_forward.1} parent=47 // pred_check
          %p726 = pneg %p428
        $region94: #{bert_sentiment_forward.1} parent=47 // pred_check_branch
          %728 = sbr.rel (%p726) target = $region96
        $region95: #{bert_sentiment_forward.1} parent=47 // pred_region
          %p729 = scmp.lt.s32.totalorder %s38, 1
          %s730 = scalar_select %p729, %s38, 1
          %s731 = scalar_lea.vmem %s15, %s730
        $region96: #{bert_sentiment_forward.1} parent=47 // pred_fallthru
          _
      $region48: #{bert_sentiment_forward.1} parent=5 // pred_fallthru
        _
      %p732 = scmp.le.s32.totalorder 1, %s38
      %p733 = scmp.lt.s32.totalorder %s38, 3
      %p734 = pnand %p732, %p733
      %p735 = pneg %p734
      // Predicated region
      $region97: #{bert_sentiment_forward.1} parent=5 // pred_check
        _
      $region98: #{bert_sentiment_forward.1} parent=5 // pred_check_branch
        %737 = sbr.rel (%p734) target = $region100
      $region99: #{bert_sentiment_forward.1} parent=5 // pred_region
        %s738 = ssub.s32 %s38, 1
        // Predicated region
        $region101: #{bert_sentiment_forward.1} parent=99 // pred_check
          %p739 = pneg %p122
        $region102: #{bert_sentiment_forward.1} parent=99 // pred_check_branch
          %741 = sbr.rel (%p739) target = $region104
        $region103: #{bert_sentiment_forward.1} parent=99 // pred_region
          %742 = dma.done [#allocation6], 16
        $region104: #{bert_sentiment_forward.1} parent=99 // pred_fallthru
          _
        %s743 = sand.u32 %s43, 1
        %s744 = scalar_lea.sflag [#allocation8], %s743
        %s745 = sand.u32 %s213, 1
        %s746 = scalar_lea.vmem [#allocation7], %s745
        // Predicated region
        $region105: #{bert_sentiment_forward.1} parent=99 // pred_check
          %p747 = pneg %p226
        $region106: #{bert_sentiment_forward.1} parent=99 // pred_check_branch
          %749 = sbr.rel (%p747) target = $region108
        $region107: #{bert_sentiment_forward.1} parent=99 // pred_region
          %750 = dma.done %s744, 16
        $region108: #{bert_sentiment_forward.1} parent=99 // pred_fallthru
          _
        %s751 = sand.u32 %s43, 1
        %s752 = scalar_lea.sflag [#allocation8], %s751
        %s753 = sand.u32 %s291, 1
        %s754 = smul.addr %s753, 256
        %s755 = scalar_lea.vmem [#allocation9], %s754
        // Predicated region
        $region109: #{bert_sentiment_forward.1} parent=99 // pred_check
          %p756 = pneg %p304
        $region110: #{bert_sentiment_forward.1} parent=99 // pred_check_branch
          %758 = sbr.rel (%p756) target = $region112
        $region111: #{bert_sentiment_forward.1} parent=99 // pred_region
          %759 = dma.done %s752, 4096
        $region112: #{bert_sentiment_forward.1} parent=99 // pred_fallthru
          _
        %s760 = sand.u32 %s43, 1
        %s761 = scalar_lea.sflag [#allocation11], %s760
        %s762 = sand.u32 %s317, 1
        %s763 = smul.addr %s762, 4
        %s764 = scalar_lea.vmem [#allocation10], %s763
        // Predicated region
        $region113: #{bert_sentiment_forward.1} parent=99 // pred_check
          %p765 = pneg %p330
        $region114: #{bert_sentiment_forward.1} parent=99 // pred_check_branch
          %767 = sbr.rel (%p765) target = $region116
        $region115: #{bert_sentiment_forward.1} parent=99 // pred_region
          %768 = dma.done %s761, 64
        $region116: #{bert_sentiment_forward.1} parent=99 // pred_fallthru
          _
        %s769 = sand.u32 %s43, 1
        %s770 = scalar_lea.sflag [#allocation11], %s769
        %s771 = sand.u32 %s343, 1
        %s772 = smul.addr %s771, 256
        %s773 = scalar_lea.vmem [#allocation12], %s772
        // Predicated region
        $region117: #{bert_sentiment_forward.1} parent=99 // pred_check
          %p774 = pneg %p356
        $region118: #{bert_sentiment_forward.1} parent=99 // pred_check_branch
          %776 = sbr.rel (%p774) target = $region120
        $region119: #{bert_sentiment_forward.1} parent=99 // pred_region
          %777 = dma.done %s770, 4096
        $region120: #{bert_sentiment_forward.1} parent=99 // pred_fallthru
          _
        %s778 = sand.u32 %s369, 1
        %s779 = scalar_lea.sflag [#allocation14], %s778
        %s780 = sand.u32 %s369, 1
        %s781 = scalar_lea.vmem [#allocation13], %s780
        // Predicated region
        $region121: #{bert_sentiment_forward.1} parent=99 // pred_check
          %p782 = pneg %p382
        $region122: #{bert_sentiment_forward.1} parent=99 // pred_check_branch
          %784 = sbr.rel (%p782) target = $region124
        $region123: #{bert_sentiment_forward.1} parent=99 // pred_region
          %785 = dma.done %s779, 16
        $region124: #{bert_sentiment_forward.1} parent=99 // pred_fallthru
          _
        %p786 = pneg %p59
        %p787 = pneg %p56
        %p788 = pneg %p80
        %p789 = pneg %p77
        %p790 = pneg %p101
        %p791 = pneg %p98
        %p792 = pneg %p122
        %p793 = pneg %p119
        %p794 = scmp.lt.s32.totalorder %s43, 1
        %s795 = scalar_select %p794, %s43, 1
        %s796 = smul.addr %s795, 48
        %s797 = smul.addr %s796, 4
        %s798 = scalar_lea.vmem %s4, %s797
        %p799 = pneg %p148
        %p800 = pneg %p145
        %p801 = scmp.lt.s32.totalorder %s43, 1
        %s802 = scalar_select %p801, %s43, 1
        %s803 = smul.addr %s802, 3
        %s804 = scalar_lea.vmem %s5, %s803
        %p805 = pneg %p174
        %p806 = pneg %p171
        %p807 = scmp.lt.s32.totalorder %s43, 1
        %s808 = scalar_select %p807, %s43, 1
        %s809 = smul.addr %s808, 16
        %s810 = smul.addr %s809, 4
        %s811 = scalar_lea.vmem %s6, %s810
        %p812 = pneg %p200
        %p813 = pneg %p197
        %s814 = sand.u32 %s43, 1
        %s815 = scalar_lea.sflag [#allocation8], %s814
        %s816 = sand.u32 %s213, 1
        %s817 = scalar_lea.vmem [#allocation7], %s816
        %p818 = pneg %p226
        %p819 = pneg %p223
        %p820 = scmp.lt.s32.totalorder %s43, 1
        %s821 = scalar_select %p820, %s43, 1
        %s822 = scalar_lea.vmem %s8, %s821
        %p823 = pneg %p252
        %p824 = pneg %p249
        %p825 = scmp.lt.s32.totalorder %s43, 1
        %s826 = scalar_select %p825, %s43, 1
        %s827 = scalar_lea.vmem %s9, %s826
        %p828 = pneg %p278
        %p829 = pneg %p275
        %s830 = sand.u32 %s43, 1
        %s831 = scalar_lea.sflag [#allocation8], %s830
        %s832 = sand.u32 %s291, 1
        %s833 = smul.addr %s832, 256
        %s834 = scalar_lea.vmem [#allocation9], %s833
        %p835 = pneg %p304
        %p836 = pneg %p301
        %s837 = sand.u32 %s43, 1
        %s838 = scalar_lea.sflag [#allocation11], %s837
        %s839 = sand.u32 %s317, 1
        %s840 = smul.addr %s839, 4
        %s841 = scalar_lea.vmem [#allocation10], %s840
        %p842 = pneg %p330
        %p843 = pneg %p327
        %s844 = sand.u32 %s43, 1
        %s845 = scalar_lea.sflag [#allocation11], %s844
        %s846 = sand.u32 %s343, 1
        %s847 = smul.addr %s846, 256
        %s848 = scalar_lea.vmem [#allocation12], %s847
        %p849 = pneg %p356
        %p850 = pneg %p353
        %s851 = sand.u32 %s369, 1
        %s852 = scalar_lea.sflag [#allocation14], %s851
        %s853 = sand.u32 %s369, 1
        %s854 = scalar_lea.vmem [#allocation13], %s853
        %p855 = pneg %p382
        %p856 = pneg %p379
        %p857 = scmp.lt.s32.totalorder %s43, 1
        %s858 = scalar_select %p857, %s43, 1
        %s859 = scalar_lea.vmem %s14, %s858
        %p860 = pneg %p408
        %p861 = pneg %p405
        %p862 = scmp.lt.s32.totalorder %s43, 1
        %s863 = scalar_select %p862, %s43, 1
        %s864 = scalar_lea.vmem %s15, %s863
        %p865 = pneg %p434
        %p866 = pneg %p431
        %p867 = pneg %p455
        %p868 = pneg %p452
        %p869 = pneg %p476
        %p870 = pneg %p473
        %p871 = pneg %p497
        %p872 = pneg %p494
        %p873 = pneg %p518
        %p874 = pneg %p515
        %p875 = pneg %p539
        %p876 = pneg %p536
        %p877 = scmp.lt.s32.totalorder %s43, 1
        %s878 = scalar_select %p877, %s43, 1
        %s879 = smul.addr %s878, 48
        %s880 = smul.addr %s879, 4
        %s881 = scalar_lea.vmem %s4, %s880
        %p882 = scmp.lt.s32.totalorder %s43, 1
        %s883 = scalar_select %p882, %s43, 1
        %s884 = smul.addr %s883, 3
        %s885 = scalar_lea.vmem %s5, %s884
        %p886 = scmp.lt.s32.totalorder %s43, 1
        %s887 = scalar_select %p886, %s43, 1
        %s888 = smul.addr %s887, 16
        %s889 = smul.addr %s888, 4
        %s890 = scalar_lea.vmem %s6, %s889
        %p891 = scmp.lt.s32.totalorder %s43, 1
        %s892 = scalar_select %p891, %s43, 1
        %s893 = scalar_lea.vmem %s8, %s892
        %p894 = scmp.lt.s32.totalorder %s43, 1
        %s895 = scalar_select %p894, %s43, 1
        %s896 = scalar_lea.vmem %s9, %s895
        %p897 = scmp.lt.s32.totalorder %s43, 1
        %s898 = scalar_select %p897, %s43, 1
        %s899 = scalar_lea.vmem %s14, %s898
        %p900 = scmp.lt.s32.totalorder %s43, 1
        %s901 = scalar_select %p900, %s43, 1
        %s902 = scalar_lea.vmem %s15, %s901
        %p904 = scmp.eq.s32.totalorder %s43, 0
        // Predicated region
        $region125: #{bert_sentiment_forward.1} parent=99 // pred_check
          %p905 = pneg %p904
        $region126: #{bert_sentiment_forward.1} parent=99 // pred_check_branch
          %907 = sbr.rel (%p905) target = $region128
        $region127: #{bert_sentiment_forward.1} parent=99 // pred_region
          %v908 = vld [vmem:[%s0] sm:$0xff]
          %v909 = vld [vmem:[%s0 + $0x8] sm:$0xff]
          %v910 = vld [vmem:[%s2] sm:$0x1]
          %v911 = vld [vmem:[#allocation5] sm:$0x1]
          %912 = vadd.xlane.f32.xlu0 %v908
          %v913 = vpop.xlane.xlu0 %912
          %914 = vadd.xlane.f32.xlu0 %v909
          %v915 = vpop.xlane.xlu0 %914
          %v916 = vrcp.pop 128.0
          %v917 = vmul.f32 %v913, %v916
          %v918 = vmul.f32 %v915, %v916
          %v919 = vsub.f32 %v908, %v917
          %v920 = vsub.f32 %v909, %v918
          %v921 = vmul.f32 %v919, %v919
          %v922 = vmul.f32 %v920, %v920
          %923 = vadd.xlane.f32.xlu0 %v921
          %v924 = vpop.xlane.xlu0 %923
          %925 = vadd.xlane.f32.xlu0 %v922
          %v926 = vpop.xlane.xlu0 %925
          %v927 = vmul.f32 %v924, %v916
          %v928 = vmul.f32 %v926, %v916
          %v929 = vadd.f32 %v927, 1e-12
          %v930 = vadd.f32 %v928, 1e-12
          %v931 = vrsqrt.pop %v929
          %v932 = vrsqrt.pop %v930
          %v933 = vmul.f32 %v919, %v931
          %v934 = vmul.f32 %v920, %v932
          %v936 = vlaneseq
          %v937 = vshrl.u32 %v936, 7
          %v938 = vsub.s32 0, %v937
          %v939 = vrot.slane %v910, %v938
          %v941 = vmul.f32 %v933, %v939
          %v942 = vmul.f32 %v934, %v939
          %v944 = vlaneseq
          %v945 = vshrl.u32 %v944, 7
          %v946 = vsub.s32 0, %v945
          %v947 = vrot.slane %v911, %v946
          %v949 = vadd.f32 %v941, %v947
          %v950 = vadd.f32 %v942, %v947
          %951 = vst [vmem:[#allocation2] sm:$0xff] %v949
          %952 = vst [vmem:[#allocation2 + $0x8] sm:$0xff] %v950
        $region128: #{bert_sentiment_forward.1} parent=99 // pred_fallthru
          _
        %v953 = vld [vmem:[#allocation2] sm:$0xff]
        %v954 = vld [vmem:[#allocation2 + $0x8] sm:$0xff]
        %v955 = vpack.c.bf16 %v954, %v953
        %v956 = vld [vmem:[%s881] sm:$0xff]
        %v957 = vld [vmem:[%s881 + $0x8] sm:$0xf]
        %v958 = vld [vmem:[%s881 + $0xc] sm:$0xff]
        %v959 = vld [vmem:[%s881 + $0x14] sm:$0xf]
        %v960 = vld [vmem:[%s881 + $0x18] sm:$0xff]
        %v961 = vld [vmem:[%s881 + $0x20] sm:$0xf]
        %v962 = vld [vmem:[%s881 + $0x24] sm:$0xff]
        %v963 = vld [vmem:[%s881 + $0x2c] sm:$0xf]
        %v964 = vld [vmem:[%s881 + $0x30] sm:$0xff]
        %v965 = vld [vmem:[%s881 + $0x38] sm:$0xf]
        %v966 = vld [vmem:[%s881 + $0x3c] sm:$0xff]
        %v967 = vld [vmem:[%s881 + $0x44] sm:$0xf]
        %v968 = vld [vmem:[%s881 + $0x48] sm:$0xff]
        %v969 = vld [vmem:[%s881 + $0x50] sm:$0xf]
        %v970 = vld [vmem:[%s881 + $0x54] sm:$0xff]
        %v971 = vld [vmem:[%s881 + $0x5c] sm:$0xf]
        %v972 = vld [vmem:[%s881 + $0x60] sm:$0xff]
        %v973 = vld [vmem:[%s881 + $0x68] sm:$0xf]
        %v974 = vld [vmem:[%s881 + $0x6c] sm:$0xff]
        %v975 = vld [vmem:[%s881 + $0x74] sm:$0xf]
        %v976 = vld [vmem:[%s881 + $0x78] sm:$0xff]
        %v977 = vld [vmem:[%s881 + $0x80] sm:$0xf]
        %v978 = vld [vmem:[%s881 + $0x84] sm:$0xff]
        %v979 = vld [vmem:[%s881 + $0x8c] sm:$0xf]
        %v980 = vld [vmem:[%s881 + $0x90] sm:$0xff]
        %v981 = vld [vmem:[%s881 + $0x98] sm:$0xf]
        %v982 = vld [vmem:[%s881 + $0x9c] sm:$0xff]
        %v983 = vld [vmem:[%s881 + $0xa4] sm:$0xf]
        %v984 = vld [vmem:[%s881 + $0xa8] sm:$0xff]
        %v985 = vld [vmem:[%s881 + $0xb0] sm:$0xf]
        %v986 = vld [vmem:[%s881 + $0xb4] sm:$0xff]
        %v987 = vld [vmem:[%s881 + $0xbc] sm:$0xf]
        %v988 = vld [vmem:[%s885] sm:$0x7]
        %v990 = vlaneseq
        %v991 = vshrl.u32 %v990, 7
        %v992 = vsub.s32 0, %v991
        %v993 = vrot.slane %v988, %v992
        %v994 = vlaneseq
        %v995 = vshrl.u32 %v994, 7
        %v996 = vsub.s32 1, %v995
        %v997 = vrot.slane %v988, %v996
        %v998 = vlaneseq
        %v999 = vshrl.u32 %v998, 7
        %v1000 = vsub.s32 2, %v999
        %v1001 = vrot.slane %v988, %v1000
        %v1037 = vunpack.c.l.b16 %v956
        %v1038 = vunpack.c.h.b16 %v956
        %v1039 = vunpack.c.l.b16 %v957
        %v1040 = vunpack.c.l.b16 %v958
        %v1041 = vunpack.c.h.b16 %v958
        %v1042 = vunpack.c.l.b16 %v959
        %v1043 = vunpack.c.l.b16 %v960
        %v1044 = vunpack.c.h.b16 %v960
        %v1045 = vunpack.c.l.b16 %v961
        %v1046 = vunpack.c.l.b16 %v962
        %v1047 = vunpack.c.h.b16 %v962
        %v1048 = vunpack.c.l.b16 %v963
        %v1049 = vunpack.c.l.b16 %v964
        %v1050 = vunpack.c.h.b16 %v964
        %v1051 = vunpack.c.l.b16 %v965
        %v1052 = vunpack.c.l.b16 %v966
        %v1053 = vunpack.c.h.b16 %v966
        %v1054 = vunpack.c.l.b16 %v967
        %v1055 = vunpack.c.l.b16 %v968
        %v1056 = vunpack.c.h.b16 %v968
        %v1057 = vunpack.c.l.b16 %v969
        %v1058 = vunpack.c.l.b16 %v970
        %v1059 = vunpack.c.h.b16 %v970
        %v1060 = vunpack.c.l.b16 %v971
        %v1061 = vunpack.c.l.b16 %v972
        %v1062 = vunpack.c.h.b16 %v972
        %v1063 = vunpack.c.l.b16 %v973
        %v1064 = vunpack.c.l.b16 %v974
        %v1065 = vunpack.c.h.b16 %v974
        %v1066 = vunpack.c.l.b16 %v975
        %v1067 = vunpack.c.l.b16 %v976
        %v1068 = vunpack.c.h.b16 %v976
        %v1069 = vunpack.c.l.b16 %v977
        %v1070 = vunpack.c.l.b16 %v978
        %v1071 = vunpack.c.h.b16 %v978
        %v1072 = vunpack.c.l.b16 %v979
        %v1073 = vunpack.c.l.b16 %v980
        %v1074 = vunpack.c.h.b16 %v980
        %v1075 = vunpack.c.l.b16 %v981
        %v1076 = vunpack.c.l.b16 %v982
        %v1077 = vunpack.c.h.b16 %v982
        %v1078 = vunpack.c.l.b16 %v983
        %v1079 = vunpack.c.l.b16 %v984
        %v1080 = vunpack.c.h.b16 %v984
        %v1081 = vunpack.c.l.b16 %v985
        %v1082 = vunpack.c.l.b16 %v986
        %v1083 = vunpack.c.h.b16 %v986
        %v1084 = vunpack.c.l.b16 %v987
        %v1085 = vpack.c.b16 %v1040, %v1037
        %v1086 = vpack.c.b16 %v1041, %v1038
        %v1087 = vpack.c.b16 %v1042, %v1039
        %v1088 = vpack.c.b16 %v1046, %v1043
        %v1089 = vpack.c.b16 %v1047, %v1044
        %v1090 = vpack.c.b16 %v1048, %v1045
        %v1091 = vpack.c.b16 %v1052, %v1049
        %v1092 = vpack.c.b16 %v1053, %v1050
        %v1093 = vpack.c.b16 %v1054, %v1051
        %v1094 = vpack.c.b16 %v1058, %v1055
        %v1095 = vpack.c.b16 %v1059, %v1056
        %v1096 = vpack.c.b16 %v1060, %v1057
        %v1097 = vpack.c.b16 %v1064, %v1061
        %v1098 = vpack.c.b16 %v1065, %v1062
        %v1099 = vpack.c.b16 %v1066, %v1063
        %v1100 = vpack.c.b16 %v1070, %v1067
        %v1101 = vpack.c.b16 %v1071, %v1068
        %v1102 = vpack.c.b16 %v1072, %v1069
        %v1103 = vpack.c.b16 %v1076, %v1073
        %v1104 = vpack.c.b16 %v1077, %v1074
        %v1105 = vpack.c.b16 %v1078, %v1075
        %v1106 = vpack.c.b16 %v1082, %v1079
        %v1107 = vpack.c.b16 %v1083, %v1080
        %v1108 = vpack.c.b16 %v1084, %v1081
        %1133 = vmatprep.subr.bf16.mxu0 %v1086
        %1134 = vmatpush1.bf16.msra.mxu0 %v1085
        %1135 = vmatprep.subr.bf16.mxu0 %v1089
        %1136 = vmatpush1.bf16.msra.mxu0 %v1088
        %1137 = vmatprep.subr.bf16.mxu0 %v1092
        %1138 = vmatpush1.bf16.msra.mxu0 %v1091
        %1139 = vmatprep.subr.bf16.mxu0 %v1095
        %1140 = vmatpush1.bf16.msra.mxu0 %v1094
        %1141 = vmatprep.subr.bf16.mxu0 %v1098
        %1142 = vmatpush1.bf16.msra.mxu0 %v1097
        %1143 = vmatprep.subr.bf16.mxu0 %v1101
        %1144 = vmatpush1.bf16.msra.mxu0 %v1100
        %1145 = vmatprep.subr.bf16.mxu0 %v1104
        %1146 = vmatpush1.bf16.msra.mxu0 %v1103
        %1147 = vmatprep.subr.bf16.mxu0 %v1107
        %1148 = vmatpush1.bf16.msra.mxu0 %v1106
        %1149 = vmatprep.subr.bf16.mxu0 0
        %1150 = vmatpush1.bf16.msra.mxu0 0
        %1151 = vmatprep.subr.bf16.mxu0 0
        %1152 = vmatpush1.bf16.msra.mxu0 0
        %1153 = vmatprep.subr.bf16.mxu0 0
        %1154 = vmatpush1.bf16.msra.mxu0 0
        %1155 = vmatprep.subr.bf16.mxu0 0
        %1156 = vmatpush1.bf16.msra.mxu0 0
        %1157 = vmatprep.subr.bf16.mxu0 0
        %1158 = vmatpush1.bf16.msra.mxu0 0
        %1159 = vmatprep.subr.bf16.mxu0 0
        %1160 = vmatpush1.bf16.msra.mxu0 0
        %1161 = vmatprep.subr.bf16.mxu0 0
        %1162 = vmatpush1.bf16.msra.mxu0 0
        %1163 = vmatprep.subr.bf16.mxu0 0
        %1164 = vmatpush1.bf16.msra.mxu0 0
        %1165 = vmatprep.mubr.bf16.mxu0 0
        %1166 = vmatmul.mubr.bf16.gmra.mrb[0].mxu0 %v955
        %v1167 = vpop.f32.mrb[0].mxu0
        %v1168 = vadd.f32 %v993, %v1167
        %v1169 = vpop.f32.mrb[0].mxu0
        %v1170 = vadd.f32 %v997, %v1169
        %v1171 = vpop.f32.mrb[0].mxu0
        %v1172 = vadd.f32 %v993, %v1171
        %v1173 = vpop.f32.mrb[0].mxu0
        %v1174 = vadd.f32 %v997, %v1173
        %1175 = vdwg.mxu0
        %1176 = vmatprep.subr.bf16.mxu0 0
        %1177 = vmatpush1.bf16.msra.mxu0 %v1087
        %1178 = vmatprep.subr.bf16.mxu0 0
        %1179 = vmatpush1.bf16.msra.mxu0 %v1090
        %1180 = vmatprep.subr.bf16.mxu0 0
        %1181 = vmatpush1.bf16.msra.mxu0 %v1093
        %1182 = vmatprep.subr.bf16.mxu0 0
        %1183 = vmatpush1.bf16.msra.mxu0 %v1096
        %1184 = vmatprep.subr.bf16.mxu0 0
        %1185 = vmatpush1.bf16.msra.mxu0 %v1099
        %1186 = vmatprep.subr.bf16.mxu0 0
        %1187 = vmatpush1.bf16.msra.mxu0 %v1102
        %1188 = vmatprep.subr.bf16.mxu0 0
        %1189 = vmatpush1.bf16.msra.mxu0 %v1105
        %1190 = vmatprep.subr.bf16.mxu0 0
        %1191 = vmatpush1.bf16.msra.mxu0 %v1108
        %1192 = vmatprep.subr.bf16.mxu0 0
        %1193 = vmatpush1.bf16.msra.mxu0 0
        %1194 = vmatprep.subr.bf16.mxu0 0
        %1195 = vmatpush1.bf16.msra.mxu0 0
        %1196 = vmatprep.subr.bf16.mxu0 0
        %1197 = vmatpush1.bf16.msra.mxu0 0
        %1198 = vmatprep.subr.bf16.mxu0 0
        %1199 = vmatpush1.bf16.msra.mxu0 0
        %1200 = vmatprep.subr.bf16.mxu0 0
        %1201 = vmatpush1.bf16.msra.mxu0 0
        %1202 = vmatprep.subr.bf16.mxu0 0
        %1203 = vmatpush1.bf16.msra.mxu0 0
        %1204 = vmatprep.subr.bf16.mxu0 0
        %1205 = vmatpush1.bf16.msra.mxu0 0
        %1206 = vmatprep.subr.bf16.mxu0 0
        %1207 = vmatpush1.bf16.msra.mxu0 0
        %1208 = vmatprep.mubr.bf16.mxu0 0
        %1209 = vmatmul.mubr.bf16.gmra.mrb[0].mxu0 %v955
        %v1210 = vpop.f32.mrb[0].mxu0
        %v1211 = vadd.f32 %v1001, %v1210
        %v1212 = vpop.f32.mrb[0].mxu0
        %v1213 = vpop.f32.mrb[0].mxu0
        %v1214 = vadd.f32 %v1001, %v1213
        %v1215 = vpop.f32.mrb[0].mxu0
        %1216 = vdwg.mxu0
        %v1217 = vmul.f32 %v1168, 0.125
        %v1218 = vmul.f32 %v1172, 0.125
        %v1219 = vpack.c.bf16 %v1218, %v1217
        %v1220 = vpack.c.bf16 %v1174, %v1170
        %v1221 = vpack.c.bf16 %v1214, %v1211
        %v1222 = vld [vmem:[%s1] sm:$0x3]
        %v1223 = vlaneseq
        %v1224 = vshrl.u32 %v1223, 7
        %v1225 = vsub.s32 0, %v1224
        %v1226 = vrot.slane %v1222, %v1225
        %vm1227 = vcmask 523264
        %v1229 = vsel %vm1227, %v1219, 0
        %v1232 = vsel %vm1227, %v1220, 0
        %1234 = vmatprep.subr.bf16.mxu0 0
        %1235 = vmatpush1.bf16.xpose.msra.mxu0 %v1232
        %1236 = vmatprep.subr.bf16.mxu0 0
        %1237 = vmatpush1.bf16.xpose.msra.mxu0 0
        %1238 = vmatprep.subr.bf16.mxu0 0
        %1239 = vmatpush1.bf16.xpose.msra.mxu0 0
        %1240 = vmatprep.subr.bf16.mxu0 0
        %1241 = vmatpush1.bf16.xpose.msra.mxu0 0
        %1242 = vmatprep.subr.bf16.mxu0 0
        %1243 = vmatpush1.bf16.xpose.msra.mxu0 0
        %1244 = vmatprep.subr.bf16.mxu0 0
        %1245 = vmatpush1.bf16.xpose.msra.mxu0 0
        %1246 = vmatprep.subr.bf16.mxu0 0
        %1247 = vmatpush1.bf16.xpose.msra.mxu0 0
        %1248 = vmatprep.subr.bf16.mxu0 0
        %1249 = vmatpush1.bf16.xpose.msra.mxu0 0
        %1250 = vmatprep.subr.bf16.mxu0 0
        %1251 = vmatpush1.bf16.xpose.msra.mxu0 0
        %1252 = vmatprep.subr.bf16.mxu0 0
        %1253 = vmatpush1.bf16.xpose.msra.mxu0 0
        %1254 = vmatprep.subr.bf16.mxu0 0
        %1255 = vmatpush1.bf16.xpose.msra.mxu0 0
        %1256 = vmatprep.subr.bf16.mxu0 0
        %1257 = vmatpush1.bf16.xpose.msra.mxu0 0
        %1258 = vmatprep.subr.bf16.mxu0 0
        %1259 = vmatpush1.bf16.xpose.msra.mxu0 0
        %1260 = vmatprep.subr.bf16.mxu0 0
        %1261 = vmatpush1.bf16.xpose.msra.mxu0 0
        %1262 = vmatprep.subr.bf16.mxu0 0
        %1263 = vmatpush1.bf16.xpose.msra.mxu0 0
        %1264 = vmatprep.subr.bf16.mxu0 0
        %1265 = vmatpush1.bf16.xpose.msra.mxu0 0
        %1266 = vmatprep.mubr.bf16.mxu0 0
        %1267 = vmatmul.mubr.bf16.gmra.mrb[0].mxu0 %v1229
        %v1268 = vpop.f32.mrb[0].mxu0
        %v1269 = vadd.f32 %v1226, %v1268
        %v1270 = vpop.f32.mrb[0].mxu0
        %v1271 = vpop.f32.mrb[0].mxu0
        %v1272 = vpop.f32.mrb[0].mxu0
        %1273 = vdwg.mxu0
        %vm1274 = vcmask 64512
        %v1275 = vsel %vm1274, %v1269, -inf
        %1276 = vmax.xlane.f32.xlu0 %v1275
        %v1277 = vpop.xlane.xlu0 %1276
        %v1278 = vsub.f32 %v1269, %v1277
        %v1279 = vmul.f32 %v1278, 1.442695
        %v1280 = vpow.pop %v1279
        %v1281 = vsel %vm1274, %v1280, 0.0
        %1282 = vadd.xlane.f32.xlu0 %v1281
        %v1283 = vpop.xlane.xlu0 %1282
        %v1284 = vrcp.pop %v1283
        %v1285 = vmul.f32 %v1280, %v1284
        %v1286 = vpack.c.bf16 %v1285, %v1285
        %v1288 = vsel %vm1274, %v1286, 0
        %vm1290 = vcmask 1043456
        %v1292 = vsel %vm1290, %v1221, 0
        %1294 = vmatprep.subr.bf16.mxu0 0
        %1295 = vmatpush1.bf16.msra.mxu0 %v1292
        %1296 = vmatprep.subr.bf16.mxu0 0
        %1297 = vmatpush1.bf16.msra.mxu0 0
        %1298 = vmatprep.subr.bf16.mxu0 0
        %1299 = vmatpush1.bf16.msra.mxu0 0
        %1300 = vmatprep.subr.bf16.mxu0 0
        %1301 = vmatpush1.bf16.msra.mxu0 0
        %1302 = vmatprep.subr.bf16.mxu0 0
        %1303 = vmatpush1.bf16.msra.mxu0 0
        %1304 = vmatprep.subr.bf16.mxu0 0
        %1305 = vmatpush1.bf16.msra.mxu0 0
        %1306 = vmatprep.subr.bf16.mxu0 0
        %1307 = vmatpush1.bf16.msra.mxu0 0
        %1308 = vmatprep.subr.bf16.mxu0 0
        %1309 = vmatpush1.bf16.msra.mxu0 0
        %1310 = vmatprep.subr.bf16.mxu0 0
        %1311 = vmatpush1.bf16.msra.mxu0 0
        %1312 = vmatprep.subr.bf16.mxu0 0
        %1313 = vmatpush1.bf16.msra.mxu0 0
        %1314 = vmatprep.subr.bf16.mxu0 0
        %1315 = vmatpush1.bf16.msra.mxu0 0
        %1316 = vmatprep.subr.bf16.mxu0 0
        %1317 = vmatpush1.bf16.msra.mxu0 0
        %1318 = vmatprep.subr.bf16.mxu0 0
        %1319 = vmatpush1.bf16.msra.mxu0 0
        %1320 = vmatprep.subr.bf16.mxu0 0
        %1321 = vmatpush1.bf16.msra.mxu0 0
        %1322 = vmatprep.subr.bf16.mxu0 0
        %1323 = vmatpush1.bf16.msra.mxu0 0
        %1324 = vmatprep.subr.bf16.mxu0 0
        %1325 = vmatpush1.bf16.msra.mxu0 0
        %1326 = vmatprep.mubr.bf16.mxu0 0
        %1327 = vmatmul.mubr.bf16.gmra.mrb[0].mxu0 %v1288
        %v1328 = vpop.f32.mrb[0].mxu0
        %v1329 = vadd.f32 0.0, %v1328
        %v1330 = vpop.f32.mrb[0].mxu0
        %v1331 = vpop.f32.mrb[0].mxu0
        %v1332 = vpop.f32.mrb[0].mxu0
        %1333 = vdwg.mxu0
        %1334 = vst.msk [vmem:[#allocation3] sm:$0xff] %vm1227, %v1329
        %1336 = vrot.lane.b32.xlu0 %v1219, 64
        %v1337 = vpop.permute.xlu0 %1336
        %1339 = vrot.lane.b32.xlu0 %v1220, 64
        %v1340 = vpop.permute.xlu0 %1339
        %v1342 = vsel %vm1227, %v1337, 0
        %v1345 = vsel %vm1227, %v1340, 0
        %1347 = vmatprep.subr.bf16.mxu0 0
        %1348 = vmatpush1.bf16.xpose.msra.mxu0 %v1345
        %1349 = vmatprep.subr.bf16.mxu0 0
        %1350 = vmatpush1.bf16.xpose.msra.mxu0 0
        %1351 = vmatprep.subr.bf16.mxu0 0
        %1352 = vmatpush1.bf16.xpose.msra.mxu0 0
        %1353 = vmatprep.subr.bf16.mxu0 0
        %1354 = vmatpush1.bf16.xpose.msra.mxu0 0
        %1355 = vmatprep.subr.bf16.mxu0 0
        %1356 = vmatpush1.bf16.xpose.msra.mxu0 0
        %1357 = vmatprep.subr.bf16.mxu0 0
        %1358 = vmatpush1.bf16.xpose.msra.mxu0 0
        %1359 = vmatprep.subr.bf16.mxu0 0
        %1360 = vmatpush1.bf16.xpose.msra.mxu0 0
        %1361 = vmatprep.subr.bf16.mxu0 0
        %1362 = vmatpush1.bf16.xpose.msra.mxu0 0
        %1363 = vmatprep.subr.bf16.mxu0 0
        %1364 = vmatpush1.bf16.xpose.msra.mxu0 0
        %1365 = vmatprep.subr.bf16.mxu0 0
        %1366 = vmatpush1.bf16.xpose.msra.mxu0 0
        %1367 = vmatprep.subr.bf16.mxu0 0
        %1368 = vmatpush1.bf16.xpose.msra.mxu0 0
        %1369 = vmatprep.subr.bf16.mxu0 0
        %1370 = vmatpush1.bf16.xpose.msra.mxu0 0
        %1371 = vmatprep.subr.bf16.mxu0 0
        %1372 = vmatpush1.bf16.xpose.msra.mxu0 0
        %1373 = vmatprep.subr.bf16.mxu0 0
        %1374 = vmatpush1.bf16.xpose.msra.mxu0 0
        %1375 = vmatprep.subr.bf16.mxu0 0
        %1376 = vmatpush1.bf16.xpose.msra.mxu0 0
        %1377 = vmatprep.subr.bf16.mxu0 0
        %1378 = vmatpush1.bf16.xpose.msra.mxu0 0
        %1379 = vmatprep.mubr.bf16.mxu0 0
        %1380 = vmatmul.mubr.bf16.gmra.mrb[0].mxu0 %v1342
        %v1381 = vpop.f32.mrb[0].mxu0
        %v1382 = vadd.f32 %v1226, %v1381
        %v1383 = vpop.f32.mrb[0].mxu0
        %v1384 = vpop.f32.mrb[0].mxu0
        %v1385 = vpop.f32.mrb[0].mxu0
        %1386 = vdwg.mxu0
        %v1387 = vsel %vm1274, %v1382, -inf
        %1388 = vmax.xlane.f32.xlu0 %v1387
        %v1389 = vpop.xlane.xlu0 %1388
        %v1390 = vsub.f32 %v1382, %v1389
        %v1391 = vmul.f32 %v1390, 1.442695
        %v1392 = vpow.pop %v1391
        %v1393 = vsel %vm1274, %v1392, 0.0
        %1394 = vadd.xlane.f32.xlu0 %v1393
        %v1395 = vpop.xlane.xlu0 %1394
        %v1396 = vrcp.pop %v1395
        %v1397 = vmul.f32 %v1392, %v1396
        %v1398 = vpack.c.bf16 %v1397, %v1397
        %1400 = vrot.lane.b32.xlu0 %v1221, 64
        %v1401 = vpop.permute.xlu0 %1400
        %v1403 = vsel %vm1274, %v1398, 0
        %v1406 = vsel %vm1290, %v1401, 0
        %1408 = vmatprep.subr.bf16.mxu0 0
        %1409 = vmatpush1.bf16.msra.mxu0 %v1406
        %1410 = vmatprep.subr.bf16.mxu0 0
        %1411 = vmatpush1.bf16.msra.mxu0 0
        %1412 = vmatprep.subr.bf16.mxu0 0
        %1413 = vmatpush1.bf16.msra.mxu0 0
        %1414 = vmatprep.subr.bf16.mxu0 0
        %1415 = vmatpush1.bf16.msra.mxu0 0
        %1416 = vmatprep.subr.bf16.mxu0 0
        %1417 = vmatpush1.bf16.msra.mxu0 0
        %1418 = vmatprep.subr.bf16.mxu0 0
        %1419 = vmatpush1.bf16.msra.mxu0 0
        %1420 = vmatprep.subr.bf16.mxu0 0
        %1421 = vmatpush1.bf16.msra.mxu0 0
        %1422 = vmatprep.subr.bf16.mxu0 0
        %1423 = vmatpush1.bf16.msra.mxu0 0
        %1424 = vmatprep.subr.bf16.mxu0 0
        %1425 = vmatpush1.bf16.msra.mxu0 0
        %1426 = vmatprep.subr.bf16.mxu0 0
        %1427 = vmatpush1.bf16.msra.mxu0 0
        %1428 = vmatprep.subr.bf16.mxu0 0
        %1429 = vmatpush1.bf16.msra.mxu0 0
        %1430 = vmatprep.subr.bf16.mxu0 0
        %1431 = vmatpush1.bf16.msra.mxu0 0
        %1432 = vmatprep.subr.bf16.mxu0 0
        %1433 = vmatpush1.bf16.msra.mxu0 0
        %1434 = vmatprep.subr.bf16.mxu0 0
        %1435 = vmatpush1.bf16.msra.mxu0 0
        %1436 = vmatprep.subr.bf16.mxu0 0
        %1437 = vmatpush1.bf16.msra.mxu0 0
        %1438 = vmatprep.subr.bf16.mxu0 0
        %1439 = vmatpush1.bf16.msra.mxu0 0
        %1440 = vmatprep.mubr.bf16.mxu0 0
        %1441 = vmatmul.mubr.bf16.gmra.mrb[0].mxu0 %v1403
        %v1442 = vpop.f32.mrb[0].mxu0
        %v1443 = vadd.f32 0.0, %v1442
        %v1444 = vpop.f32.mrb[0].mxu0
        %v1445 = vpop.f32.mrb[0].mxu0
        %v1446 = vpop.f32.mrb[0].mxu0
        %1447 = vdwg.mxu0
        %1449 = vrot.lane.b32.xlu0 %v1443, 64
        %v1450 = vpop.permute.xlu0 %1449
        %vm1452 = vcmask 1048064
        %1453 = vst.msk [vmem:[#allocation3] sm:$0xff] %vm1452, %v1450
        %v1454 = vlaneseq
        %v1455 = vshrl.u32 %v1454, 7
        %v1456 = vsub.s32 1, %v1455
        %v1457 = vrot.slane %v1222, %v1456
        %v1458 = vrot.slane %v1219, 4
        %v1459 = vrot.slane %v1220, 4
        %v1461 = vsel %vm1227, %v1458, 0
        %v1464 = vsel %vm1227, %v1459, 0
        %1466 = vmatprep.subr.bf16.mxu0 0
        %1467 = vmatpush1.bf16.xpose.msra.mxu0 %v1464
        %1468 = vmatprep.subr.bf16.mxu0 0
        %1469 = vmatpush1.bf16.xpose.msra.mxu0 0
        %1470 = vmatprep.subr.bf16.mxu0 0
        %1471 = vmatpush1.bf16.xpose.msra.mxu0 0
        %1472 = vmatprep.subr.bf16.mxu0 0
        %1473 = vmatpush1.bf16.xpose.msra.mxu0 0
        %1474 = vmatprep.subr.bf16.mxu0 0
        %1475 = vmatpush1.bf16.xpose.msra.mxu0 0
        %1476 = vmatprep.subr.bf16.mxu0 0
        %1477 = vmatpush1.bf16.xpose.msra.mxu0 0
        %1478 = vmatprep.subr.bf16.mxu0 0
        %1479 = vmatpush1.bf16.xpose.msra.mxu0 0
        %1480 = vmatprep.subr.bf16.mxu0 0
        %1481 = vmatpush1.bf16.xpose.msra.mxu0 0
        %1482 = vmatprep.subr.bf16.mxu0 0
        %1483 = vmatpush1.bf16.xpose.msra.mxu0 0
        %1484 = vmatprep.subr.bf16.mxu0 0
        %1485 = vmatpush1.bf16.xpose.msra.mxu0 0
        %1486 = vmatprep.subr.bf16.mxu0 0
        %1487 = vmatpush1.bf16.xpose.msra.mxu0 0
        %1488 = vmatprep.subr.bf16.mxu0 0
        %1489 = vmatpush1.bf16.xpose.msra.mxu0 0
        %1490 = vmatprep.subr.bf16.mxu0 0
        %1491 = vmatpush1.bf16.xpose.msra.mxu0 0
        %1492 = vmatprep.subr.bf16.mxu0 0
        %1493 = vmatpush1.bf16.xpose.msra.mxu0 0
        %1494 = vmatprep.subr.bf16.mxu0 0
        %1495 = vmatpush1.bf16.xpose.msra.mxu0 0
        %1496 = vmatprep.subr.bf16.mxu0 0
        %1497 = vmatpush1.bf16.xpose.msra.mxu0 0
        %1498 = vmatprep.mubr.bf16.mxu0 0
        %1499 = vmatmul.mubr.bf16.gmra.mrb[0].mxu0 %v1461
        %v1500 = vpop.f32.mrb[0].mxu0
        %v1501 = vadd.f32 %v1457, %v1500
        %v1502 = vpop.f32.mrb[0].mxu0
        %v1503 = vpop.f32.mrb[0].mxu0
        %v1504 = vpop.f32.mrb[0].mxu0
        %1505 = vdwg.mxu0
        %v1506 = vsel %vm1274, %v1501, -inf
        %1507 = vmax.xlane.f32.xlu0 %v1506
        %v1508 = vpop.xlane.xlu0 %1507
        %v1509 = vsub.f32 %v1501, %v1508
        %v1510 = vmul.f32 %v1509, 1.442695
        %v1511 = vpow.pop %v1510
        %v1512 = vsel %vm1274, %v1511, 0.0
        %1513 = vadd.xlane.f32.xlu0 %v1512
        %v1514 = vpop.xlane.xlu0 %1513
        %v1515 = vrcp.pop %v1514
        %v1516 = vmul.f32 %v1511, %v1515
        %v1517 = vpack.c.bf16 %v1516, %v1516
        %v1518 = vrot.slane %v1221, 4
        %v1520 = vsel %vm1274, %v1517, 0
        %v1523 = vsel %vm1290, %v1518, 0
        %1525 = vmatprep.subr.bf16.mxu0 0
        %1526 = vmatpush1.bf16.msra.mxu0 %v1523
        %1527 = vmatprep.subr.bf16.mxu0 0
        %1528 = vmatpush1.bf16.msra.mxu0 0
        %1529 = vmatprep.subr.bf16.mxu0 0
        %1530 = vmatpush1.bf16.msra.mxu0 0
        %1531 = vmatprep.subr.bf16.mxu0 0
        %1532 = vmatpush1.bf16.msra.mxu0 0
        %1533 = vmatprep.subr.bf16.mxu0 0
        %1534 = vmatpush1.bf16.msra.mxu0 0
        %1535 = vmatprep.subr.bf16.mxu0 0
        %1536 = vmatpush1.bf16.msra.mxu0 0
        %1537 = vmatprep.subr.bf16.mxu0 0
        %1538 = vmatpush1.bf16.msra.mxu0 0
        %1539 = vmatprep.subr.bf16.mxu0 0
        %1540 = vmatpush1.bf16.msra.mxu0 0
        %1541 = vmatprep.subr.bf16.mxu0 0
        %1542 = vmatpush1.bf16.msra.mxu0 0
        %1543 = vmatprep.subr.bf16.mxu0 0
        %1544 = vmatpush1.bf16.msra.mxu0 0
        %1545 = vmatprep.subr.bf16.mxu0 0
        %1546 = vmatpush1.bf16.msra.mxu0 0
        %1547 = vmatprep.subr.bf16.mxu0 0
        %1548 = vmatpush1.bf16.msra.mxu0 0
        %1549 = vmatprep.subr.bf16.mxu0 0
        %1550 = vmatpush1.bf16.msra.mxu0 0
        %1551 = vmatprep.subr.bf16.mxu0 0
        %1552 = vmatpush1.bf16.msra.mxu0 0
        %1553 = vmatprep.subr.bf16.mxu0 0
        %1554 = vmatpush1.bf16.msra.mxu0 0
        %1555 = vmatprep.subr.bf16.mxu0 0
        %1556 = vmatpush1.bf16.msra.mxu0 0
        %1557 = vmatprep.mubr.bf16.mxu0 0
        %1558 = vmatmul.mubr.bf16.gmra.mrb[0].mxu0 %v1520
        %v1559 = vpop.f32.mrb[0].mxu0
        %v1560 = vadd.f32 0.0, %v1559
        %v1561 = vpop.f32.mrb[0].mxu0
        %v1562 = vpop.f32.mrb[0].mxu0
        %v1563 = vpop.f32.mrb[0].mxu0
        %1564 = vdwg.mxu0
        %1565 = vst.msk [vmem:[#allocation3 + $0x8] sm:$0xff] %vm1227, %v1560
        %1566 = vrot.lane.b32.xlu0 %v1458, 64
        %v1567 = vpop.permute.xlu0 %1566
        %1568 = vrot.lane.b32.xlu0 %v1459, 64
        %v1569 = vpop.permute.xlu0 %1568
        %v1571 = vsel %vm1227, %v1567, 0
        %v1574 = vsel %vm1227, %v1569, 0
        %1576 = vmatprep.subr.bf16.mxu0 0
        %1577 = vmatpush1.bf16.xpose.msra.mxu0 %v1574
        %1578 = vmatprep.subr.bf16.mxu0 0
        %1579 = vmatpush1.bf16.xpose.msra.mxu0 0
        %1580 = vmatprep.subr.bf16.mxu0 0
        %1581 = vmatpush1.bf16.xpose.msra.mxu0 0
        %1582 = vmatprep.subr.bf16.mxu0 0
        %1583 = vmatpush1.bf16.xpose.msra.mxu0 0
        %1584 = vmatprep.subr.bf16.mxu0 0
        %1585 = vmatpush1.bf16.xpose.msra.mxu0 0
        %1586 = vmatprep.subr.bf16.mxu0 0
        %1587 = vmatpush1.bf16.xpose.msra.mxu0 0
        %1588 = vmatprep.subr.bf16.mxu0 0
        %1589 = vmatpush1.bf16.xpose.msra.mxu0 0
        %1590 = vmatprep.subr.bf16.mxu0 0
        %1591 = vmatpush1.bf16.xpose.msra.mxu0 0
        %1592 = vmatprep.subr.bf16.mxu0 0
        %1593 = vmatpush1.bf16.xpose.msra.mxu0 0
        %1594 = vmatprep.subr.bf16.mxu0 0
        %1595 = vmatpush1.bf16.xpose.msra.mxu0 0
        %1596 = vmatprep.subr.bf16.mxu0 0
        %1597 = vmatpush1.bf16.xpose.msra.mxu0 0
        %1598 = vmatprep.subr.bf16.mxu0 0
        %1599 = vmatpush1.bf16.xpose.msra.mxu0 0
        %1600 = vmatprep.subr.bf16.mxu0 0
        %1601 = vmatpush1.bf16.xpose.msra.mxu0 0
        %1602 = vmatprep.subr.bf16.mxu0 0
        %1603 = vmatpush1.bf16.xpose.msra.mxu0 0
        %1604 = vmatprep.subr.bf16.mxu0 0
        %1605 = vmatpush1.bf16.xpose.msra.mxu0 0
        %1606 = vmatprep.subr.bf16.mxu0 0
        %1607 = vmatpush1.bf16.xpose.msra.mxu0 0
        %1608 = vmatprep.mubr.bf16.mxu0 0
        %1609 = vmatmul.mubr.bf16.gmra.mrb[0].mxu0 %v1571
        %v1610 = vpop.f32.mrb[0].mxu0
        %v1611 = vadd.f32 %v1457, %v1610
        %v1612 = vpop.f32.mrb[0].mxu0
        %v1613 = vpop.f32.mrb[0].mxu0
        %v1614 = vpop.f32.mrb[0].mxu0
        %1615 = vdwg.mxu0
        %v1616 = vsel %vm1274, %v1611, -inf
        %1617 = vmax.xlane.f32.xlu0 %v1616
        %v1618 = vpop.xlane.xlu0 %1617
        %v1619 = vsub.f32 %v1611, %v1618
        %v1620 = vmul.f32 %v1619, 1.442695
        %v1621 = vpow.pop %v1620
        %v1622 = vsel %vm1274, %v1621, 0.0
        %1623 = vadd.xlane.f32.xlu0 %v1622
        %v1624 = vpop.xlane.xlu0 %1623
        %v1625 = vrcp.pop %v1624
        %v1626 = vmul.f32 %v1621, %v1625
        %v1627 = vpack.c.bf16 %v1626, %v1626
        %1628 = vrot.lane.b32.xlu0 %v1518, 64
        %v1629 = vpop.permute.xlu0 %1628
        %v1631 = vsel %vm1274, %v1627, 0
        %v1634 = vsel %vm1290, %v1629, 0
        %1636 = vmatprep.subr.bf16.mxu0 0
        %1637 = vmatpush1.bf16.msra.mxu0 %v1634
        %1638 = vmatprep.subr.bf16.mxu0 0
        %1639 = vmatpush1.bf16.msra.mxu0 0
        %1640 = vmatprep.subr.bf16.mxu0 0
        %1641 = vmatpush1.bf16.msra.mxu0 0
        %1642 = vmatprep.subr.bf16.mxu0 0
        %1643 = vmatpush1.bf16.msra.mxu0 0
        %1644 = vmatprep.subr.bf16.mxu0 0
        %1645 = vmatpush1.bf16.msra.mxu0 0
        %1646 = vmatprep.subr.bf16.mxu0 0
        %1647 = vmatpush1.bf16.msra.mxu0 0
        %1648 = vmatprep.subr.bf16.mxu0 0
        %1649 = vmatpush1.bf16.msra.mxu0 0
        %1650 = vmatprep.subr.bf16.mxu0 0
        %1651 = vmatpush1.bf16.msra.mxu0 0
        %1652 = vmatprep.subr.bf16.mxu0 0
        %1653 = vmatpush1.bf16.msra.mxu0 0
        %1654 = vmatprep.subr.bf16.mxu0 0
        %1655 = vmatpush1.bf16.msra.mxu0 0
        %1656 = vmatprep.subr.bf16.mxu0 0
        %1657 = vmatpush1.bf16.msra.mxu0 0
        %1658 = vmatprep.subr.bf16.mxu0 0
        %1659 = vmatpush1.bf16.msra.mxu0 0
        %1660 = vmatprep.subr.bf16.mxu0 0
        %1661 = vmatpush1.bf16.msra.mxu0 0
        %1662 = vmatprep.subr.bf16.mxu0 0
        %1663 = vmatpush1.bf16.msra.mxu0 0
        %1664 = vmatprep.subr.bf16.mxu0 0
        %1665 = vmatpush1.bf16.msra.mxu0 0
        %1666 = vmatprep.subr.bf16.mxu0 0
        %1667 = vmatpush1.bf16.msra.mxu0 0
        %1668 = vmatprep.mubr.bf16.mxu0 0
        %1669 = vmatmul.mubr.bf16.gmra.mrb[0].mxu0 %v1631
        %v1670 = vpop.f32.mrb[0].mxu0
        %v1671 = vadd.f32 0.0, %v1670
        %v1672 = vpop.f32.mrb[0].mxu0
        %v1673 = vpop.f32.mrb[0].mxu0
        %v1674 = vpop.f32.mrb[0].mxu0
        %1675 = vdwg.mxu0
        %1677 = vrot.lane.b32.xlu0 %v1671, 64
        %v1678 = vpop.permute.xlu0 %1677
        %1680 = vst.msk [vmem:[#allocation3 + $0x8] sm:$0xff] %vm1452, %v1678
        %v1681 = vld [vmem:[#allocation3] sm:$0xff]
        %v1682 = vld [vmem:[#allocation3 + $0x8] sm:$0xff]
        %v1683 = vpack.c.bf16 %v1682, %v1681
        %v1684 = vld [vmem:[%s890] sm:$0xf]
        %v1685 = vld [vmem:[%s890 + $0x4] sm:$0xf]
        %v1686 = vld [vmem:[%s890 + $0x8] sm:$0xf]
        %v1687 = vld [vmem:[%s890 + $0xc] sm:$0xf]
        %v1688 = vld [vmem:[%s890 + $0x10] sm:$0xf]
        %v1689 = vld [vmem:[%s890 + $0x14] sm:$0xf]
        %v1690 = vld [vmem:[%s890 + $0x18] sm:$0xf]
        %v1691 = vld [vmem:[%s890 + $0x1c] sm:$0xf]
        %v1692 = vld [vmem:[%s890 + $0x20] sm:$0xf]
        %v1693 = vld [vmem:[%s890 + $0x24] sm:$0xf]
        %v1694 = vld [vmem:[%s890 + $0x28] sm:$0xf]
        %v1695 = vld [vmem:[%s890 + $0x2c] sm:$0xf]
        %v1696 = vld [vmem:[%s890 + $0x30] sm:$0xf]
        %v1697 = vld [vmem:[%s890 + $0x34] sm:$0xf]
        %v1698 = vld [vmem:[%s890 + $0x38] sm:$0xf]
        %v1699 = vld [vmem:[%s890 + $0x3c] sm:$0xf]
        %v1700 = vld [vmem:[%s746] sm:$0x1]
        %v1702 = vlaneseq
        %v1703 = vshrl.u32 %v1702, 7
        %v1704 = vsub.s32 0, %v1703
        %v1705 = vrot.slane %v1700, %v1704
        %v1723 = vunpack.c.l.b16 %v1684
        %v1724 = vunpack.c.l.b16 %v1685
        %v1725 = vunpack.c.l.b16 %v1686
        %v1726 = vunpack.c.l.b16 %v1687
        %v1727 = vunpack.c.l.b16 %v1688
        %v1728 = vunpack.c.l.b16 %v1689
        %v1729 = vunpack.c.l.b16 %v1690
        %v1730 = vunpack.c.l.b16 %v1691
        %v1731 = vunpack.c.l.b16 %v1692
        %v1732 = vunpack.c.l.b16 %v1693
        %v1733 = vunpack.c.l.b16 %v1694
        %v1734 = vunpack.c.l.b16 %v1695
        %v1735 = vunpack.c.l.b16 %v1696
        %v1736 = vunpack.c.l.b16 %v1697
        %v1737 = vunpack.c.l.b16 %v1698
        %v1738 = vunpack.c.l.b16 %v1699
        %v1739 = vpack.c.b16 %v1724, %v1723
        %v1740 = vpack.c.b16 %v1726, %v1725
        %v1741 = vpack.c.b16 %v1728, %v1727
        %v1742 = vpack.c.b16 %v1730, %v1729
        %v1743 = vpack.c.b16 %v1732, %v1731
        %v1744 = vpack.c.b16 %v1734, %v1733
        %v1745 = vpack.c.b16 %v1736, %v1735
        %v1746 = vpack.c.b16 %v1738, %v1737
        %1755 = vmatprep.subr.bf16.mxu0 0
        %1756 = vmatpush1.bf16.msra.mxu0 %v1739
        %1757 = vmatprep.subr.bf16.mxu0 0
        %1758 = vmatpush1.bf16.msra.mxu0 %v1740
        %1759 = vmatprep.subr.bf16.mxu0 0
        %1760 = vmatpush1.bf16.msra.mxu0 %v1741
        %1761 = vmatprep.subr.bf16.mxu0 0
        %1762 = vmatpush1.bf16.msra.mxu0 %v1742
        %1763 = vmatprep.subr.bf16.mxu0 0
        %1764 = vmatpush1.bf16.msra.mxu0 %v1743
        %1765 = vmatprep.subr.bf16.mxu0 0
        %1766 = vmatpush1.bf16.msra.mxu0 %v1744
        %1767 = vmatprep.subr.bf16.mxu0 0
        %1768 = vmatpush1.bf16.msra.mxu0 %v1745
        %1769 = vmatprep.subr.bf16.mxu0 0
        %1770 = vmatpush1.bf16.msra.mxu0 %v1746
        %1771 = vmatprep.subr.bf16.mxu0 0
        %1772 = vmatpush1.bf16.msra.mxu0 0
        %1773 = vmatprep.subr.bf16.mxu0 0
        %1774 = vmatpush1.bf16.msra.mxu0 0
        %1775 = vmatprep.subr.bf16.mxu0 0
        %1776 = vmatpush1.bf16.msra.mxu0 0
        %1777 = vmatprep.subr.bf16.mxu0 0
        %1778 = vmatpush1.bf16.msra.mxu0 0
        %1779 = vmatprep.subr.bf16.mxu0 0
        %1780 = vmatpush1.bf16.msra.mxu0 0
        %1781 = vmatprep.subr.bf16.mxu0 0
        %1782 = vmatpush1.bf16.msra.mxu0 0
        %1783 = vmatprep.subr.bf16.mxu0 0
        %1784 = vmatpush1.bf16.msra.mxu0 0
        %1785 = vmatprep.subr.bf16.mxu0 0
        %1786 = vmatpush1.bf16.msra.mxu0 0
        %1787 = vmatprep.mubr.bf16.mxu0 0
        %1788 = vmatmul.mubr.bf16.gmra.mrb[0].mxu0 %v1683
        %v1789 = vpop.f32.mrb[0].mxu0
        %v1790 = vadd.f32 %v1705, %v1789
        %v1791 = vpop.f32.mrb[0].mxu0
        %v1792 = vpop.f32.mrb[0].mxu0
        %v1793 = vadd.f32 %v1705, %v1792
        %v1794 = vpop.f32.mrb[0].mxu0
        %1795 = vdwg.mxu0
        %v1796 = vadd.f32 %v953, %v1790
        %v1797 = vadd.f32 %v954, %v1793
        %v1798 = vld [vmem:[%s893] sm:$0x1]
        %v1799 = vld [vmem:[%s896] sm:$0x1]
        %1800 = vadd.xlane.f32.xlu0 %v1796
        %v1801 = vpop.xlane.xlu0 %1800
        %1802 = vadd.xlane.f32.xlu0 %v1797
        %v1803 = vpop.xlane.xlu0 %1802
        %v1804 = vrcp.pop 128.0
        %v1805 = vmul.f32 %v1801, %v1804
        %v1806 = vmul.f32 %v1803, %v1804
        %v1807 = vsub.f32 %v1796, %v1805
        %v1808 = vsub.f32 %v1797, %v1806
        %v1809 = vmul.f32 %v1807, %v1807
        %v1810 = vmul.f32 %v1808, %v1808
        %1811 = vadd.xlane.f32.xlu0 %v1809
        %v1812 = vpop.xlane.xlu0 %1811
        %1813 = vadd.xlane.f32.xlu0 %v1810
        %v1814 = vpop.xlane.xlu0 %1813
        %v1815 = vmul.f32 %v1812, %v1804
        %v1816 = vmul.f32 %v1814, %v1804
        %v1817 = vadd.f32 %v1815, 1e-12
        %v1818 = vadd.f32 %v1816, 1e-12
        %v1819 = vrsqrt.pop %v1817
        %v1820 = vrsqrt.pop %v1818
        %v1821 = vmul.f32 %v1807, %v1819
        %v1822 = vmul.f32 %v1808, %v1820
        %v1824 = vlaneseq
        %v1825 = vshrl.u32 %v1824, 7
        %v1826 = vsub.s32 0, %v1825
        %v1827 = vrot.slane %v1798, %v1826
        %v1829 = vmul.f32 %v1821, %v1827
        %v1830 = vmul.f32 %v1822, %v1827
        %v1832 = vlaneseq
        %v1833 = vshrl.u32 %v1832, 7
        %v1834 = vsub.s32 0, %v1833
        %v1835 = vrot.slane %v1799, %v1834
        %v1837 = vadd.f32 %v1829, %v1835
        %v1838 = vadd.f32 %v1830, %v1835
        %v1839 = vpack.c.bf16 %v1838, %v1837
        %v1840 = vld [vmem:[%s755] sm:$0xff]
        %v1841 = vld [vmem:[%s755 + $0x8] sm:$0xff]
        %v1842 = vld [vmem:[%s755 + $0x10] sm:$0xff]
        %v1843 = vld [vmem:[%s755 + $0x18] sm:$0xff]
        %v1844 = vld [vmem:[%s755 + $0x20] sm:$0xff]
        %v1845 = vld [vmem:[%s755 + $0x28] sm:$0xff]
        %v1846 = vld [vmem:[%s755 + $0x30] sm:$0xff]
        %v1847 = vld [vmem:[%s755 + $0x38] sm:$0xff]
        %v1848 = vld [vmem:[%s755 + $0x40] sm:$0xff]
        %v1849 = vld [vmem:[%s755 + $0x48] sm:$0xff]
        %v1850 = vld [vmem:[%s755 + $0x50] sm:$0xff]
        %v1851 = vld [vmem:[%s755 + $0x58] sm:$0xff]
        %v1852 = vld [vmem:[%s755 + $0x60] sm:$0xff]
        %v1853 = vld [vmem:[%s755 + $0x68] sm:$0xff]
        %v1854 = vld [vmem:[%s755 + $0x70] sm:$0xff]
        %v1855 = vld [vmem:[%s755 + $0x78] sm:$0xff]
        %v1856 = vld [vmem:[%s755 + $0x80] sm:$0xff]
        %v1857 = vld [vmem:[%s755 + $0x88] sm:$0xff]
        %v1858 = vld [vmem:[%s755 + $0x90] sm:$0xff]
        %v1859 = vld [vmem:[%s755 + $0x98] sm:$0xff]
        %v1860 = vld [vmem:[%s755 + $0xa0] sm:$0xff]
        %v1861 = vld [vmem:[%s755 + $0xa8] sm:$0xff]
        %v1862 = vld [vmem:[%s755 + $0xb0] sm:$0xff]
        %v1863 = vld [vmem:[%s755 + $0xb8] sm:$0xff]
        %v1864 = vld [vmem:[%s755 + $0xc0] sm:$0xff]
        %v1865 = vld [vmem:[%s755 + $0xc8] sm:$0xff]
        %v1866 = vld [vmem:[%s755 + $0xd0] sm:$0xff]
        %v1867 = vld [vmem:[%s755 + $0xd8] sm:$0xff]
        %v1868 = vld [vmem:[%s755 + $0xe0] sm:$0xff]
        %v1869 = vld [vmem:[%s755 + $0xe8] sm:$0xff]
        %v1870 = vld [vmem:[%s755 + $0xf0] sm:$0xff]
        %v1871 = vld [vmem:[%s755 + $0xf8] sm:$0xff]
        %v1872 = vld [vmem:[%s764] sm:$0xf]
        %v1874 = vlaneseq
        %v1875 = vshrl.u32 %v1874, 7
        %v1876 = vsub.s32 0, %v1875
        %v1877 = vrot.slane %v1872, %v1876
        %v1878 = vlaneseq
        %v1879 = vshrl.u32 %v1878, 7
        %v1880 = vsub.s32 1, %v1879
        %v1881 = vrot.slane %v1872, %v1880
        %v1882 = vlaneseq
        %v1883 = vshrl.u32 %v1882, 7
        %v1884 = vsub.s32 2, %v1883
        %v1885 = vrot.slane %v1872, %v1884
        %v1886 = vlaneseq
        %v1887 = vshrl.u32 %v1886, 7
        %v1888 = vsub.s32 3, %v1887
        %v1889 = vrot.slane %v1872, %v1888
        %v1926 = vunpack.c.l.b16 %v1840
        %v1927 = vunpack.c.h.b16 %v1840
        %v1928 = vunpack.c.l.b16 %v1841
        %v1929 = vunpack.c.h.b16 %v1841
        %v1930 = vunpack.c.l.b16 %v1842
        %v1931 = vunpack.c.h.b16 %v1842
        %v1932 = vunpack.c.l.b16 %v1843
        %v1933 = vunpack.c.h.b16 %v1843
        %v1934 = vunpack.c.l.b16 %v1844
        %v1935 = vunpack.c.h.b16 %v1844
        %v1936 = vunpack.c.l.b16 %v1845
        %v1937 = vunpack.c.h.b16 %v1845
        %v1938 = vunpack.c.l.b16 %v1846
        %v1939 = vunpack.c.h.b16 %v1846
        %v1940 = vunpack.c.l.b16 %v1847
        %v1941 = vunpack.c.h.b16 %v1847
        %v1942 = vunpack.c.l.b16 %v1848
        %v1943 = vunpack.c.h.b16 %v1848
        %v1944 = vunpack.c.l.b16 %v1849
        %v1945 = vunpack.c.h.b16 %v1849
        %v1946 = vunpack.c.l.b16 %v1850
        %v1947 = vunpack.c.h.b16 %v1850
        %v1948 = vunpack.c.l.b16 %v1851
        %v1949 = vunpack.c.h.b16 %v1851
        %v1950 = vunpack.c.l.b16 %v1852
        %v1951 = vunpack.c.h.b16 %v1852
        %v1952 = vunpack.c.l.b16 %v1853
        %v1953 = vunpack.c.h.b16 %v1853
        %v1954 = vunpack.c.l.b16 %v1854
        %v1955 = vunpack.c.h.b16 %v1854
        %v1956 = vunpack.c.l.b16 %v1855
        %v1957 = vunpack.c.h.b16 %v1855
        %v1958 = vunpack.c.l.b16 %v1856
        %v1959 = vunpack.c.h.b16 %v1856
        %v1960 = vunpack.c.l.b16 %v1857
        %v1961 = vunpack.c.h.b16 %v1857
        %v1962 = vunpack.c.l.b16 %v1858
        %v1963 = vunpack.c.h.b16 %v1858
        %v1964 = vunpack.c.l.b16 %v1859
        %v1965 = vunpack.c.h.b16 %v1859
        %v1966 = vunpack.c.l.b16 %v1860
        %v1967 = vunpack.c.h.b16 %v1860
        %v1968 = vunpack.c.l.b16 %v1861
        %v1969 = vunpack.c.h.b16 %v1861
        %v1970 = vunpack.c.l.b16 %v1862
        %v1971 = vunpack.c.h.b16 %v1862
        %v1972 = vunpack.c.l.b16 %v1863
        %v1973 = vunpack.c.h.b16 %v1863
        %v1974 = vunpack.c.l.b16 %v1864
        %v1975 = vunpack.c.h.b16 %v1864
        %v1976 = vunpack.c.l.b16 %v1865
        %v1977 = vunpack.c.h.b16 %v1865
        %v1978 = vunpack.c.l.b16 %v1866
        %v1979 = vunpack.c.h.b16 %v1866
        %v1980 = vunpack.c.l.b16 %v1867
        %v1981 = vunpack.c.h.b16 %v1867
        %v1982 = vunpack.c.l.b16 %v1868
        %v1983 = vunpack.c.h.b16 %v1868
        %v1984 = vunpack.c.l.b16 %v1869
        %v1985 = vunpack.c.h.b16 %v1869
        %v1986 = vunpack.c.l.b16 %v1870
        %v1987 = vunpack.c.h.b16 %v1870
        %v1988 = vunpack.c.l.b16 %v1871
        %v1989 = vunpack.c.h.b16 %v1871
        %v1990 = vpack.c.b16 %v1930, %v1926
        %v1991 = vpack.c.b16 %v1931, %v1927
        %v1992 = vpack.c.b16 %v1932, %v1928
        %v1993 = vpack.c.b16 %v1933, %v1929
        %v1994 = vpack.c.b16 %v1938, %v1934
        %v1995 = vpack.c.b16 %v1939, %v1935
        %v1996 = vpack.c.b16 %v1940, %v1936
        %v1997 = vpack.c.b16 %v1941, %v1937
        %v1998 = vpack.c.b16 %v1946, %v1942
        %v1999 = vpack.c.b16 %v1947, %v1943
        %v2000 = vpack.c.b16 %v1948, %v1944
        %v2001 = vpack.c.b16 %v1949, %v1945
        %v2002 = vpack.c.b16 %v1954, %v1950
        %v2003 = vpack.c.b16 %v1955, %v1951
        %v2004 = vpack.c.b16 %v1956, %v1952
        %v2005 = vpack.c.b16 %v1957, %v1953
        %v2006 = vpack.c.b16 %v1962, %v1958
        %v2007 = vpack.c.b16 %v1963, %v1959
        %v2008 = vpack.c.b16 %v1964, %v1960
        %v2009 = vpack.c.b16 %v1965, %v1961
        %v2010 = vpack.c.b16 %v1970, %v1966
        %v2011 = vpack.c.b16 %v1971, %v1967
        %v2012 = vpack.c.b16 %v1972, %v1968
        %v2013 = vpack.c.b16 %v1973, %v1969
        %v2014 = vpack.c.b16 %v1978, %v1974
        %v2015 = vpack.c.b16 %v1979, %v1975
        %v2016 = vpack.c.b16 %v1980, %v1976
        %v2017 = vpack.c.b16 %v1981, %v1977
        %v2018 = vpack.c.b16 %v1986, %v1982
        %v2019 = vpack.c.b16 %v1987, %v1983
        %v2020 = vpack.c.b16 %v1988, %v1984
        %v2021 = vpack.c.b16 %v1989, %v1985
        %2054 = vmatprep.subr.bf16.mxu0 %v1991
        %2055 = vmatpush1.bf16.msra.mxu0 %v1990
        %2056 = vmatprep.subr.bf16.mxu0 %v1995
        %2057 = vmatpush1.bf16.msra.mxu0 %v1994
        %2058 = vmatprep.subr.bf16.mxu0 %v1999
        %2059 = vmatpush1.bf16.msra.mxu0 %v1998
        %2060 = vmatprep.subr.bf16.mxu0 %v2003
        %2061 = vmatpush1.bf16.msra.mxu0 %v2002
        %2062 = vmatprep.subr.bf16.mxu0 %v2007
        %2063 = vmatpush1.bf16.msra.mxu0 %v2006
        %2064 = vmatprep.subr.bf16.mxu0 %v2011
        %2065 = vmatpush1.bf16.msra.mxu0 %v2010
        %2066 = vmatprep.subr.bf16.mxu0 %v2015
        %2067 = vmatpush1.bf16.msra.mxu0 %v2014
        %2068 = vmatprep.subr.bf16.mxu0 %v2019
        %2069 = vmatpush1.bf16.msra.mxu0 %v2018
        %2070 = vmatprep.subr.bf16.mxu0 0
        %2071 = vmatpush1.bf16.msra.mxu0 0
        %2072 = vmatprep.subr.bf16.mxu0 0
        %2073 = vmatpush1.bf16.msra.mxu0 0
        %2074 = vmatprep.subr.bf16.mxu0 0
        %2075 = vmatpush1.bf16.msra.mxu0 0
        %2076 = vmatprep.subr.bf16.mxu0 0
        %2077 = vmatpush1.bf16.msra.mxu0 0
        %2078 = vmatprep.subr.bf16.mxu0 0
        %2079 = vmatpush1.bf16.msra.mxu0 0
        %2080 = vmatprep.subr.bf16.mxu0 0
        %2081 = vmatpush1.bf16.msra.mxu0 0
        %2082 = vmatprep.subr.bf16.mxu0 0
        %2083 = vmatpush1.bf16.msra.mxu0 0
        %2084 = vmatprep.subr.bf16.mxu0 0
        %2085 = vmatpush1.bf16.msra.mxu0 0
        %2086 = vmatprep.mubr.bf16.mxu0 0
        %2087 = vmatmul.mubr.bf16.gmra.mrb[0].mxu0 %v1839
        %v2088 = vpop.f32.mrb[0].mxu0
        %v2089 = vadd.f32 %v1877, %v2088
        %v2090 = vpop.f32.mrb[0].mxu0
        %v2091 = vadd.f32 %v1881, %v2090
        %v2092 = vpop.f32.mrb[0].mxu0
        %v2093 = vadd.f32 %v1877, %v2092
        %v2094 = vpop.f32.mrb[0].mxu0
        %v2095 = vadd.f32 %v1881, %v2094
        %2096 = vdwg.mxu0
        %2097 = vmatprep.subr.bf16.mxu0 %v1993
        %2098 = vmatpush1.bf16.msra.mxu0 %v1992
        %2099 = vmatprep.subr.bf16.mxu0 %v1997
        %2100 = vmatpush1.bf16.msra.mxu0 %v1996
        %2101 = vmatprep.subr.bf16.mxu0 %v2001
        %2102 = vmatpush1.bf16.msra.mxu0 %v2000
        %2103 = vmatprep.subr.bf16.mxu0 %v2005
        %2104 = vmatpush1.bf16.msra.mxu0 %v2004
        %2105 = vmatprep.subr.bf16.mxu0 %v2009
        %2106 = vmatpush1.bf16.msra.mxu0 %v2008
        %2107 = vmatprep.subr.bf16.mxu0 %v2013
        %2108 = vmatpush1.bf16.msra.mxu0 %v2012
        %2109 = vmatprep.subr.bf16.mxu0 %v2017
        %2110 = vmatpush1.bf16.msra.mxu0 %v2016
        %2111 = vmatprep.subr.bf16.mxu0 %v2021
        %2112 = vmatpush1.bf16.msra.mxu0 %v2020
        %2113 = vmatprep.subr.bf16.mxu0 0
        %2114 = vmatpush1.bf16.msra.mxu0 0
        %2115 = vmatprep.subr.bf16.mxu0 0
        %2116 = vmatpush1.bf16.msra.mxu0 0
        %2117 = vmatprep.subr.bf16.mxu0 0
        %2118 = vmatpush1.bf16.msra.mxu0 0
        %2119 = vmatprep.subr.bf16.mxu0 0
        %2120 = vmatpush1.bf16.msra.mxu0 0
        %2121 = vmatprep.subr.bf16.mxu0 0
        %2122 = vmatpush1.bf16.msra.mxu0 0
        %2123 = vmatprep.subr.bf16.mxu0 0
        %2124 = vmatpush1.bf16.msra.mxu0 0
        %2125 = vmatprep.subr.bf16.mxu0 0
        %2126 = vmatpush1.bf16.msra.mxu0 0
        %2127 = vmatprep.subr.bf16.mxu0 0
        %2128 = vmatpush1.bf16.msra.mxu0 0
        %2129 = vmatprep.mubr.bf16.mxu0 0
        %2130 = vmatmul.mubr.bf16.gmra.mrb[0].mxu0 %v1839
        %v2131 = vpop.f32.mrb[0].mxu0
        %v2132 = vadd.f32 %v1885, %v2131
        %v2133 = vpop.f32.mrb[0].mxu0
        %v2134 = vadd.f32 %v1889, %v2133
        %v2135 = vpop.f32.mrb[0].mxu0
        %v2136 = vadd.f32 %v1885, %v2135
        %v2137 = vpop.f32.mrb[0].mxu0
        %v2138 = vadd.f32 %v1889, %v2137
        %2139 = vdwg.mxu0
        %v2140 = vmul.f32 %v2089, 0.5
        %v2141 = vmul.f32 %v2091, 0.5
        %v2142 = vmul.f32 %v2132, 0.5
        %v2143 = vmul.f32 %v2134, 0.5
        %v2144 = vmul.f32 %v2093, 0.5
        %v2145 = vmul.f32 %v2095, 0.5
        %v2146 = vmul.f32 %v2136, 0.5
        %v2147 = vmul.f32 %v2138, 0.5
        %v2148 = vmul.f32 %v2089, 0.044715
        %v2149 = vmul.f32 %v2091, 0.044715
        %v2150 = vmul.f32 %v2132, 0.044715
        %v2151 = vmul.f32 %v2134, 0.044715
        %v2152 = vmul.f32 %v2093, 0.044715
        %v2153 = vmul.f32 %v2095, 0.044715
        %v2154 = vmul.f32 %v2136, 0.044715
        %v2155 = vmul.f32 %v2138, 0.044715
        %v2156 = vmul.f32 %v2148, %v2089
        %v2157 = vmul.f32 %v2149, %v2091
        %v2158 = vmul.f32 %v2150, %v2132
        %v2159 = vmul.f32 %v2151, %v2134
        %v2160 = vmul.f32 %v2152, %v2093
        %v2161 = vmul.f32 %v2153, %v2095
        %v2162 = vmul.f32 %v2154, %v2136
        %v2163 = vmul.f32 %v2155, %v2138
        %v2164 = vmul.f32 %v2156, %v2089
        %v2165 = vmul.f32 %v2157, %v2091
        %v2166 = vmul.f32 %v2158, %v2132
        %v2167 = vmul.f32 %v2159, %v2134
        %v2168 = vmul.f32 %v2160, %v2093
        %v2169 = vmul.f32 %v2161, %v2095
        %v2170 = vmul.f32 %v2162, %v2136
        %v2171 = vmul.f32 %v2163, %v2138
        %v2172 = vadd.f32 %v2089, %v2164
        %v2173 = vadd.f32 %v2091, %v2165
        %v2174 = vadd.f32 %v2132, %v2166
        %v2175 = vadd.f32 %v2134, %v2167
        %v2176 = vadd.f32 %v2093, %v2168
        %v2177 = vadd.f32 %v2095, %v2169
        %v2178 = vadd.f32 %v2136, %v2170
        %v2179 = vadd.f32 %v2138, %v2171
        %v2180 = vmul.f32 %v2172, 0.7978846
        %v2181 = vmul.f32 %v2173, 0.7978846
        %v2182 = vmul.f32 %v2174, 0.7978846
        %v2183 = vmul.f32 %v2175, 0.7978846
        %v2184 = vmul.f32 %v2176, 0.7978846
        %v2185 = vmul.f32 %v2177, 0.7978846
        %v2186 = vmul.f32 %v2178, 0.7978846
        %v2187 = vmul.f32 %v2179, 0.7978846
        %v2188 = vtanh.pop %v2180
        %v2189 = vtanh.pop %v2181
        %v2190 = vtanh.pop %v2182
        %v2191 = vtanh.pop %v2183
        %v2192 = vtanh.pop %v2184
        %v2193 = vtanh.pop %v2185
        %v2194 = vtanh.pop %v2186
        %v2195 = vtanh.pop %v2187
        %v2196 = vadd.f32 %v2188, 1.0
        %v2197 = vadd.f32 %v2189, 1.0
        %v2198 = vadd.f32 %v2190, 1.0
        %v2199 = vadd.f32 %v2191, 1.0
        %v2200 = vadd.f32 %v2192, 1.0
        %v2201 = vadd.f32 %v2193, 1.0
        %v2202 = vadd.f32 %v2194, 1.0
        %v2203 = vadd.f32 %v2195, 1.0
        %v2204 = vmul.f32 %v2140, %v2196
        %v2205 = vmul.f32 %v2141, %v2197
        %v2206 = vmul.f32 %v2142, %v2198
        %v2207 = vmul.f32 %v2143, %v2199
        %v2208 = vmul.f32 %v2144, %v2200
        %v2209 = vmul.f32 %v2145, %v2201
        %v2210 = vmul.f32 %v2146, %v2202
        %v2211 = vmul.f32 %v2147, %v2203
        %v2212 = vpack.c.bf16 %v2208, %v2204
        %v2213 = vpack.c.bf16 %v2209, %v2205
        %v2214 = vpack.c.bf16 %v2210, %v2206
        %v2215 = vpack.c.bf16 %v2211, %v2207
        %v2216 = vld [vmem:[%s773] sm:$0xf]
        %v2217 = vld [vmem:[%s773 + $0x4] sm:$0xf]
        %v2218 = vld [vmem:[%s773 + $0x8] sm:$0xf]
        %v2219 = vld [vmem:[%s773 + $0xc] sm:$0xf]
        %v2220 = vld [vmem:[%s773 + $0x10] sm:$0xf]
        %v2221 = vld [vmem:[%s773 + $0x14] sm:$0xf]
        %v2222 = vld [vmem:[%s773 + $0x18] sm:$0xf]
        %v2223 = vld [vmem:[%s773 + $0x1c] sm:$0xf]
        %v2224 = vld [vmem:[%s773 + $0x20] sm:$0xf]
        %v2225 = vld [vmem:[%s773 + $0x24] sm:$0xf]
        %v2226 = vld [vmem:[%s773 + $0x28] sm:$0xf]
        %v2227 = vld [vmem:[%s773 + $0x2c] sm:$0xf]
        %v2228 = vld [vmem:[%s773 + $0x30] sm:$0xf]
        %v2229 = vld [vmem:[%s773 + $0x34] sm:$0xf]
        %v2230 = vld [vmem:[%s773 + $0x38] sm:$0xf]
        %v2231 = vld [vmem:[%s773 + $0x3c] sm:$0xf]
        %v2232 = vld [vmem:[%s773 + $0x40] sm:$0xf]
        %v2233 = vld [vmem:[%s773 + $0x44] sm:$0xf]
        %v2234 = vld [vmem:[%s773 + $0x48] sm:$0xf]
        %v2235 = vld [vmem:[%s773 + $0x4c] sm:$0xf]
        %v2236 = vld [vmem:[%s773 + $0x50] sm:$0xf]
        %v2237 = vld [vmem:[%s773 + $0x54] sm:$0xf]
        %v2238 = vld [vmem:[%s773 + $0x58] sm:$0xf]
        %v2239 = vld [vmem:[%s773 + $0x5c] sm:$0xf]
        %v2240 = vld [vmem:[%s773 + $0x60] sm:$0xf]
        %v2241 = vld [vmem:[%s773 + $0x64] sm:$0xf]
        %v2242 = vld [vmem:[%s773 + $0x68] sm:$0xf]
        %v2243 = vld [vmem:[%s773 + $0x6c] sm:$0xf]
        %v2244 = vld [vmem:[%s773 + $0x70] sm:$0xf]
        %v2245 = vld [vmem:[%s773 + $0x74] sm:$0xf]
        %v2246 = vld [vmem:[%s773 + $0x78] sm:$0xf]
        %v2247 = vld [vmem:[%s773 + $0x7c] sm:$0xf]
        %v2248 = vld [vmem:[%s773 + $0x80] sm:$0xf]
        %v2249 = vld [vmem:[%s773 + $0x84] sm:$0xf]
        %v2250 = vld [vmem:[%s773 + $0x88] sm:$0xf]
        %v2251 = vld [vmem:[%s773 + $0x8c] sm:$0xf]
        %v2252 = vld [vmem:[%s773 + $0x90] sm:$0xf]
        %v2253 = vld [vmem:[%s773 + $0x94] sm:$0xf]
        %v2254 = vld [vmem:[%s773 + $0x98] sm:$0xf]
        %v2255 = vld [vmem:[%s773 + $0x9c] sm:$0xf]
        %v2256 = vld [vmem:[%s773 + $0xa0] sm:$0xf]
        %v2257 = vld [vmem:[%s773 + $0xa4] sm:$0xf]
        %v2258 = vld [vmem:[%s773 + $0xa8] sm:$0xf]
        %v2259 = vld [vmem:[%s773 + $0xac] sm:$0xf]
        %v2260 = vld [vmem:[%s773 + $0xb0] sm:$0xf]
        %v2261 = vld [vmem:[%s773 + $0xb4] sm:$0xf]
        %v2262 = vld [vmem:[%s773 + $0xb8] sm:$0xf]
        %v2263 = vld [vmem:[%s773 + $0xbc] sm:$0xf]
        %v2264 = vld [vmem:[%s773 + $0xc0] sm:$0xf]
        %v2265 = vld [vmem:[%s773 + $0xc4] sm:$0xf]
        %v2266 = vld [vmem:[%s773 + $0xc8] sm:$0xf]
        %v2267 = vld [vmem:[%s773 + $0xcc] sm:$0xf]
        %v2268 = vld [vmem:[%s773 + $0xd0] sm:$0xf]
        %v2269 = vld [vmem:[%s773 + $0xd4] sm:$0xf]
        %v2270 = vld [vmem:[%s773 + $0xd8] sm:$0xf]
        %v2271 = vld [vmem:[%s773 + $0xdc] sm:$0xf]
        %v2272 = vld [vmem:[%s773 + $0xe0] sm:$0xf]
        %v2273 = vld [vmem:[%s773 + $0xe4] sm:$0xf]
        %v2274 = vld [vmem:[%s773 + $0xe8] sm:$0xf]
        %v2275 = vld [vmem:[%s773 + $0xec] sm:$0xf]
        %v2276 = vld [vmem:[%s773 + $0xf0] sm:$0xf]
        %v2277 = vld [vmem:[%s773 + $0xf4] sm:$0xf]
        %v2278 = vld [vmem:[%s773 + $0xf8] sm:$0xf]
        %v2279 = vld [vmem:[%s773 + $0xfc] sm:$0xf]
        %v2280 = vld [vmem:[%s781] sm:$0x1]
        %v2282 = vlaneseq
        %v2283 = vshrl.u32 %v2282, 7
        %v2284 = vsub.s32 0, %v2283
        %v2285 = vrot.slane %v2280, %v2284
        %v2351 = vunpack.c.l.b16 %v2216
        %v2352 = vunpack.c.l.b16 %v2217
        %v2353 = vunpack.c.l.b16 %v2218
        %v2354 = vunpack.c.l.b16 %v2219
        %v2355 = vunpack.c.l.b16 %v2220
        %v2356 = vunpack.c.l.b16 %v2221
        %v2357 = vunpack.c.l.b16 %v2222
        %v2358 = vunpack.c.l.b16 %v2223
        %v2359 = vunpack.c.l.b16 %v2224
        %v2360 = vunpack.c.l.b16 %v2225
        %v2361 = vunpack.c.l.b16 %v2226
        %v2362 = vunpack.c.l.b16 %v2227
        %v2363 = vunpack.c.l.b16 %v2228
        %v2364 = vunpack.c.l.b16 %v2229
        %v2365 = vunpack.c.l.b16 %v2230
        %v2366 = vunpack.c.l.b16 %v2231
        %v2367 = vunpack.c.l.b16 %v2232
        %v2368 = vunpack.c.l.b16 %v2233
        %v2369 = vunpack.c.l.b16 %v2234
        %v2370 = vunpack.c.l.b16 %v2235
        %v2371 = vunpack.c.l.b16 %v2236
        %v2372 = vunpack.c.l.b16 %v2237
        %v2373 = vunpack.c.l.b16 %v2238
        %v2374 = vunpack.c.l.b16 %v2239
        %v2375 = vunpack.c.l.b16 %v2240
        %v2376 = vunpack.c.l.b16 %v2241
        %v2377 = vunpack.c.l.b16 %v2242
        %v2378 = vunpack.c.l.b16 %v2243
        %v2379 = vunpack.c.l.b16 %v2244
        %v2380 = vunpack.c.l.b16 %v2245
        %v2381 = vunpack.c.l.b16 %v2246
        %v2382 = vunpack.c.l.b16 %v2247
        %v2383 = vunpack.c.l.b16 %v2248
        %v2384 = vunpack.c.l.b16 %v2249
        %v2385 = vunpack.c.l.b16 %v2250
        %v2386 = vunpack.c.l.b16 %v2251
        %v2387 = vunpack.c.l.b16 %v2252
        %v2388 = vunpack.c.l.b16 %v2253
        %v2389 = vunpack.c.l.b16 %v2254
        %v2390 = vunpack.c.l.b16 %v2255
        %v2391 = vunpack.c.l.b16 %v2256
        %v2392 = vunpack.c.l.b16 %v2257
        %v2393 = vunpack.c.l.b16 %v2258
        %v2394 = vunpack.c.l.b16 %v2259
        %v2395 = vunpack.c.l.b16 %v2260
        %v2396 = vunpack.c.l.b16 %v2261
        %v2397 = vunpack.c.l.b16 %v2262
        %v2398 = vunpack.c.l.b16 %v2263
        %v2399 = vunpack.c.l.b16 %v2264
        %v2400 = vunpack.c.l.b16 %v2265
        %v2401 = vunpack.c.l.b16 %v2266
        %v2402 = vunpack.c.l.b16 %v2267
        %v2403 = vunpack.c.l.b16 %v2268
        %v2404 = vunpack.c.l.b16 %v2269
        %v2405 = vunpack.c.l.b16 %v2270
        %v2406 = vunpack.c.l.b16 %v2271
        %v2407 = vunpack.c.l.b16 %v2272
        %v2408 = vunpack.c.l.b16 %v2273
        %v2409 = vunpack.c.l.b16 %v2274
        %v2410 = vunpack.c.l.b16 %v2275
        %v2411 = vunpack.c.l.b16 %v2276
        %v2412 = vunpack.c.l.b16 %v2277
        %v2413 = vunpack.c.l.b16 %v2278
        %v2414 = vunpack.c.l.b16 %v2279
        %v2415 = vpack.c.b16 %v2352, %v2351
        %v2416 = vpack.c.b16 %v2354, %v2353
        %v2417 = vpack.c.b16 %v2356, %v2355
        %v2418 = vpack.c.b16 %v2358, %v2357
        %v2419 = vpack.c.b16 %v2360, %v2359
        %v2420 = vpack.c.b16 %v2362, %v2361
        %v2421 = vpack.c.b16 %v2364, %v2363
        %v2422 = vpack.c.b16 %v2366, %v2365
        %v2423 = vpack.c.b16 %v2368, %v2367
        %v2424 = vpack.c.b16 %v2370, %v2369
        %v2425 = vpack.c.b16 %v2372, %v2371
        %v2426 = vpack.c.b16 %v2374, %v2373
        %v2427 = vpack.c.b16 %v2376, %v2375
        %v2428 = vpack.c.b16 %v2378, %v2377
        %v2429 = vpack.c.b16 %v2380, %v2379
        %v2430 = vpack.c.b16 %v2382, %v2381
        %v2431 = vpack.c.b16 %v2384, %v2383
        %v2432 = vpack.c.b16 %v2386, %v2385
        %v2433 = vpack.c.b16 %v2388, %v2387
        %v2434 = vpack.c.b16 %v2390, %v2389
        %v2435 = vpack.c.b16 %v2392, %v2391
        %v2436 = vpack.c.b16 %v2394, %v2393
        %v2437 = vpack.c.b16 %v2396, %v2395
        %v2438 = vpack.c.b16 %v2398, %v2397
        %v2439 = vpack.c.b16 %v2400, %v2399
        %v2440 = vpack.c.b16 %v2402, %v2401
        %v2441 = vpack.c.b16 %v2404, %v2403
        %v2442 = vpack.c.b16 %v2406, %v2405
        %v2443 = vpack.c.b16 %v2408, %v2407
        %v2444 = vpack.c.b16 %v2410, %v2409
        %v2445 = vpack.c.b16 %v2412, %v2411
        %v2446 = vpack.c.b16 %v2414, %v2413
        %2479 = vmatprep.subr.bf16.mxu0 0
        %2480 = vmatpush1.bf16.msra.mxu0 %v2415
        %2481 = vmatprep.subr.bf16.mxu0 0
        %2482 = vmatpush1.bf16.msra.mxu0 %v2416
        %2483 = vmatprep.subr.bf16.mxu0 0
        %2484 = vmatpush1.bf16.msra.mxu0 %v2417
        %2485 = vmatprep.subr.bf16.mxu0 0
        %2486 = vmatpush1.bf16.msra.mxu0 %v2418
        %2487 = vmatprep.subr.bf16.mxu0 0
        %2488 = vmatpush1.bf16.msra.mxu0 %v2419
        %2489 = vmatprep.subr.bf16.mxu0 0
        %2490 = vmatpush1.bf16.msra.mxu0 %v2420
        %2491 = vmatprep.subr.bf16.mxu0 0
        %2492 = vmatpush1.bf16.msra.mxu0 %v2421
        %2493 = vmatprep.subr.bf16.mxu0 0
        %2494 = vmatpush1.bf16.msra.mxu0 %v2422
        %2495 = vmatprep.subr.bf16.mxu0 0
        %2496 = vmatpush1.bf16.msra.mxu0 %v2423
        %2497 = vmatprep.subr.bf16.mxu0 0
        %2498 = vmatpush1.bf16.msra.mxu0 %v2424
        %2499 = vmatprep.subr.bf16.mxu0 0
        %2500 = vmatpush1.bf16.msra.mxu0 %v2425
        %2501 = vmatprep.subr.bf16.mxu0 0
        %2502 = vmatpush1.bf16.msra.mxu0 %v2426
        %2503 = vmatprep.subr.bf16.mxu0 0
        %2504 = vmatpush1.bf16.msra.mxu0 %v2427
        %2505 = vmatprep.subr.bf16.mxu0 0
        %2506 = vmatpush1.bf16.msra.mxu0 %v2428
        %2507 = vmatprep.subr.bf16.mxu0 0
        %2508 = vmatpush1.bf16.msra.mxu0 %v2429
        %2509 = vmatprep.subr.bf16.mxu0 0
        %2510 = vmatpush1.bf16.msra.mxu0 %v2430
        %2511 = vmatprep.mubr.bf16.mxu0 %v2213
        %2512 = vmatmul.mubr.bf16.gmra.mrb[0].mxu0 %v2212
        %v2513 = vpop.f32.mrb[0].mxu0
        %v2514 = vadd.f32 %v2285, %v2513
        %v2515 = vpop.f32.mrb[0].mxu0
        %v2516 = vpop.f32.mrb[0].mxu0
        %v2517 = vadd.f32 %v2285, %v2516
        %v2518 = vpop.f32.mrb[0].mxu0
        %2519 = vdwg.mxu0
        %2520 = vmatprep.subr.bf16.mxu0 0
        %2521 = vmatpush1.bf16.msra.mxu0 %v2431
        %2522 = vmatprep.subr.bf16.mxu0 0
        %2523 = vmatpush1.bf16.msra.mxu0 %v2432
        %2524 = vmatprep.subr.bf16.mxu0 0
        %2525 = vmatpush1.bf16.msra.mxu0 %v2433
        %2526 = vmatprep.subr.bf16.mxu0 0
        %2527 = vmatpush1.bf16.msra.mxu0 %v2434
        %2528 = vmatprep.subr.bf16.mxu0 0
        %2529 = vmatpush1.bf16.msra.mxu0 %v2435
        %2530 = vmatprep.subr.bf16.mxu0 0
        %2531 = vmatpush1.bf16.msra.mxu0 %v2436
        %2532 = vmatprep.subr.bf16.mxu0 0
        %2533 = vmatpush1.bf16.msra.mxu0 %v2437
        %2534 = vmatprep.subr.bf16.mxu0 0
        %2535 = vmatpush1.bf16.msra.mxu0 %v2438
        %2536 = vmatprep.subr.bf16.mxu0 0
        %2537 = vmatpush1.bf16.msra.mxu0 %v2439
        %2538 = vmatprep.subr.bf16.mxu0 0
        %2539 = vmatpush1.bf16.msra.mxu0 %v2440
        %2540 = vmatprep.subr.bf16.mxu0 0
        %2541 = vmatpush1.bf16.msra.mxu0 %v2441
        %2542 = vmatprep.subr.bf16.mxu0 0
        %2543 = vmatpush1.bf16.msra.mxu0 %v2442
        %2544 = vmatprep.subr.bf16.mxu0 0
        %2545 = vmatpush1.bf16.msra.mxu0 %v2443
        %2546 = vmatprep.subr.bf16.mxu0 0
        %2547 = vmatpush1.bf16.msra.mxu0 %v2444
        %2548 = vmatprep.subr.bf16.mxu0 0
        %2549 = vmatpush1.bf16.msra.mxu0 %v2445
        %2550 = vmatprep.subr.bf16.mxu0 0
        %2551 = vmatpush1.bf16.msra.mxu0 %v2446
        %2552 = vmatprep.mubr.bf16.mxu0 %v2215
        %2553 = vmatmul.mubr.bf16.gmra.mrb[0].mxu0 %v2214
        %v2554 = vpop.f32.mrb[0].mxu0
        %v2555 = vadd.f32 %v2514, %v2554
        %v2556 = vpop.f32.mrb[0].mxu0
        %v2557 = vpop.f32.mrb[0].mxu0
        %v2558 = vadd.f32 %v2517, %v2557
        %v2559 = vpop.f32.mrb[0].mxu0
        %2560 = vdwg.mxu0
        %v2561 = vadd.f32 %v1837, %v2555
        %v2562 = vadd.f32 %v1838, %v2558
        %v2563 = vld [vmem:[%s899] sm:$0x1]
        %v2564 = vld [vmem:[%s902] sm:$0x1]
        %2565 = vadd.xlane.f32.xlu0 %v2561
        %v2566 = vpop.xlane.xlu0 %2565
        %2567 = vadd.xlane.f32.xlu0 %v2562
        %v2568 = vpop.xlane.xlu0 %2567
        %v2569 = vmul.f32 %v2566, %v1804
        %v2570 = vmul.f32 %v2568, %v1804
        %v2571 = vsub.f32 %v2561, %v2569
        %v2572 = vsub.f32 %v2562, %v2570
        %v2573 = vmul.f32 %v2571, %v2571
        %v2574 = vmul.f32 %v2572, %v2572
        %2575 = vadd.xlane.f32.xlu0 %v2573
        %v2576 = vpop.xlane.xlu0 %2575
        %2577 = vadd.xlane.f32.xlu0 %v2574
        %v2578 = vpop.xlane.xlu0 %2577
        %v2579 = vmul.f32 %v2576, %v1804
        %v2580 = vmul.f32 %v2578, %v1804
        %v2581 = vadd.f32 %v2579, 1e-12
        %v2582 = vadd.f32 %v2580, 1e-12
        %v2583 = vrsqrt.pop %v2581
        %v2584 = vrsqrt.pop %v2582
        %v2585 = vmul.f32 %v2571, %v2583
        %v2586 = vmul.f32 %v2572, %v2584
        %v2588 = vlaneseq
        %v2589 = vshrl.u32 %v2588, 7
        %v2590 = vsub.s32 0, %v2589
        %v2591 = vrot.slane %v2563, %v2590
        %v2593 = vmul.f32 %v2585, %v2591
        %v2594 = vmul.f32 %v2586, %v2591
        %v2596 = vlaneseq
        %v2597 = vshrl.u32 %v2596, 7
        %v2598 = vsub.s32 0, %v2597
        %v2599 = vrot.slane %v2564, %v2598
        %v2601 = vadd.f32 %v2593, %v2599
        %v2602 = vadd.f32 %v2594, %v2599
        %2603 = vst [vmem:[#allocation2] sm:$0xff] %v2601
        %2604 = vst [vmem:[#allocation2 + $0x8] sm:$0xff] %v2602
        %p2605 = scmp.eq.s32.totalorder %s43, 1
        // Predicated region
        $region129: #{bert_sentiment_forward.1} parent=99 // pred_check
          %p2606 = pneg %p2605
        $region130: #{bert_sentiment_forward.1} parent=99 // pred_check_branch
          %2608 = sbr.rel (%p2606) target = $region132
        $region131: #{bert_sentiment_forward.1} parent=99 // pred_region
          %v2610 = vrot.slane %v2602, 7
          %vm2612 = vcmask 1040384
          %v2613 = vsel %vm2612, %v2601, %v2610
          %v2614 = vld [vmem:[%s16] sm:$0xff]
          %v2615 = vld [vmem:[%s16 + $0x8] sm:$0xff]
          %v2616 = vld [vmem:[%s16 + $0x10] sm:$0xff]
          %v2617 = vld [vmem:[%s16 + $0x18] sm:$0xff]
          %v2618 = vld [vmem:[%s16 + $0x20] sm:$0xff]
          %v2619 = vld [vmem:[%s16 + $0x28] sm:$0xff]
          %v2620 = vld [vmem:[%s16 + $0x30] sm:$0xff]
          %v2621 = vld [vmem:[%s16 + $0x38] sm:$0xff]
          %v2622 = vld [vmem:[%s16 + $0x40] sm:$0xff]
          %v2623 = vld [vmem:[%s16 + $0x48] sm:$0xff]
          %v2624 = vld [vmem:[%s16 + $0x50] sm:$0xff]
          %v2625 = vld [vmem:[%s16 + $0x58] sm:$0xff]
          %v2626 = vld [vmem:[%s16 + $0x60] sm:$0xff]
          %v2627 = vld [vmem:[%s16 + $0x68] sm:$0xff]
          %v2628 = vld [vmem:[%s16 + $0x70] sm:$0xff]
          %v2629 = vld [vmem:[%s16 + $0x78] sm:$0xff]
          %v2630 = vld [vmem:[%s17] sm:$0x1]
          %v2632 = vlaneseq
          %v2633 = vshrl.u32 %v2632, 7
          %v2634 = vsub.s32 0, %v2633
          %v2635 = vrot.slane %v2630, %v2634
          %2637 = vmatprep.subr.mxu0 0.0
          %2638 = vmatpush1.msra.mxu0 %v2614
          %2639 = vmatprep.subr.mxu0 0.0
          %2640 = vmatpush1.msra.mxu0 %v2615
          %2641 = vmatprep.subr.mxu0 0.0
          %2642 = vmatpush1.msra.mxu0 %v2616
          %2643 = vmatprep.subr.mxu0 0.0
          %2644 = vmatpush1.msra.mxu0 %v2617
          %2645 = vmatprep.subr.mxu0 0.0
          %2646 = vmatpush1.msra.mxu0 %v2618
          %2647 = vmatprep.subr.mxu0 0.0
          %2648 = vmatpush1.msra.mxu0 %v2619
          %2649 = vmatprep.subr.mxu0 0.0
          %2650 = vmatpush1.msra.mxu0 %v2620
          %2651 = vmatprep.subr.mxu0 0.0
          %2652 = vmatpush1.msra.mxu0 %v2621
          %2653 = vmatprep.subr.mxu0 0.0
          %2654 = vmatpush1.msra.mxu0 %v2622
          %2655 = vmatprep.subr.mxu0 0.0
          %2656 = vmatpush1.msra.mxu0 %v2623
          %2657 = vmatprep.subr.mxu0 0.0
          %2658 = vmatpush1.msra.mxu0 %v2624
          %2659 = vmatprep.subr.mxu0 0.0
          %2660 = vmatpush1.msra.mxu0 %v2625
          %2661 = vmatprep.subr.mxu0 0.0
          %2662 = vmatpush1.msra.mxu0 %v2626
          %2663 = vmatprep.subr.mxu0 0.0
          %2664 = vmatpush1.msra.mxu0 %v2627
          %2665 = vmatprep.subr.mxu0 0.0
          %2666 = vmatpush1.msra.mxu0 %v2628
          %2667 = vmatprep.subr.mxu0 0.0
          %2668 = vmatpush1.msra.mxu0 %v2629
          %2669 = vmatprep.subr.mxu0 0.0
          %2670 = vmatpush1.msra.mxu0 0.0
          %2671 = vmatprep.subr.mxu0 0.0
          %2672 = vmatpush1.msra.mxu0 0.0
          %2673 = vmatprep.subr.mxu0 0.0
          %2674 = vmatpush1.msra.mxu0 0.0
          %2675 = vmatprep.subr.mxu0 0.0
          %2676 = vmatpush1.msra.mxu0 0.0
          %2677 = vmatprep.subr.mxu0 0.0
          %2678 = vmatpush1.msra.mxu0 0.0
          %2679 = vmatprep.subr.mxu0 0.0
          %2680 = vmatpush1.msra.mxu0 0.0
          %2681 = vmatprep.subr.mxu0 0.0
          %2682 = vmatpush1.msra.mxu0 0.0
          %2683 = vmatprep.subr.mxu0 0.0
          %2684 = vmatpush1.msra.mxu0 0.0
          %2685 = vmatprep.subr.mxu0 0.0
          %2686 = vmatpush1.msra.mxu0 0.0
          %2687 = vmatprep.subr.mxu0 0.0
          %2688 = vmatpush1.msra.mxu0 0.0
          %2689 = vmatprep.subr.mxu0 0.0
          %2690 = vmatpush1.msra.mxu0 0.0
          %2691 = vmatprep.subr.mxu0 0.0
          %2692 = vmatpush1.msra.mxu0 0.0
          %2693 = vmatprep.subr.mxu0 0.0
          %2694 = vmatpush1.msra.mxu0 0.0
          %2695 = vmatprep.subr.mxu0 0.0
          %2696 = vmatpush1.msra.mxu0 0.0
          %2697 = vmatprep.subr.mxu0 0.0
          %2698 = vmatpush1.msra.mxu0 0.0
          %2699 = vmatprep.subr.mxu0 0.0
          %2700 = vmatpush1.msra.mxu0 0.0
          %2701 = vmatprep.mubr.f32.mxu0 0.0
          %2702 = vmatmul.mubr.f32.gmra.mrb[0].mxu0 %v2613
          %v2703 = vpop.f32.mrb[0].mxu0
          %v2704 = vadd.f32 %v2635, %v2703
          %v2705 = vpop.f32.mrb[0].mxu0
          %2706 = vdwg.mxu0
          %v2707 = vtanh.pop %v2704
          %v2708 = vld [vmem:[%s18] sm:$0xff]
          %v2709 = vld [vmem:[%s18 + $0x8] sm:$0xff]
          %v2710 = vld [vmem:[%s18 + $0x10] sm:$0xff]
          %v2711 = vld [vmem:[%s18 + $0x18] sm:$0xff]
          %v2712 = vld [vmem:[%s18 + $0x20] sm:$0xff]
          %v2713 = vld [vmem:[%s18 + $0x28] sm:$0xff]
          %v2714 = vld [vmem:[%s18 + $0x30] sm:$0xff]
          %v2715 = vld [vmem:[%s18 + $0x38] sm:$0xff]
          %v2716 = vld [vmem:[%s18 + $0x40] sm:$0xff]
          %v2717 = vld [vmem:[%s18 + $0x48] sm:$0xff]
          %v2718 = vld [vmem:[%s18 + $0x50] sm:$0xff]
          %v2719 = vld [vmem:[%s18 + $0x58] sm:$0xff]
          %v2720 = vld [vmem:[%s18 + $0x60] sm:$0xff]
          %v2721 = vld [vmem:[%s18 + $0x68] sm:$0xff]
          %v2722 = vld [vmem:[%s18 + $0x70] sm:$0xff]
          %v2723 = vld [vmem:[%s18 + $0x78] sm:$0xff]
          %v2724 = vld [vmem:[#allocation4] sm:$0x1]
          %v2726 = vlaneseq
          %v2727 = vshrl.u32 %v2726, 7
          %v2728 = vsub.s32 0, %v2727
          %v2729 = vrot.slane %v2724, %v2728
          %2731 = vmatprep.subr.mxu0 0.0
          %2732 = vmatpush1.msra.mxu0 %v2708
          %2733 = vmatprep.subr.mxu0 0.0
          %2734 = vmatpush1.msra.mxu0 %v2709
          %2735 = vmatprep.subr.mxu0 0.0
          %2736 = vmatpush1.msra.mxu0 %v2710
          %2737 = vmatprep.subr.mxu0 0.0
          %2738 = vmatpush1.msra.mxu0 %v2711
          %2739 = vmatprep.subr.mxu0 0.0
          %2740 = vmatpush1.msra.mxu0 %v2712
          %2741 = vmatprep.subr.mxu0 0.0
          %2742 = vmatpush1.msra.mxu0 %v2713
          %2743 = vmatprep.subr.mxu0 0.0
          %2744 = vmatpush1.msra.mxu0 %v2714
          %2745 = vmatprep.subr.mxu0 0.0
          %2746 = vmatpush1.msra.mxu0 %v2715
          %2747 = vmatprep.subr.mxu0 0.0
          %2748 = vmatpush1.msra.mxu0 %v2716
          %2749 = vmatprep.subr.mxu0 0.0
          %2750 = vmatpush1.msra.mxu0 %v2717
          %2751 = vmatprep.subr.mxu0 0.0
          %2752 = vmatpush1.msra.mxu0 %v2718
          %2753 = vmatprep.subr.mxu0 0.0
          %2754 = vmatpush1.msra.mxu0 %v2719
          %2755 = vmatprep.subr.mxu0 0.0
          %2756 = vmatpush1.msra.mxu0 %v2720
          %2757 = vmatprep.subr.mxu0 0.0
          %2758 = vmatpush1.msra.mxu0 %v2721
          %2759 = vmatprep.subr.mxu0 0.0
          %2760 = vmatpush1.msra.mxu0 %v2722
          %2761 = vmatprep.subr.mxu0 0.0
          %2762 = vmatpush1.msra.mxu0 %v2723
          %2763 = vmatprep.subr.mxu0 0.0
          %2764 = vmatpush1.msra.mxu0 0.0
          %2765 = vmatprep.subr.mxu0 0.0
          %2766 = vmatpush1.msra.mxu0 0.0
          %2767 = vmatprep.subr.mxu0 0.0
          %2768 = vmatpush1.msra.mxu0 0.0
          %2769 = vmatprep.subr.mxu0 0.0
          %2770 = vmatpush1.msra.mxu0 0.0
          %2771 = vmatprep.subr.mxu0 0.0
          %2772 = vmatpush1.msra.mxu0 0.0
          %2773 = vmatprep.subr.mxu0 0.0
          %2774 = vmatpush1.msra.mxu0 0.0
          %2775 = vmatprep.subr.mxu0 0.0
          %2776 = vmatpush1.msra.mxu0 0.0
          %2777 = vmatprep.subr.mxu0 0.0
          %2778 = vmatpush1.msra.mxu0 0.0
          %2779 = vmatprep.subr.mxu0 0.0
          %2780 = vmatpush1.msra.mxu0 0.0
          %2781 = vmatprep.subr.mxu0 0.0
          %2782 = vmatpush1.msra.mxu0 0.0
          %2783 = vmatprep.subr.mxu0 0.0
          %2784 = vmatpush1.msra.mxu0 0.0
          %2785 = vmatprep.subr.mxu0 0.0
          %2786 = vmatpush1.msra.mxu0 0.0
          %2787 = vmatprep.subr.mxu0 0.0
          %2788 = vmatpush1.msra.mxu0 0.0
          %2789 = vmatprep.subr.mxu0 0.0
          %2790 = vmatpush1.msra.mxu0 0.0
          %2791 = vmatprep.subr.mxu0 0.0
          %2792 = vmatpush1.msra.mxu0 0.0
          %2793 = vmatprep.subr.mxu0 0.0
          %2794 = vmatpush1.msra.mxu0 0.0
          %2795 = vmatprep.mubr.f32.mxu0 0.0
          %2796 = vmatmul.mubr.f32.gmra.mrb[0].mxu0 %v2707
          %v2797 = vpop.f32.mrb[0].mxu0
          %v2798 = vadd.f32 %v2729, %v2797
          %v2799 = vpop.f32.mrb[0].mxu0
          %2800 = vdwg.mxu0
          %v2801 = vxor.u32 %v2798, 2147483648
          %v2802 = vmul.f32 %v2801, 1.442695
          %v2803 = vpow.pop %v2802
          %v2804 = vadd.f32 %v2803, 1.0
          %v2805 = vrcp.pop %v2804
          %v2806 = vmul.f32 1.0, %v2805
          %vm2807 = vcmask 1024
          %2808 = vst.msk [vmem:[%s20] sm:$0x3] %vm2807, %v2806
        $region132: #{bert_sentiment_forward.1} parent=99 // pred_fallthru
          _
        // Predicated region
        $region133: #{bert_sentiment_forward.1} parent=99 // pred_check
          %p2809 = pneg %p536
        $region134: #{bert_sentiment_forward.1} parent=99 // pred_check_branch
          %2811 = sbr.rel (%p2809) target = $region136
        $region135: #{bert_sentiment_forward.1} parent=99 // pred_region
          _
        $region136: #{bert_sentiment_forward.1} parent=99 // pred_fallthru
          _
        // Predicated region
        $region137: #{bert_sentiment_forward.1} parent=99 // pred_check
          %p2812 = pneg %p536
        $region138: #{bert_sentiment_forward.1} parent=99 // pred_check_branch
          %2814 = sbr.rel (%p2812) target = $region140
        $region139: #{bert_sentiment_forward.1} parent=99 // pred_region
          _
        $region140: #{bert_sentiment_forward.1} parent=99 // pred_fallthru
          _
      $region100: #{bert_sentiment_forward.1} parent=5 // pred_fallthru
        _
      %p2815 = scmp.le.s32.totalorder 2, %s38
      // Predicated region
      $region141: #{bert_sentiment_forward.1} parent=5 // pred_check
        %p2816 = pneg %p2815
      $region142: #{bert_sentiment_forward.1} parent=5 // pred_check_branch
        %2818 = sbr.rel (%p2816) target = $region144
      $region143: #{bert_sentiment_forward.1} parent=5 // pred_region
        %s2819 = ssub.s32 %s38, 2
      $region144: #{bert_sentiment_forward.1} parent=5 // pred_fallthru
        _
    $region6: #{bert_sentiment_forward.1} parent=1 // loop_footer
      %s42 = sadd.s32 1, %s38
    $region7: #{bert_sentiment_forward.1} parent=1 // loop_footer_branch
      %37 = sbr.rel target = $region3
    $region8: #{bert_sentiment_forward.1} parent=1 // loop_exit
      _
    %2820 = vsyncpa [#allocation6], 1
    %s2821 = scalar_lea.sflag [#allocation6], 1
    %2822 = vsyncpa %s2821, 1
    %2823 = vsyncpa [#allocation8], 1
    %s2824 = scalar_lea.sflag [#allocation8], 1
    %2825 = vsyncpa %s2824, 1
    %2826 = vsyncpa [#allocation11], 1
    %s2827 = scalar_lea.sflag [#allocation11], 1
    %2828 = vsyncpa %s2827, 1
    %2829 = vsyncpa [#allocation14], 1
    %s2830 = scalar_lea.sflag [#allocation14], 1
    %2831 = vsyncpa %s2830, 1

</llo_original>
